<compile_context>
chip_gen: v7x
topology: tpu7x:2x2x1
jax: 0.10.0
libtpu: 0.0.40
codegen_flags: <defaults>
</compile_context>

<pallas_src>
import functools
import numpy as np
import jax
import jax.numpy as jnp
from jax.experimental import pallas as pl
from jax.experimental.pallas import tpu as pltpu

# ---------------------------------------------------------------------------
# Config (mirrors the module's __init__ arguments, kept small)
# ---------------------------------------------------------------------------
DIM = 32
DEPTH = 2
NUM_HEADS = 4
HEAD_DIM = DIM // NUM_HEADS
PATCH_SIZE = 4
INPUT_SHAPE = (3, 16, 16)          # (C, H, W)
MLP_HIDDEN = 4 * DIM               # mlp_hidden_dim=None -> 4*dim
NUM_CLS_TOKENS = 1
LAYERSCALE = 1e-4
NUM_OUTPUTS = 10
EPS = 1e-6
BATCH = 2

_C, _H, _W = INPUT_SHAPE
PATCH_DIM = _C * PATCH_SIZE * PATCH_SIZE                  # 48
NUM_PATCHES = (_H // PATCH_SIZE) * (_W // PATCH_SIZE)     # 16
NUM_TOKENS = NUM_CLS_TOKENS + NUM_PATCHES                 # 17
SEQ_PAD = ((NUM_TOKENS + 7) // 8) * 8                     # 24 (sublane aligned)
BN = BATCH * SEQ_PAD                                      # 48 rows, batch folded
MASK_VAL = np.float32(-1e30)


# ---------------------------------------------------------------------------
# In-kernel math helpers
# ---------------------------------------------------------------------------
def _layernorm(x, w, b, eps):
    mu = jnp.mean(x, axis=-1, keepdims=True)
    var = jnp.mean(jnp.square(x - mu), axis=-1, keepdims=True)
    return (x - mu) * jax.lax.rsqrt(var + eps) * w + b


def _gelu_exact(x):
    # PyTorch nn.GELU() default (approximate='none') -> erf-based GELU.
    return 0.5 * x * (1.0 + jax.lax.erf(x * np.float32(1.0 / np.sqrt(2.0))))


# ---------------------------------------------------------------------------
# Fused kernel: one grid step == one transformer block (plus embed on step 0
# and the classifier head on the final step).
# ---------------------------------------------------------------------------
def vit_fused_kernel(tok_ref, pw_ref, add_ref,
                     ln1w, ln1b, wqkv, bqkv, wproj, bproj, g1,
                     ln2w, ln2b, w1, b1, w2, b2, g2,
                     hlnw, hlnb, hw, hb,
                     out_ref, x_scr):
    l = pl.program_id(0)

    # ---- grid step 0: patch embed + conv bias + pos embed + cls prepend ----
    @pl.when(l == 0)
    def _():
        # tok rows per image: [zero cls slot | patches | zero padding]
        # add rows per image: [cls vector   | bias+pos | zeros        ]
        x_scr[...] = (jnp.dot(tok_ref[...], pw_ref[...],
                              preferred_element_type=jnp.float32)
                      + add_ref[...])

    x = x_scr[...]                                        # (B*Sp, D)
    scale = np.float32(1.0 / np.sqrt(HEAD_DIM))

    # key-padding mask (padded tokens never contribute as attention keys)
    col = jax.lax.broadcasted_iota(jnp.int32, (SEQ_PAD, SEQ_PAD), 1)
    kmask = (col < NUM_TOKENS)[None]                      # (1, Sp, Sp)

    # ---- attention branch: x + ls1(attn(norm1(x))) ----
    xn = _layernorm(x, ln1w[0], ln1b[0], EPS)
    qkv = jnp.dot(xn, wqkv[0], preferred_element_type=jnp.float32) + bqkv[0]
    qkv3 = qkv.reshape(BATCH, SEQ_PAD, 3 * DIM)           # tile-aligned reshape
    heads = []
    for h in range(NUM_HEADS):                            # static unroll
        q = qkv3[:, :, h * HEAD_DIM:(h + 1) * HEAD_DIM]
        k = qkv3[:, :, DIM + h * HEAD_DIM: DIM + (h + 1) * HEAD_DIM]
        v = qkv3[:, :, 2 * DIM + h * HEAD_DIM: 2 * DIM + (h + 1) * HEAD_DIM]
        s = jnp.einsum('bqd,bkd->bqk', q, k,
                       preferred_element_type=jnp.float32) * scale
        s = jnp.where(kmask, s, MASK_VAL)
        s = s - jnp.max(s, axis=-1, keepdims=True)
        e = jnp.exp(s)
        p = e / jnp.sum(e, axis=-1, keepdims=True)
        heads.append(jnp.einsum('bqk,bkd->bqd', p, v,
                                preferred_element_type=jnp.float32))
    attn = jnp.concatenate(heads, axis=-1).reshape(BN, DIM)
    attn = jnp.dot(attn, wproj[0], preferred_element_type=jnp.float32) + bproj[0]
    x = x + g1[0] * attn                                  # drop_path=0 -> identity

    # ---- mlp branch: x + ls2(mlp(norm2(x))) ----
    xn2 = _layernorm(x, ln2w[0], ln2b[0], EPS)
    h1 = _gelu_exact(jnp.dot(xn2, w1[0], preferred_element_type=jnp.float32) + b1[0])
    h2 = jnp.dot(h1, w2[0], preferred_element_type=jnp.float32) + b2[0]
    x = x + g2[0] * h2
    x_scr[...] = x

    # ---- final grid step: classifier head on the cls token of each image ----
    @pl.when(l == DEPTH - 1)
    def _():
        cls = jnp.concatenate(
            [x[b * SEQ_PAD:b * SEQ_PAD + 1, :] for b in range(BATCH)], axis=0)
        cn = _layernorm(cls, hlnw[...], hlnb[...], EPS)
        out_ref[...] = (jnp.dot(cn, hw[...], preferred_element_type=jnp.float32)
                        + hb[...])


# ---------------------------------------------------------------------------
# pallas_call wrapper
# ---------------------------------------------------------------------------
def _const2(shape):
    # same full block every grid step (Pallas skips re-DMA for unchanged index)
    return pl.BlockSpec(shape, lambda l: (0, 0))


def _layer(shape2):
    # per-layer block of a (DEPTH, d1, d2)-stacked weight
    return pl.BlockSpec((1,) + shape2, lambda l: (l, 0, 0))


def _cost_estimate():
    proj = 2 * BN * DIM
    per_layer = (proj * 3 * DIM                                     # qkv
                 + 4 * BATCH * NUM_HEADS * SEQ_PAD * SEQ_PAD * HEAD_DIM  # qk^T + pv
                 + proj * DIM                                       # out proj
                 + 2 * proj * MLP_HIDDEN)                           # fc1 + fc2
    flops = (DEPTH * per_layer
             + 2 * BN * PATCH_DIM * DIM
             + 2 * BATCH * DIM * NUM_OUTPUTS)
    trans = DEPTH * (BATCH * NUM_HEADS * SEQ_PAD * SEQ_PAD + BN * MLP_HIDDEN)
    per_layer_params = (6 * DIM + 3 * DIM + DIM * 3 * DIM + DIM * DIM
                        + 2 * DIM * MLP_HIDDEN + MLP_HIDDEN + DIM)
    bytes_acc = 4 * (BN * PATCH_DIM + PATCH_DIM * DIM + BN * DIM
                     + DEPTH * per_layer_params
                     + 2 * DIM + DIM * NUM_OUTPUTS + NUM_OUTPUTS
                     + BATCH * NUM_OUTPUTS)
    return pl.CostEstimate(flops=flops, transcendentals=trans,
                           bytes_accessed=bytes_acc)


def run_vit_fused(tok, add, p):
    return pl.pallas_call(
        vit_fused_kernel,
        out_shape=jax.ShapeDtypeStruct((BATCH, NUM_OUTPUTS), jnp.float32),
        grid=(DEPTH,),
        in_specs=[
            _const2((BN, PATCH_DIM)),              # tok
            _const2((PATCH_DIM, DIM)),             # patch embed weight
            _const2((BN, DIM)),                    # cls/bias/pos additive table
            _layer((1, DIM)), _layer((1, DIM)),    # norm1 w, b
            _layer((DIM, 3 * DIM)), _layer((1, 3 * DIM)),   # qkv
            _layer((DIM, DIM)), _layer((1, DIM)),  # attn out proj
            _layer((1, DIM)),                      # layerscale gamma1
            _layer((1, DIM)), _layer((1, DIM)),    # norm2 w, b
            _layer((DIM, MLP_HIDDEN)), _layer((1, MLP_HIDDEN)),  # mlp fc1
            _layer((MLP_HIDDEN, DIM)), _layer((1, DIM)),         # mlp fc2
            _layer((1, DIM)),                      # layerscale gamma2
            _const2((1, DIM)), _const2((1, DIM)),  # head LayerNorm
            _const2((DIM, NUM_OUTPUTS)), _const2((1, NUM_OUTPUTS)),  # head Linear
        ],
        out_specs=pl.BlockSpec((BATCH, NUM_OUTPUTS), lambda l: (0, 0)),
        scratch_shapes=[pltpu.VMEM((BN, DIM), jnp.float32)],
        compiler_params=pltpu.CompilerParams(dimension_semantics=("arbitrary",)),
        cost_estimate=_cost_estimate(),
    )(tok, p["patch_w"], add,
      p["ln1_w"], p["ln1_b"], p["wqkv"], p["bqkv"], p["wproj"], p["bproj"], p["g1"],
      p["ln2_w"], p["ln2_b"], p["w1"], p["b1"], p["w2"], p["b2"], p["g2"],
      p["head_ln_w"], p["head_ln_b"], p["head_w"], p["head_b"])


# ---------------------------------------------------------------------------
# Glue: patch extraction + padded token/additive tables, full forward
# ---------------------------------------------------------------------------
def extract_patches(x_nchw, ps):
    # Conv2d(kernel=stride=ps) im2col; features ordered (c, kh, kw) to match
    # the flattened PyTorch conv weight.
    b, c, h, w = x_nchw.shape
    hp, wp = h // ps, w // ps
    p = x_nchw.reshape(b, c, hp, ps, wp, ps)
    p = p.transpose(0, 2, 4, 1, 3, 5)              # (b, hp, wp, c, ps, ps)
    return p.reshape(b, hp * wp, c * ps * ps)


@jax.jit
def vit_forward(x_nchw, params):
    b = x_nchw.shape[0]                            # == BATCH
    patches = extract_patches(x_nchw, PATCH_SIZE)  # (B, Np, P)
    # token matrix: row 0 per image reserved for cls (zeros), rows 1..Np patches,
    # rows Np+1.. padding zeros -> (B*SEQ_PAD, P)
    tok = jnp.zeros((b, SEQ_PAD, PATCH_DIM), jnp.float32)
    tok = tok.at[:, NUM_CLS_TOKENS:NUM_CLS_TOKENS + NUM_PATCHES].set(patches)
    tok = tok.reshape(b * SEQ_PAD, PATCH_DIM)
    # additive table: cls vector / (conv bias + pos embed) / zeros, tiled over B
    add = jnp.zeros((SEQ_PAD, DIM), jnp.float32)
    add = add.at[0:NUM_CLS_TOKENS].set(params["cls"][0])
    add = add.at[NUM_CLS_TOKENS:NUM_CLS_TOKENS + NUM_PATCHES].set(
        params["pos"] + params["patch_b"])
    add = jnp.tile(add, (b, 1))
    return run_vit_fused(tok, add, params)


# ---------------------------------------------------------------------------
# Deterministic synthetic parameters (per-layer tensors stacked on DEPTH axis)
# ---------------------------------------------------------------------------
def init_params(key):
    def nxt():
        nonlocal key
        key, sub = jax.random.split(key)
        return sub

    def rnd(shape, scale=0.02):
        return jax.random.normal(nxt(), shape, jnp.float32) * scale

    return dict(
        patch_w=rnd((PATCH_DIM, DIM)),             # Conv2d weight, flattened+T
        patch_b=rnd((1, DIM)),
        pos=rnd((NUM_PATCHES, DIM)),               # VitPosEmbed2d, flattened
        cls=rnd((1, NUM_CLS_TOKENS, DIM)),
        head_ln_w=jnp.ones((1, DIM), jnp.float32),
        head_ln_b=jnp.zeros((1, DIM), jnp.float32),
        head_w=rnd((DIM, NUM_OUTPUTS)),
        head_b=rnd((1, NUM_OUTPUTS)),
        # per-layer weights stacked along a leading DEPTH axis
        ln1_w=jnp.ones((DEPTH, 1, DIM), jnp.float32),
        ln1_b=jnp.zeros((DEPTH, 1, DIM), jnp.float32),
        wqkv=rnd((DEPTH, DIM, 3 * DIM)),
        bqkv=rnd((DEPTH, 1, 3 * DIM)),
        wproj=rnd((DEPTH, DIM, DIM)),
        bproj=rnd((DEPTH, 1, DIM)),
        g1=jnp.full((DEPTH, 1, DIM), LAYERSCALE, jnp.float32),
        ln2_w=jnp.ones((DEPTH, 1, DIM), jnp.float32),
        ln2_b=jnp.zeros((DEPTH, 1, DIM), jnp.float32),
        w1=rnd((DEPTH, DIM, MLP_HIDDEN)),
        b1=rnd((DEPTH, 1, MLP_HIDDEN)),
        w2=rnd((DEPTH, MLP_HIDDEN, DIM)),
        b2=rnd((DEPTH, 1, DIM)),
        g2=jnp.full((DEPTH, 1, DIM), LAYERSCALE, jnp.float32),
    )


# ---------------------------------------------------------------------------
# Pure-JAX reference (unpadded, same math) for a correctness cross-check
# ---------------------------------------------------------------------------
def vit_reference(x_nchw, params):
    dot = functools.partial(jnp.dot, precision=jax.lax.Precision.HIGHEST)
    patches = extract_patches(x_nchw, PATCH_SIZE)
    x = dot(patches, params["patch_w"]) + params["patch_b"] + params["pos"][None]
    cls = jnp.broadcast_to(params["cls"], (x.shape[0], NUM_CLS_TOKENS, DIM))
    x = jnp.concatenate([cls, x], axis=1)
    for l in range(DEPTH):
        xn = _layernorm(x, params["ln1_w"][l], params["ln1_b"][l], EPS)
        qkv = dot(xn, params["wqkv"][l]) + params["bqkv"][l]
        heads = []
        for h in range(NUM_HEADS):
            q = qkv[..., h * HEAD_DIM:(h + 1) * HEAD_DIM]
            k = qkv[..., DIM + h * HEAD_DIM: DIM + (h + 1) * HEAD_DIM]
            v = qkv[..., 2 * DIM + h * HEAD_DIM: 2 * DIM + (h + 1) * HEAD_DIM]
            s = jnp.einsum("bqd,bkd->bqk", q, k,
                           precision=jax.lax.Precision.HIGHEST) / np.sqrt(HEAD_DIM)
            p = jax.nn.softmax(s, axis=-1)
            heads.append(jnp.einsum("bqk,bkd->bqd", p, v,
                                    precision=jax.lax.Precision.HIGHEST))
        attn = jnp.concatenate(heads, axis=-1)
        x = x + params["g1"][l] * (dot(attn, params["wproj"][l]) + params["bproj"][l])
        xn2 = _layernorm(x, params["ln2_w"][l], params["ln2_b"][l], EPS)
        h1 = _gelu_exact(dot(xn2, params["w1"][l]) + params["b1"][l])
        x = x + params["g2"][l] * (dot(h1, params["w2"][l]) + params["b2"][l])
    xh = _layernorm(x[:, 0], params["head_ln_w"], params["head_ln_b"], EPS)
    return dot(xh, params["head_w"]) + params["head_b"]


# ---------------------------------------------------------------------------
if __name__ == "__main__":
    key = jax.random.PRNGKey(0)
    k_x, k_p = jax.random.split(key)
    x = jax.random.normal(k_x, (BATCH,) + INPUT_SHAPE, dtype=jnp.float32)
    params = init_params(k_p)

    out = jax.block_until_ready(vit_forward(x, params))
    assert out.shape == (BATCH, NUM_OUTPUTS), out.shape

    ref = jax.block_until_ready(vit_reference(x, params))
    np.testing.assert_allclose(np.asarray(out), np.asarray(ref),
                               rtol=2e-2, atol=2e-3)

    # TODO(synk): load_state_dict / sincos pos-embed interpolation is
    # checkpoint-only logic with no forward-pass equivalent here.
    print("KERNEL_OK")
</pallas_src>

<mosaic_0001>
module attributes {stable_mosaic.version = 11 : i64} {
  func.func @vit_fused_kernel(%arg0: i32, %arg1: memref<48x48xf32, #tpu.memory_space<vmem>>, %arg2: memref<48x32xf32, #tpu.memory_space<vmem>>, %arg3: memref<48x32xf32, #tpu.memory_space<vmem>>, %arg4: memref<1x1x32xf32, #tpu.memory_space<vmem>>, %arg5: memref<1x1x32xf32, #tpu.memory_space<vmem>>, %arg6: memref<1x32x96xf32, #tpu.memory_space<vmem>>, %arg7: memref<1x1x96xf32, #tpu.memory_space<vmem>>, %arg8: memref<1x32x32xf32, #tpu.memory_space<vmem>>, %arg9: memref<1x1x32xf32, #tpu.memory_space<vmem>>, %arg10: memref<1x1x32xf32, #tpu.memory_space<vmem>>, %arg11: memref<1x1x32xf32, #tpu.memory_space<vmem>>, %arg12: memref<1x1x32xf32, #tpu.memory_space<vmem>>, %arg13: memref<1x32x128xf32, #tpu.memory_space<vmem>>, %arg14: memref<1x1x128xf32, #tpu.memory_space<vmem>>, %arg15: memref<1x128x32xf32, #tpu.memory_space<vmem>>, %arg16: memref<1x1x32xf32, #tpu.memory_space<vmem>>, %arg17: memref<1x1x32xf32, #tpu.memory_space<vmem>>, %arg18: memref<1x32xf32, #tpu.memory_space<vmem>>, %arg19: memref<1x32xf32, #tpu.memory_space<vmem>>, %arg20: memref<32x10xf32, #tpu.memory_space<vmem>>, %arg21: memref<1x10xf32, #tpu.memory_space<vmem>>, %arg22: memref<2x10xf32, #tpu.memory_space<vmem>>, %arg23: memref<48x32xf32, #tpu.memory_space<vmem>>) attributes {dimension_semantics = [#tpu.dimension_semantics<arbitrary>], iteration_bounds = array<i64: 2>, scalar_prefetch = 0 : i64, scratch_operands = 1 : i64, tpu.core_type = #tpu.core_type<tc>, window_params = [{pipeline_mode = #tpu.pipeline_mode<synchronous>, transform_indices = @transform_0, window_bounds = array<i64: 48, 48>}, {pipeline_mode = #tpu.pipeline_mode<synchronous>, transform_indices = @transform_1, window_bounds = array<i64: 48, 32>}, {pipeline_mode = #tpu.pipeline_mode<synchronous>, transform_indices = @transform_2, window_bounds = array<i64: 48, 32>}, {transform_indices = @transform_3, window_bounds = array<i64: 1, 1, 32>}, {transform_indices = @transform_4, window_bounds = array<i64: 1, 1, 32>}, {transform_indices = @transform_5, window_bounds = array<i64: 1, 32, 96>}, {transform_indices = @transform_6, window_bounds = array<i64: 1, 1, 96>}, {transform_indices = @transform_7, window_bounds = array<i64: 1, 32, 32>}, {transform_indices = @transform_8, window_bounds = array<i64: 1, 1, 32>}, {transform_indices = @transform_9, window_bounds = array<i64: 1, 1, 32>}, {transform_indices = @transform_10, window_bounds = array<i64: 1, 1, 32>}, {transform_indices = @transform_11, window_bounds = array<i64: 1, 1, 32>}, {transform_indices = @transform_12, window_bounds = array<i64: 1, 32, 128>}, {transform_indices = @transform_13, window_bounds = array<i64: 1, 1, 128>}, {transform_indices = @transform_14, window_bounds = array<i64: 1, 128, 32>}, {transform_indices = @transform_15, window_bounds = array<i64: 1, 1, 32>}, {transform_indices = @transform_16, window_bounds = array<i64: 1, 1, 32>}, {pipeline_mode = #tpu.pipeline_mode<synchronous>, transform_indices = @transform_17, window_bounds = array<i64: 1, 32>}, {pipeline_mode = #tpu.pipeline_mode<synchronous>, transform_indices = @transform_18, window_bounds = array<i64: 1, 32>}, {pipeline_mode = #tpu.pipeline_mode<synchronous>, transform_indices = @transform_19, window_bounds = array<i64: 32, 10>}, {pipeline_mode = #tpu.pipeline_mode<synchronous>, transform_indices = @transform_20, window_bounds = array<i64: 1, 10>}, {pipeline_mode = #tpu.pipeline_mode<synchronous>, transform_indices = @transform_21, window_bounds = array<i64: 2, 10>}]} {
    %c0_i32 = arith.constant 0 : i32
    %0 = arith.cmpi eq, %arg0, %c0_i32 : i32
    %1 = arith.extui %0 : i1 to i32
    %c0_i32_0 = arith.constant 0 : i32
    %2 = arith.cmpi ne, %1, %c0_i32_0 : i32
    scf.if %2 {
      %c0_87 = arith.constant 0 : index
      %c0_88 = arith.constant 0 : index
      %193 = vector.load %arg1[%c0_87, %c0_88] : memref<48x48xf32, #tpu.memory_space<vmem>>, vector<48x48xf32>
      %c0_89 = arith.constant 0 : index
      %c0_90 = arith.constant 0 : index
      %194 = vector.load %arg2[%c0_89, %c0_90] : memref<48x32xf32, #tpu.memory_space<vmem>>, vector<48x32xf32>
      %cst_91 = arith.constant dense<0.000000e+00> : vector<48x32xf32>
      %195 = tpu.matmul %193, %194, %cst_91 {dimension_numbers = #tpu.dot_dimension_numbers<[1], [0], [0], [1], [0, 0, 1, 1], [], []>} : vector<48x48xf32>, vector<48x32xf32>, vector<48x32xf32> -> vector<48x32xf32>
      %c0_92 = arith.constant 0 : index
      %c0_93 = arith.constant 0 : index
      %196 = vector.load %arg3[%c0_92, %c0_93] : memref<48x32xf32, #tpu.memory_space<vmem>>, vector<48x32xf32>
      %197 = arith.addf %195, %196 : vector<48x32xf32>
      %c0_94 = arith.constant 0 : index
      %c0_95 = arith.constant 0 : index
      %198 = vector.load %arg23[%c0_94, %c0_95] : memref<48x32xf32, #tpu.memory_space<vmem>>, vector<48x32xf32>
      tpu.vector_store %arg23[%c0_94, %c0_95], %197 {strides = array<i32>} : memref<48x32xf32, #tpu.memory_space<vmem>>, vector<48x32xf32>,
    } else {
    }
    %c0 = arith.constant 0 : index
    %c0_1 = arith.constant 0 : index
    %3 = vector.load %arg23[%c0, %c0_1] : memref<48x32xf32, #tpu.memory_space<vmem>>, vector<48x32xf32>
    %4 = tpu.iota {dimensions = array<i32: 1>} : vector<24x24xi32>
    %c17_i32 = arith.constant 17 : i32
    %5 = vector.broadcast %c17_i32 : i32 to vector<24x24xi32>
    %6 = arith.cmpi slt, %4, %5 : vector<24x24xi32>
    %7 = vector.shape_cast %6 : vector<24x24xi1> to vector<1x24x24xi1>
    %c0_2 = arith.constant 0 : index
    %c0_3 = arith.constant 0 : index
    %c0_4 = arith.constant 0 : index
    %8 = vector.load %arg4[%c0_2, %c0_3, %c0_4] : memref<1x1x32xf32, #tpu.memory_space<vmem>>, vector<1x1x32xf32>
    %9 = vector.shape_cast %8 : vector<1x1x32xf32> to vector<1x32xf32>
    %c0_5 = arith.constant 0 : index
    %c0_6 = arith.constant 0 : index
    %c0_7 = arith.constant 0 : index
    %10 = vector.load %arg5[%c0_5, %c0_6, %c0_7] : memref<1x1x32xf32, #tpu.memory_space<vmem>>, vector<1x1x32xf32>
    %11 = vector.shape_cast %10 : vector<1x1x32xf32> to vector<1x32xf32>
    %cst = arith.constant dense<0.000000e+00> : vector<48xf32>
    %12 = vector.multi_reduction <add>, %3, %cst [1] : vector<48x32xf32> to vector<48xf32>
    %13 = vector.shape_cast %12 : vector<48xf32> to vector<48x1xf32>
    %cst_8 = arith.constant 3.200000e+01 : f32
    %14 = vector.broadcast %cst_8 : f32 to vector<48x1xf32>
    %15 = arith.divf %13, %14 : vector<48x1xf32>
    %16 = vector.broadcast %15 : vector<48x1xf32> to vector<48x32xf32>
    %17 = arith.subf %3, %16 : vector<48x32xf32>
    %18 = arith.mulf %17, %17 : vector<48x32xf32>
    %cst_9 = arith.constant dense<0.000000e+00> : vector<48xf32>
    %19 = vector.multi_reduction <add>, %18, %cst_9 [1] : vector<48x32xf32> to vector<48xf32>
    %20 = vector.shape_cast %19 : vector<48xf32> to vector<48x1xf32>
    %cst_10 = arith.constant 3.200000e+01 : f32
    %21 = vector.broadcast %cst_10 : f32 to vector<48x1xf32>
    %22 = arith.divf %20, %21 : vector<48x1xf32>
    %23 = vector.broadcast %15 : vector<48x1xf32> to vector<48x32xf32>
    %24 = arith.subf %3, %23 : vector<48x32xf32>
    %cst_11 = arith.constant 9.99999997E-7 : f32
    %25 = vector.broadcast %cst_11 : f32 to vector<48x1xf32>
    %26 = arith.addf %22, %25 : vector<48x1xf32>
    %27 = math.rsqrt %26 : vector<48x1xf32>
    %28 = vector.broadcast %27 : vector<48x1xf32> to vector<48x32xf32>
    %29 = arith.mulf %24, %28 : vector<48x32xf32>
    %30 = vector.broadcast %9 : vector<1x32xf32> to vector<48x32xf32>
    %31 = arith.mulf %29, %30 : vector<48x32xf32>
    %32 = vector.broadcast %11 : vector<1x32xf32> to vector<48x32xf32>
    %33 = arith.addf %31, %32 : vector<48x32xf32>
    %c0_12 = arith.constant 0 : index
    %c0_13 = arith.constant 0 : index
    %c0_14 = arith.constant 0 : index
    %34 = vector.load %arg6[%c0_12, %c0_13, %c0_14] : memref<1x32x96xf32, #tpu.memory_space<vmem>>, vector<1x32x96xf32>
    %35 = vector.shape_cast %34 : vector<1x32x96xf32> to vector<32x96xf32>
    %cst_15 = arith.constant dense<0.000000e+00> : vector<48x96xf32>
    %36 = tpu.matmul %33, %35, %cst_15 {dimension_numbers = #tpu.dot_dimension_numbers<[1], [0], [0], [1], [0, 0, 1, 1], [], []>} : vector<48x32xf32>, vector<32x96xf32>, vector<48x96xf32> -> vector<48x96xf32>
    %c0_16 = arith.constant 0 : index
    %c0_17 = arith.constant 0 : index
    %c0_18 = arith.constant 0 : index
    %37 = vector.load %arg7[%c0_16, %c0_17, %c0_18] : memref<1x1x96xf32, #tpu.memory_space<vmem>>, vector<1x1x96xf32>
    %38 = vector.shape_cast %37 : vector<1x1x96xf32> to vector<1x96xf32>
    %39 = vector.broadcast %38 : vector<1x96xf32> to vector<48x96xf32>
    %40 = arith.addf %36, %39 : vector<48x96xf32>
    %41 = vector.shape_cast %40 : vector<48x96xf32> to vector<2x24x96xf32>
    %42 = vector.extract_strided_slice %41 {offsets = [0, 0, 0], sizes = [2, 24, 8], strides = [1, 1, 1]} : vector<2x24x96xf32> to vector<2x24x8xf32>
    %43 = vector.extract_strided_slice %41 {offsets = [0, 0, 32], sizes = [2, 24, 8], strides = [1, 1, 1]} : vector<2x24x96xf32> to vector<2x24x8xf32>
    %44 = vector.extract_strided_slice %41 {offsets = [0, 0, 64], sizes = [2, 24, 8], strides = [1, 1, 1]} : vector<2x24x96xf32> to vector<2x24x8xf32>
    "tpu.trace_start"() <{level = 10 : i32, message = "bqd,bkd->bqk"}> : () -> ()
    %cst_19 = arith.constant dense<0.000000e+00> : vector<2x24x24xf32>
    %45 = tpu.matmul %42, %43, %cst_19 {dimension_numbers = #tpu.dot_dimension_numbers<[2], [2], [1], [1], [0, 0, 0, 1, 1, 1], [0], [0]>} : vector<2x24x8xf32>, vector<2x24x8xf32>, vector<2x24x24xf32> -> vector<2x24x24xf32>
    "tpu.trace_stop"() : () -> ()
    %cst_20 = arith.constant 0.353553385 : f32
    %46 = vector.broadcast %cst_20 : f32 to vector<2x24x24xf32>
    %47 = arith.mulf %45, %46 : vector<2x24x24xf32>
    %cst_21 = arith.constant -1.000000e+30 : f32
    %48 = vector.shape_cast %7 : vector<1x24x24xi1> to vector<1x24x24xi1>
    %49 = vector.broadcast %48 : vector<1x24x24xi1> to vector<2x24x24xi1>
    %50 = vector.broadcast %cst_21 : f32 to vector<2x24x24xf32>
    %51 = arith.select %49, %47, %50 : vector<2x24x24xi1>, vector<2x24x24xf32>
    %cst_22 = arith.constant dense<0xFF800000> : vector<2x24xf32>
    %52 = vector.multi_reduction <maximumf>, %51, %cst_22 [2] : vector<2x24x24xf32> to vector<2x24xf32>
    %53 = vector.shape_cast %52 : vector<2x24xf32> to vector<2x24x1xf32>
    %54 = vector.broadcast %53 : vector<2x24x1xf32> to vector<2x24x24xf32>
    %55 = arith.subf %51, %54 : vector<2x24x24xf32>
    %56 = math.exp %55 : vector<2x24x24xf32>
    %cst_23 = arith.constant dense<0.000000e+00> : vector<2x24xf32>
    %57 = vector.multi_reduction <add>, %56, %cst_23 [2] : vector<2x24x24xf32> to vector<2x24xf32>
    %58 = vector.shape_cast %57 : vector<2x24xf32> to vector<2x24x1xf32>
    %59 = vector.broadcast %58 : vector<2x24x1xf32> to vector<2x24x24xf32>
    %60 = arith.divf %56, %59 : vector<2x24x24xf32>
    "tpu.trace_start"() <{level = 10 : i32, message = "bqk,bkd->bqd"}> : () -> ()
    %cst_24 = arith.constant dense<0.000000e+00> : vector<2x24x8xf32>
    %61 = tpu.matmul %60, %44, %cst_24 {dimension_numbers = #tpu.dot_dimension_numbers<[2], [1], [1], [2], [0, 0, 0, 1, 1, 2], [0], [0]>} : vector<2x24x24xf32>, vector<2x24x8xf32>, vector<2x24x8xf32> -> vector<2x24x8xf32>
    "tpu.trace_stop"() : () -> ()
    %62 = vector.extract_strided_slice %41 {offsets = [0, 0, 8], sizes = [2, 24, 8], strides = [1, 1, 1]} : vector<2x24x96xf32> to vector<2x24x8xf32>
    %63 = vector.extract_strided_slice %41 {offsets = [0, 0, 40], sizes = [2, 24, 8], strides = [1, 1, 1]} : vector<2x24x96xf32> to vector<2x24x8xf32>
    %64 = vector.extract_strided_slice %41 {offsets = [0, 0, 72], sizes = [2, 24, 8], strides = [1, 1, 1]} : vector<2x24x96xf32> to vector<2x24x8xf32>
    "tpu.trace_start"() <{level = 10 : i32, message = "bqd,bkd->bqk"}> : () -> ()
    %cst_25 = arith.constant dense<0.000000e+00> : vector<2x24x24xf32>
    %65 = tpu.matmul %62, %63, %cst_25 {dimension_numbers = #tpu.dot_dimension_numbers<[2], [2], [1], [1], [0, 0, 0, 1, 1, 1], [0], [0]>} : vector<2x24x8xf32>, vector<2x24x8xf32>, vector<2x24x24xf32> -> vector<2x24x24xf32>
    "tpu.trace_stop"() : () -> ()
    %cst_26 = arith.constant 0.353553385 : f32
    %66 = vector.broadcast %cst_26 : f32 to vector<2x24x24xf32>
    %67 = arith.mulf %65, %66 : vector<2x24x24xf32>
    %cst_27 = arith.constant -1.000000e+30 : f32
    %68 = vector.shape_cast %7 : vector<1x24x24xi1> to vector<1x24x24xi1>
    %69 = vector.broadcast %68 : vector<1x24x24xi1> to vector<2x24x24xi1>
    %70 = vector.broadcast %cst_27 : f32 to vector<2x24x24xf32>
    %71 = arith.select %69, %67, %70 : vector<2x24x24xi1>, vector<2x24x24xf32>
    %cst_28 = arith.constant dense<0xFF800000> : vector<2x24xf32>
    %72 = vector.multi_reduction <maximumf>, %71, %cst_28 [2] : vector<2x24x24xf32> to vector<2x24xf32>
    %73 = vector.shape_cast %72 : vector<2x24xf32> to vector<2x24x1xf32>
    %74 = vector.broadcast %73 : vector<2x24x1xf32> to vector<2x24x24xf32>
    %75 = arith.subf %71, %74 : vector<2x24x24xf32>
    %76 = math.exp %75 : vector<2x24x24xf32>
    %cst_29 = arith.constant dense<0.000000e+00> : vector<2x24xf32>
    %77 = vector.multi_reduction <add>, %76, %cst_29 [2] : vector<2x24x24xf32> to vector<2x24xf32>
    %78 = vector.shape_cast %77 : vector<2x24xf32> to vector<2x24x1xf32>
    %79 = vector.broadcast %78 : vector<2x24x1xf32> to vector<2x24x24xf32>
    %80 = arith.divf %76, %79 : vector<2x24x24xf32>
    "tpu.trace_start"() <{level = 10 : i32, message = "bqk,bkd->bqd"}> : () -> ()
    %cst_30 = arith.constant dense<0.000000e+00> : vector<2x24x8xf32>
    %81 = tpu.matmul %80, %64, %cst_30 {dimension_numbers = #tpu.dot_dimension_numbers<[2], [1], [1], [2], [0, 0, 0, 1, 1, 2], [0], [0]>} : vector<2x24x24xf32>, vector<2x24x8xf32>, vector<2x24x8xf32> -> vector<2x24x8xf32>
    "tpu.trace_stop"() : () -> ()
    %82 = vector.extract_strided_slice %41 {offsets = [0, 0, 16], sizes = [2, 24, 8], strides = [1, 1, 1]} : vector<2x24x96xf32> to vector<2x24x8xf32>
    %83 = vector.extract_strided_slice %41 {offsets = [0, 0, 48], sizes = [2, 24, 8], strides = [1, 1, 1]} : vector<2x24x96xf32> to vector<2x24x8xf32>
    %84 = vector.extract_strided_slice %41 {offsets = [0, 0, 80], sizes = [2, 24, 8], strides = [1, 1, 1]} : vector<2x24x96xf32> to vector<2x24x8xf32>
    "tpu.trace_start"() <{level = 10 : i32, message = "bqd,bkd->bqk"}> : () -> ()
    %cst_31 = arith.constant dense<0.000000e+00> : vector<2x24x24xf32>
    %85 = tpu.matmul %82, %83, %cst_31 {dimension_numbers = #tpu.dot_dimension_numbers<[2], [2], [1], [1], [0, 0, 0, 1, 1, 1], [0], [0]>} : vector<2x24x8xf32>, vector<2x24x8xf32>, vector<2x24x24xf32> -> vector<2x24x24xf32>
    "tpu.trace_stop"() : () -> ()
    %cst_32 = arith.constant 0.353553385 : f32
    %86 = vector.broadcast %cst_32 : f32 to vector<2x24x24xf32>
    %87 = arith.mulf %85, %86 : vector<2x24x24xf32>
    %cst_33 = arith.constant -1.000000e+30 : f32
    %88 = vector.shape_cast %7 : vector<1x24x24xi1> to vector<1x24x24xi1>
    %89 = vector.broadcast %88 : vector<1x24x24xi1> to vector<2x24x24xi1>
    %90 = vector.broadcast %cst_33 : f32 to vector<2x24x24xf32>
    %91 = arith.select %89, %87, %90 : vector<2x24x24xi1>, vector<2x24x24xf32>
    %cst_34 = arith.constant dense<0xFF800000> : vector<2x24xf32>
    %92 = vector.multi_reduction <maximumf>, %91, %cst_34 [2] : vector<2x24x24xf32> to vector<2x24xf32>
    %93 = vector.shape_cast %92 : vector<2x24xf32> to vector<2x24x1xf32>
    %94 = vector.broadcast %93 : vector<2x24x1xf32> to vector<2x24x24xf32>
    %95 = arith.subf %91, %94 : vector<2x24x24xf32>
    %96 = math.exp %95 : vector<2x24x24xf32>
    %cst_35 = arith.constant dense<0.000000e+00> : vector<2x24xf32>
    %97 = vector.multi_reduction <add>, %96, %cst_35 [2] : vector<2x24x24xf32> to vector<2x24xf32>
    %98 = vector.shape_cast %97 : vector<2x24xf32> to vector<2x24x1xf32>
    %99 = vector.broadcast %98 : vector<2x24x1xf32> to vector<2x24x24xf32>
    %100 = arith.divf %96, %99 : vector<2x24x24xf32>
    "tpu.trace_start"() <{level = 10 : i32, message = "bqk,bkd->bqd"}> : () -> ()
    %cst_36 = arith.constant dense<0.000000e+00> : vector<2x24x8xf32>
    %101 = tpu.matmul %100, %84, %cst_36 {dimension_numbers = #tpu.dot_dimension_numbers<[2], [1], [1], [2], [0, 0, 0, 1, 1, 2], [0], [0]>} : vector<2x24x24xf32>, vector<2x24x8xf32>, vector<2x24x8xf32> -> vector<2x24x8xf32>
    "tpu.trace_stop"() : () -> ()
    %102 = vector.extract_strided_slice %41 {offsets = [0, 0, 24], sizes = [2, 24, 8], strides = [1, 1, 1]} : vector<2x24x96xf32> to vector<2x24x8xf32>
    %103 = vector.extract_strided_slice %41 {offsets = [0, 0, 56], sizes = [2, 24, 8], strides = [1, 1, 1]} : vector<2x24x96xf32> to vector<2x24x8xf32>
    %104 = vector.extract_strided_slice %41 {offsets = [0, 0, 88], sizes = [2, 24, 8], strides = [1, 1, 1]} : vector<2x24x96xf32> to vector<2x24x8xf32>
    "tpu.trace_start"() <{level = 10 : i32, message = "bqd,bkd->bqk"}> : () -> ()
    %cst_37 = arith.constant dense<0.000000e+00> : vector<2x24x24xf32>
    %105 = tpu.matmul %102, %103, %cst_37 {dimension_numbers = #tpu.dot_dimension_numbers<[2], [2], [1], [1], [0, 0, 0, 1, 1, 1], [0], [0]>} : vector<2x24x8xf32>, vector<2x24x8xf32>, vector<2x24x24xf32> -> vector<2x24x24xf32>
    "tpu.trace_stop"() : () -> ()
    %cst_38 = arith.constant 0.353553385 : f32
    %106 = vector.broadcast %cst_38 : f32 to vector<2x24x24xf32>
    %107 = arith.mulf %105, %106 : vector<2x24x24xf32>
    %cst_39 = arith.constant -1.000000e+30 : f32
    %108 = vector.shape_cast %7 : vector<1x24x24xi1> to vector<1x24x24xi1>
    %109 = vector.broadcast %108 : vector<1x24x24xi1> to vector<2x24x24xi1>
    %110 = vector.broadcast %cst_39 : f32 to vector<2x24x24xf32>
    %111 = arith.select %109, %107, %110 : vector<2x24x24xi1>, vector<2x24x24xf32>
    %cst_40 = arith.constant dense<0xFF800000> : vector<2x24xf32>
    %112 = vector.multi_reduction <maximumf>, %111, %cst_40 [2] : vector<2x24x24xf32> to vector<2x24xf32>
    %113 = vector.shape_cast %112 : vector<2x24xf32> to vector<2x24x1xf32>
    %114 = vector.broadcast %113 : vector<2x24x1xf32> to vector<2x24x24xf32>
    %115 = arith.subf %111, %114 : vector<2x24x24xf32>
    %116 = math.exp %115 : vector<2x24x24xf32>
    %cst_41 = arith.constant dense<0.000000e+00> : vector<2x24xf32>
    %117 = vector.multi_reduction <add>, %116, %cst_41 [2] : vector<2x24x24xf32> to vector<2x24xf32>
    %118 = vector.shape_cast %117 : vector<2x24xf32> to vector<2x24x1xf32>
    %119 = vector.broadcast %118 : vector<2x24x1xf32> to vector<2x24x24xf32>
    %120 = arith.divf %116, %119 : vector<2x24x24xf32>
    "tpu.trace_start"() <{level = 10 : i32, message = "bqk,bkd->bqd"}> : () -> ()
    %cst_42 = arith.constant dense<0.000000e+00> : vector<2x24x8xf32>
    %121 = tpu.matmul %120, %104, %cst_42 {dimension_numbers = #tpu.dot_dimension_numbers<[2], [1], [1], [2], [0, 0, 0, 1, 1, 2], [0], [0]>} : vector<2x24x24xf32>, vector<2x24x8xf32>, vector<2x24x8xf32> -> vector<2x24x8xf32>
    "tpu.trace_stop"() : () -> ()
    %122 = tpu.concatenate %61, %81, %101, %121 in 2 : vector<2x24x8xf32>, vector<2x24x8xf32>, vector<2x24x8xf32>, vector<2x24x8xf32> -> vector<2x24x32xf32>
    %123 = vector.shape_cast %122 : vector<2x24x32xf32> to vector<48x32xf32>
    %c0_43 = arith.constant 0 : index
    %c0_44 = arith.constant 0 : index
    %c0_45 = arith.constant 0 : index
    %124 = vector.load %arg8[%c0_43, %c0_44, %c0_45] : memref<1x32x32xf32, #tpu.memory_space<vmem>>, vector<1x32x32xf32>
    %125 = vector.shape_cast %124 : vector<1x32x32xf32> to vector<32x32xf32>
    %cst_46 = arith.constant dense<0.000000e+00> : vector<48x32xf32>
    %126 = tpu.matmul %123, %125, %cst_46 {dimension_numbers = #tpu.dot_dimension_numbers<[1], [0], [0], [1], [0, 0, 1, 1], [], []>} : vector<48x32xf32>, vector<32x32xf32>, vector<48x32xf32> -> vector<48x32xf32>
    %c0_47 = arith.constant 0 : index
    %c0_48 = arith.constant 0 : index
    %c0_49 = arith.constant 0 : index
    %127 = vector.load %arg9[%c0_47, %c0_48, %c0_49] : memref<1x1x32xf32, #tpu.memory_space<vmem>>, vector<1x1x32xf32>
    %128 = vector.shape_cast %127 : vector<1x1x32xf32> to vector<1x32xf32>
    %129 = vector.broadcast %128 : vector<1x32xf32> to vector<48x32xf32>
    %130 = arith.addf %126, %129 : vector<48x32xf32>
    %c0_50 = arith.constant 0 : index
    %c0_51 = arith.constant 0 : index
    %c0_52 = arith.constant 0 : index
    %131 = vector.load %arg10[%c0_50, %c0_51, %c0_52] : memref<1x1x32xf32, #tpu.memory_space<vmem>>, vector<1x1x32xf32>
    %132 = vector.shape_cast %131 : vector<1x1x32xf32> to vector<1x32xf32>
    %133 = vector.broadcast %132 : vector<1x32xf32> to vector<48x32xf32>
    %134 = arith.mulf %133, %130 : vector<48x32xf32>
    %135 = arith.addf %3, %134 : vector<48x32xf32>
    %c0_53 = arith.constant 0 : index
    %c0_54 = arith.constant 0 : index
    %c0_55 = arith.constant 0 : index
    %136 = vector.load %arg11[%c0_53, %c0_54, %c0_55] : memref<1x1x32xf32, #tpu.memory_space<vmem>>, vector<1x1x32xf32>
    %137 = vector.shape_cast %136 : vector<1x1x32xf32> to vector<1x32xf32>
    %c0_56 = arith.constant 0 : index
    %c0_57 = arith.constant 0 : index
    %c0_58 = arith.constant 0 : index
    %138 = vector.load %arg12[%c0_56, %c0_57, %c0_58] : memref<1x1x32xf32, #tpu.memory_space<vmem>>, vector<1x1x32xf32>
    %139 = vector.shape_cast %138 : vector<1x1x32xf32> to vector<1x32xf32>
    %cst_59 = arith.constant dense<0.000000e+00> : vector<48xf32>
    %140 = vector.multi_reduction <add>, %135, %cst_59 [1] : vector<48x32xf32> to vector<48xf32>
    %141 = vector.shape_cast %140 : vector<48xf32> to vector<48x1xf32>
    %cst_60 = arith.constant 3.200000e+01 : f32
    %142 = vector.broadcast %cst_60 : f32 to vector<48x1xf32>
    %143 = arith.divf %141, %142 : vector<48x1xf32>
    %144 = vector.broadcast %143 : vector<48x1xf32> to vector<48x32xf32>
    %145 = arith.subf %135, %144 : vector<48x32xf32>
    %146 = arith.mulf %145, %145 : vector<48x32xf32>
    %cst_61 = arith.constant dense<0.000000e+00> : vector<48xf32>
    %147 = vector.multi_reduction <add>, %146, %cst_61 [1] : vector<48x32xf32> to vector<48xf32>
    %148 = vector.shape_cast %147 : vector<48xf32> to vector<48x1xf32>
    %cst_62 = arith.constant 3.200000e+01 : f32
    %149 = vector.broadcast %cst_62 : f32 to vector<48x1xf32>
    %150 = arith.divf %148, %149 : vector<48x1xf32>
    %151 = vector.broadcast %143 : vector<48x1xf32> to vector<48x32xf32>
    %152 = arith.subf %135, %151 : vector<48x32xf32>
    %cst_63 = arith.constant 9.99999997E-7 : f32
    %153 = vector.broadcast %cst_63 : f32 to vector<48x1xf32>
    %154 = arith.addf %150, %153 : vector<48x1xf32>
    %155 = math.rsqrt %154 : vector<48x1xf32>
    %156 = vector.broadcast %155 : vector<48x1xf32> to vector<48x32xf32>
    %157 = arith.mulf %152, %156 : vector<48x32xf32>
    %158 = vector.broadcast %137 : vector<1x32xf32> to vector<48x32xf32>
    %159 = arith.mulf %157, %158 : vector<48x32xf32>
    %160 = vector.broadcast %139 : vector<1x32xf32> to vector<48x32xf32>
    %161 = arith.addf %159, %160 : vector<48x32xf32>
    %c0_64 = arith.constant 0 : index
    %c0_65 = arith.constant 0 : index
    %c0_66 = arith.constant 0 : index
    %162 = vector.load %arg13[%c0_64, %c0_65, %c0_66] : memref<1x32x128xf32, #tpu.memory_space<vmem>>, vector<1x32x128xf32>
    %163 = vector.shape_cast %162 : vector<1x32x128xf32> to vector<32x128xf32>
    %cst_67 = arith.constant dense<0.000000e+00> : vector<48x128xf32>
    %164 = tpu.matmul %161, %163, %cst_67 {dimension_numbers = #tpu.dot_dimension_numbers<[1], [0], [0], [1], [0, 0, 1, 1], [], []>} : vector<48x32xf32>, vector<32x128xf32>, vector<48x128xf32> -> vector<48x128xf32>
    %c0_68 = arith.constant 0 : index
    %c0_69 = arith.constant 0 : index
    %c0_70 = arith.constant 0 : index
    %165 = vector.load %arg14[%c0_68, %c0_69, %c0_70] : memref<1x1x128xf32, #tpu.memory_space<vmem>>, vector<1x1x128xf32>
    %166 = vector.shape_cast %165 : vector<1x1x128xf32> to vector<1x128xf32>
    %167 = vector.broadcast %166 : vector<1x128xf32> to vector<48x128xf32>
    %168 = arith.addf %164, %167 : vector<48x128xf32>
    %cst_71 = arith.constant 5.000000e-01 : f32
    %169 = vector.broadcast %cst_71 : f32 to vector<48x128xf32>
    %170 = arith.mulf %169, %168 : vector<48x128xf32>
    %cst_72 = arith.constant 0.707106769 : f32
    %171 = vector.broadcast %cst_72 : f32 to vector<48x128xf32>
    %172 = arith.mulf %168, %171 : vector<48x128xf32>
    %173 = math.erf %172 : vector<48x128xf32>
    %cst_73 = arith.constant 1.000000e+00 : f32
    %174 = vector.broadcast %cst_73 : f32 to vector<48x128xf32>
    %175 = arith.addf %174, %173 : vector<48x128xf32>
    %176 = arith.mulf %170, %175 : vector<48x128xf32>
    %c0_74 = arith.constant 0 : index
    %c0_75 = arith.constant 0 : index
    %c0_76 = arith.constant 0 : index
    %177 = vector.load %arg15[%c0_74, %c0_75, %c0_76] : memref<1x128x32xf32, #tpu.memory_space<vmem>>, vector<1x128x32xf32>
    %178 = vector.shape_cast %177 : vector<1x128x32xf32> to vector<128x32xf32>
    %cst_77 = arith.constant dense<0.000000e+00> : vector<48x32xf32>
    %179 = tpu.matmul %176, %178, %cst_77 {dimension_numbers = #tpu.dot_dimension_numbers<[1], [0], [0], [1], [0, 0, 1, 1], [], []>} : vector<48x128xf32>, vector<128x32xf32>, vector<48x32xf32> -> vector<48x32xf32>
    %c0_78 = arith.constant 0 : index
    %c0_79 = arith.constant 0 : index
    %c0_80 = arith.constant 0 : index
    %180 = vector.load %arg16[%c0_78, %c0_79, %c0_80] : memref<1x1x32xf32, #tpu.memory_space<vmem>>, vector<1x1x32xf32>
    %181 = vector.shape_cast %180 : vector<1x1x32xf32> to vector<1x32xf32>
    %182 = vector.broadcast %181 : vector<1x32xf32> to vector<48x32xf32>
    %183 = arith.addf %179, %182 : vector<48x32xf32>
    %c0_81 = arith.constant 0 : index
    %c0_82 = arith.constant 0 : index
    %c0_83 = arith.constant 0 : index
    %184 = vector.load %arg17[%c0_81, %c0_82, %c0_83] : memref<1x1x32xf32, #tpu.memory_space<vmem>>, vector<1x1x32xf32>
    %185 = vector.shape_cast %184 : vector<1x1x32xf32> to vector<1x32xf32>
    %186 = vector.broadcast %185 : vector<1x32xf32> to vector<48x32xf32>
    %187 = arith.mulf %186, %183 : vector<48x32xf32>
    %188 = arith.addf %135, %187 : vector<48x32xf32>
    %c0_84 = arith.constant 0 : index
    %c0_85 = arith.constant 0 : index
    %189 = vector.load %arg23[%c0_84, %c0_85] : memref<48x32xf32, #tpu.memory_space<vmem>>, vector<48x32xf32>
    tpu.vector_store %arg23[%c0_84, %c0_85], %188 {strides = array<i32>} : memref<48x32xf32, #tpu.memory_space<vmem>>, vector<48x32xf32>,
    %c1_i32 = arith.constant 1 : i32
    %190 = arith.cmpi eq, %arg0, %c1_i32 : i32
    %191 = arith.extui %190 : i1 to i32
    %c0_i32_86 = arith.constant 0 : i32
    %192 = arith.cmpi ne, %191, %c0_i32_86 : i32
    scf.if %192 {
      %193 = vector.extract_strided_slice %188 {offsets = [0, 0], sizes = [1, 32], strides = [1, 1]} : vector<48x32xf32> to vector<1x32xf32>
      %194 = vector.extract_strided_slice %188 {offsets = [24, 0], sizes = [1, 32], strides = [1, 1]} : vector<48x32xf32> to vector<1x32xf32>
      %195 = tpu.concatenate %193, %194 in 0 : vector<1x32xf32>, vector<1x32xf32> -> vector<2x32xf32>
      %c0_87 = arith.constant 0 : index
      %c0_88 = arith.constant 0 : index
      %196 = vector.load %arg18[%c0_87, %c0_88] : memref<1x32xf32, #tpu.memory_space<vmem>>, vector<1x32xf32>
      %c0_89 = arith.constant 0 : index
      %c0_90 = arith.constant 0 : index
      %197 = vector.load %arg19[%c0_89, %c0_90] : memref<1x32xf32, #tpu.memory_space<vmem>>, vector<1x32xf32>
      %cst_91 = arith.constant dense<0.000000e+00> : vector<2xf32>
      %198 = vector.multi_reduction <add>, %195, %cst_91 [1] : vector<2x32xf32> to vector<2xf32>
      %199 = vector.shape_cast %198 : vector<2xf32> to vector<2x1xf32>
      %cst_92 = arith.constant 3.200000e+01 : f32
      %200 = vector.broadcast %cst_92 : f32 to vector<2x1xf32>
      %201 = arith.divf %199, %200 : vector<2x1xf32>
      %202 = vector.broadcast %201 : vector<2x1xf32> to vector<2x32xf32>
      %203 = arith.subf %195, %202 : vector<2x32xf32>
      %204 = arith.mulf %203, %203 : vector<2x32xf32>
      %cst_93 = arith.constant dense<0.000000e+00> : vector<2xf32>
      %205 = vector.multi_reduction <add>, %204, %cst_93 [1] : vector<2x32xf32> to vector<2xf32>
      %206 = vector.shape_cast %205 : vector<2xf32> to vector<2x1xf32>
      %cst_94 = arith.constant 3.200000e+01 : f32
      %207 = vector.broadcast %cst_94 : f32 to vector<2x1xf32>
      %208 = arith.divf %206, %207 : vector<2x1xf32>
      %209 = vector.broadcast %201 : vector<2x1xf32> to vector<2x32xf32>
      %210 = arith.subf %195, %209 : vector<2x32xf32>
      %cst_95 = arith.constant 9.99999997E-7 : f32
      %211 = vector.broadcast %cst_95 : f32 to vector<2x1xf32>
      %212 = arith.addf %208, %211 : vector<2x1xf32>
      %213 = math.rsqrt %212 : vector<2x1xf32>
      %214 = vector.broadcast %213 : vector<2x1xf32> to vector<2x32xf32>
      %215 = arith.mulf %210, %214 : vector<2x32xf32>
      %216 = vector.broadcast %196 : vector<1x32xf32> to vector<2x32xf32>
      %217 = arith.mulf %215, %216 : vector<2x32xf32>
      %218 = vector.broadcast %197 : vector<1x32xf32> to vector<2x32xf32>
      %219 = arith.addf %217, %218 : vector<2x32xf32>
      %c0_96 = arith.constant 0 : index
      %c0_97 = arith.constant 0 : index
      %220 = vector.load %arg20[%c0_96, %c0_97] : memref<32x10xf32, #tpu.memory_space<vmem>>, vector<32x10xf32>
      %cst_98 = arith.constant dense<0.000000e+00> : vector<2x10xf32>
      %221 = tpu.matmul %219, %220, %cst_98 {dimension_numbers = #tpu.dot_dimension_numbers<[1], [0], [0], [1], [0, 0, 1, 1], [], []>} : vector<2x32xf32>, vector<32x10xf32>, vector<2x10xf32> -> vector<2x10xf32>
      %c0_99 = arith.constant 0 : index
      %c0_100 = arith.constant 0 : index
      %222 = vector.load %arg21[%c0_99, %c0_100] : memref<1x10xf32, #tpu.memory_space<vmem>>, vector<1x10xf32>
      %223 = vector.broadcast %222 : vector<1x10xf32> to vector<2x10xf32>
      %224 = arith.addf %221, %223 : vector<2x10xf32>
      %c0_101 = arith.constant 0 : index
      %c0_102 = arith.constant 0 : index
      %225 = vector.load %arg22[%c0_101, %c0_102] : memref<2x10xf32, #tpu.memory_space<vmem>>, vector<2x10xf32>
      tpu.vector_store %arg22[%c0_101, %c0_102], %224 {strides = array<i32>} : memref<2x10xf32, #tpu.memory_space<vmem>>, vector<2x10xf32>,
    } else {
    }
    return
  }
  func.func @transform_0(%arg0: i32) -> (i32, i32) {
    %c0_i32 = arith.constant 0 : i32
    %c0_i32_0 = arith.constant 0 : i32
    %c0_i32_1 = arith.constant 0 : i32
    return %c0_i32, %c0_i32_0 : i32, i32
  }
  func.func @transform_1(%arg0: i32) -> (i32, i32) {
    %c0_i32 = arith.constant 0 : i32
    %c0_i32_0 = arith.constant 0 : i32
    %c0_i32_1 = arith.constant 0 : i32
    return %c0_i32, %c0_i32_0 : i32, i32
  }
  func.func @transform_2(%arg0: i32) -> (i32, i32) {
    %c0_i32 = arith.constant 0 : i32
    %c0_i32_0 = arith.constant 0 : i32
    %c0_i32_1 = arith.constant 0 : i32
    return %c0_i32, %c0_i32_0 : i32, i32
  }
  func.func @transform_3(%arg0: i32) -> (i32, i32, i32) {
    %c0_i32 = arith.constant 0 : i32
    %c0_i32_0 = arith.constant 0 : i32
    %c0_i32_1 = arith.constant 0 : i32
    return %arg0, %c0_i32, %c0_i32_0 : i32, i32, i32
  }
  func.func @transform_4(%arg0: i32) -> (i32, i32, i32) {
    %c0_i32 = arith.constant 0 : i32
    %c0_i32_0 = arith.constant 0 : i32
    %c0_i32_1 = arith.constant 0 : i32
    return %arg0, %c0_i32, %c0_i32_0 : i32, i32, i32
  }
  func.func @transform_5(%arg0: i32) -> (i32, i32, i32) {
    %c0_i32 = arith.constant 0 : i32
    %c0_i32_0 = arith.constant 0 : i32
    %c0_i32_1 = arith.constant 0 : i32
    return %arg0, %c0_i32, %c0_i32_0 : i32, i32, i32
  }
  func.func @transform_6(%arg0: i32) -> (i32, i32, i32) {
    %c0_i32 = arith.constant 0 : i32
    %c0_i32_0 = arith.constant 0 : i32
    %c0_i32_1 = arith.constant 0 : i32
    return %arg0, %c0_i32, %c0_i32_0 : i32, i32, i32
  }
  func.func @transform_7(%arg0: i32) -> (i32, i32, i32) {
    %c0_i32 = arith.constant 0 : i32
    %c0_i32_0 = arith.constant 0 : i32
    %c0_i32_1 = arith.constant 0 : i32
    return %arg0, %c0_i32, %c0_i32_0 : i32, i32, i32
  }
  func.func @transform_8(%arg0: i32) -> (i32, i32, i32) {
    %c0_i32 = arith.constant 0 : i32
    %c0_i32_0 = arith.constant 0 : i32
    %c0_i32_1 = arith.constant 0 : i32
    return %arg0, %c0_i32, %c0_i32_0 : i32, i32, i32
  }
  func.func @transform_9(%arg0: i32) -> (i32, i32, i32) {
    %c0_i32 = arith.constant 0 : i32
    %c0_i32_0 = arith.constant 0 : i32
    %c0_i32_1 = arith.constant 0 : i32
    return %arg0, %c0_i32, %c0_i32_0 : i32, i32, i32
  }
  func.func @transform_10(%arg0: i32) -> (i32, i32, i32) {
    %c0_i32 = arith.constant 0 : i32
    %c0_i32_0 = arith.constant 0 : i32
    %c0_i32_1 = arith.constant 0 : i32
    return %arg0, %c0_i32, %c0_i32_0 : i32, i32, i32
  }
  func.func @transform_11(%arg0: i32) -> (i32, i32, i32) {
    %c0_i32 = arith.constant 0 : i32
    %c0_i32_0 = arith.constant 0 : i32
    %c0_i32_1 = arith.constant 0 : i32
    return %arg0, %c0_i32, %c0_i32_0 : i32, i32, i32
  }
  func.func @transform_12(%arg0: i32) -> (i32, i32, i32) {
    %c0_i32 = arith.constant 0 : i32
    %c0_i32_0 = arith.constant 0 : i32
    %c0_i32_1 = arith.constant 0 : i32
    return %arg0, %c0_i32, %c0_i32_0 : i32, i32, i32
  }
  func.func @transform_13(%arg0: i32) -> (i32, i32, i32) {
    %c0_i32 = arith.constant 0 : i32
    %c0_i32_0 = arith.constant 0 : i32
    %c0_i32_1 = arith.constant 0 : i32
    return %arg0, %c0_i32, %c0_i32_0 : i32, i32, i32
  }
  func.func @transform_14(%arg0: i32) -> (i32, i32, i32) {
    %c0_i32 = arith.constant 0 : i32
    %c0_i32_0 = arith.constant 0 : i32
    %c0_i32_1 = arith.constant 0 : i32
    return %arg0, %c0_i32, %c0_i32_0 : i32, i32, i32
  }
  func.func @transform_15(%arg0: i32) -> (i32, i32, i32) {
    %c0_i32 = arith.constant 0 : i32
    %c0_i32_0 = arith.constant 0 : i32
    %c0_i32_1 = arith.constant 0 : i32
    return %arg0, %c0_i32, %c0_i32_0 : i32, i32, i32
  }
  func.func @transform_16(%arg0: i32) -> (i32, i32, i32) {
    %c0_i32 = arith.constant 0 : i32
    %c0_i32_0 = arith.constant 0 : i32
    %c0_i32_1 = arith.constant 0 : i32
    return %arg0, %c0_i32, %c0_i32_0 : i32, i32, i32
  }
  func.func @transform_17(%arg0: i32) -> (i32, i32) {
    %c0_i32 = arith.constant 0 : i32
    %c0_i32_0 = arith.constant 0 : i32
    %c0_i32_1 = arith.constant 0 : i32
    return %c0_i32, %c0_i32_0 : i32, i32
  }
  func.func @transform_18(%arg0: i32) -> (i32, i32) {
    %c0_i32 = arith.constant 0 : i32
    %c0_i32_0 = arith.constant 0 : i32
    %c0_i32_1 = arith.constant 0 : i32
    return %c0_i32, %c0_i32_0 : i32, i32
  }
  func.func @transform_19(%arg0: i32) -> (i32, i32) {
    %c0_i32 = arith.constant 0 : i32
    %c0_i32_0 = arith.constant 0 : i32
    %c0_i32_1 = arith.constant 0 : i32
    return %c0_i32, %c0_i32_0 : i32, i32
  }
  func.func @transform_20(%arg0: i32) -> (i32, i32) {
    %c0_i32 = arith.constant 0 : i32
    %c0_i32_0 = arith.constant 0 : i32
    %c0_i32_1 = arith.constant 0 : i32
    return %c0_i32, %c0_i32_0 : i32, i32
  }
  func.func @transform_21(%arg0: i32) -> (i32, i32) {
    %c0_i32 = arith.constant 0 : i32
    %c0_i32_0 = arith.constant 0 : i32
    %c0_i32_1 = arith.constant 0 : i32
    return %c0_i32, %c0_i32_0 : i32, i32
  }
}

</mosaic_0001>

<llo_original>
// kernel: vit_forward.1
$region0: #{vit_forward.1}
  #allocation0 [shape = 'u32[]', space=smem, size = 0x4, offset = 0x4, fixed_abs, tag = 'smem constant byte address 0x4 - core index']
  #allocation1 [shape = 'u32[144,128]{1,0:T(1,128)}', space=vmem, size = 0x12000, scoped, tag = 'internal scratch']
  #allocation2 [shape = 'f32[48,32]{1,0:T(8,128)}', space=vmem, size = 0x6000, scoped, tag = 'scratch operand']
  %s0 = inlined_call_operand.vmem [shape: f32[48,48], index: 0, kind: input, shape index: {}]
  %s1 = inlined_call_operand.vmem [shape: f32[48,32], index: 1, kind: input, shape index: {}]
  %s2 = inlined_call_operand.vmem [shape: f32[48,32], index: 2, kind: input, shape index: {}]
  %s3 = inlined_call_operand.vmem [shape: f32[2,1,32], index: 3, kind: input, shape index: {}]
  %s4 = inlined_call_operand.vmem [shape: f32[2,1,32], index: 4, kind: input, shape index: {}]
  %s5 = inlined_call_operand.vmem [shape: f32[2,32,96], index: 5, kind: input, shape index: {}]
  %s6 = inlined_call_operand.vmem [shape: f32[2,1,96], index: 6, kind: input, shape index: {}]
  %s7 = inlined_call_operand.vmem [shape: f32[2,32,32], index: 7, kind: input, shape index: {}]
  %s8 = inlined_call_operand.vmem [shape: f32[2,1,32], index: 8, kind: input, shape index: {}]
  %s9 = inlined_call_operand.vmem [shape: f32[2,1,32], index: 9, kind: input, shape index: {}]
  %s10 = inlined_call_operand.vmem [shape: f32[2,1,32], index: 10, kind: input, shape index: {}]
  %s11 = inlined_call_operand.vmem [shape: f32[2,1,32], index: 11, kind: input, shape index: {}]
  %s12 = inlined_call_operand.vmem [shape: f32[2,32,128], index: 12, kind: input, shape index: {}]
  %s13 = inlined_call_operand.vmem [shape: f32[2,1,128], index: 13, kind: input, shape index: {}]
  %s14 = inlined_call_operand.vmem [shape: f32[2,128,32], index: 14, kind: input, shape index: {}]
  %s15 = inlined_call_operand.vmem [shape: f32[2,1,32], index: 15, kind: input, shape index: {}]
  %s16 = inlined_call_operand.vmem [shape: f32[2,1,32], index: 16, kind: input, shape index: {}]
  %s17 = inlined_call_operand.vmem [shape: f32[1,32], index: 17, kind: input, shape index: {}]
  %s18 = inlined_call_operand.vmem [shape: f32[1,32], index: 18, kind: input, shape index: {}]
  %s19 = inlined_call_operand.vmem [shape: f32[32,10], index: 19, kind: input, shape index: {}]
  %s20 = inlined_call_operand.vmem [shape: f32[1,10], index: 20, kind: input, shape index: {}]
  %s21 = inlined_call_operand.hbm [shape: f32[2,10], index: 21, kind: output, shape index: {}]
  %s22 = sld [smem:[#allocation0]]
  $region125: #{vit_forward.1} parent=0
    _
  %s24 = ssub.s32 1, %s22
  %s25 = scalar_select 0, %s24, %s22
  $region1: #{vit_forward.1} parent=0
    #allocation3 [shape = 'u8[1024]{0}', space=vmem, size = 0x400, scoped, tag = 'output window, operand 0, single buffered']
    #allocation4 [shape = 's32[2]{0}', space=sflag, size = 0x8, scoped, tag = 'scoped memory for vit_forward.1']
    %26 = vsyncpa [#allocation4], 0
    loop: start=0, step=1, limit=4
    $region2: #{vit_forward.1} parent=1 // loop_pre_header
      _
    $region3: #{vit_forward.1} parent=1 // loop_header
      %s28 = sphi 0, %s32
      %p29 = scmp.ge.s32.totalorder %s28, 4
      %s36 = sphi 0, %s36
      %s38 = sphi 0, %s36
      %s39 = sphi 0, %s38
      %s53 = sphi 0, %s39
      %s57 = sphi 0, %s57
      %s59 = sphi 0, %s57
      %s60 = sphi 0, %s59
      %s74 = sphi 0, %s60
      %s78 = sphi 0, %s78
      %s80 = sphi 0, %s78
      %s81 = sphi 0, %s80
      %s95 = sphi 0, %s81
      %s101 = sphi 0, %s103
      %s104 = sphi 0, %s101
      %s105 = sphi 0, %s104
      %s121 = sphi 0, %s105
      %s127 = sphi 0, %s129
      %s130 = sphi 0, %s127
      %s131 = sphi 0, %s130
      %s147 = sphi 0, %s131
      %s153 = sphi 0, %s155
      %s156 = sphi 0, %s153
      %s157 = sphi 0, %s156
      %s173 = sphi 0, %s157
      %s179 = sphi 0, %s181
      %s182 = sphi 0, %s179
      %s183 = sphi 0, %s182
      %s199 = sphi 0, %s183
      %s205 = sphi 0, %s207
      %s208 = sphi 0, %s205
      %s209 = sphi 0, %s208
      %s225 = sphi 0, %s209
      %s231 = sphi 0, %s233
      %s234 = sphi 0, %s231
      %s235 = sphi 0, %s234
      %s251 = sphi 0, %s235
      %s257 = sphi 0, %s259
      %s260 = sphi 0, %s257
      %s261 = sphi 0, %s260
      %s277 = sphi 0, %s261
      %s283 = sphi 0, %s285
      %s286 = sphi 0, %s283
      %s287 = sphi 0, %s286
      %s303 = sphi 0, %s287
      %s309 = sphi 0, %s311
      %s312 = sphi 0, %s309
      %s313 = sphi 0, %s312
      %s329 = sphi 0, %s313
      %s335 = sphi 0, %s337
      %s338 = sphi 0, %s335
      %s339 = sphi 0, %s338
      %s355 = sphi 0, %s339
      %s361 = sphi 0, %s363
      %s364 = sphi 0, %s361
      %s365 = sphi 0, %s364
      %s381 = sphi 0, %s365
      %s387 = sphi 0, %s389
      %s390 = sphi 0, %s387
      %s391 = sphi 0, %s390
      %s407 = sphi 0, %s391
      %s413 = sphi 0, %s415
      %s416 = sphi 0, %s413
      %s417 = sphi 0, %s416
      %s433 = sphi 0, %s417
      %s439 = sphi 0, %s441
      %s442 = sphi 0, %s439
      %s443 = sphi 0, %s442
      %s459 = sphi 0, %s443
      %s463 = sphi 0, %s463
      %s465 = sphi 0, %s463
      %s466 = sphi 0, %s465
      %s480 = sphi 0, %s466
      %s484 = sphi 0, %s484
      %s486 = sphi 0, %s484
      %s487 = sphi 0, %s486
      %s501 = sphi 0, %s487
      %s505 = sphi 0, %s505
      %s507 = sphi 0, %s505
      %s508 = sphi 0, %s507
      %s522 = sphi 0, %s508
      %s526 = sphi 0, %s526
      %s528 = sphi 0, %s526
      %s529 = sphi 0, %s528
      %s543 = sphi 0, %s529
      %s547 = sphi 0, %s547
      %s549 = sphi 0, %s547
      %s550 = sphi 0, %s549
      %s564 = sphi 0, %s550
    $region4: #{vit_forward.1} parent=1 // loop_header_branch
      %31 = sbr.rel (%p29) target = $region8
    $region5: #{vit_forward.1} parent=1 // loop_body
      %s33 = ssub.s32 %s28, 1
      %s34 = ssub.s32 %s28, 2
      %s35 = sadd.s32 %s28, 1
      %s37 = sadd.s32 %s36, 1
      %p40 = scmp.eq.s32.totalorder %s28, 1
      %p41 = scmp.ne.s32.totalorder %s36, %s38
      %p42 = scmp.eq.s32.totalorder %s28, 0
      %p43 = por %p41, %p42
      %p44 = scmp.ne.s32.totalorder %s36, %s38
      %p45 = scmp.eq.s32.totalorder %s33, 1
      %p46 = por %p44, %p45
      %p47 = scmp.ne.s32.totalorder %s38, %s39
      %p48 = scmp.eq.s32.totalorder %s33, 0
      %p49 = por %p47, %p48
      %p50 = scmp.ne.s32.totalorder %s38, %s39
      %p51 = scmp.eq.s32.totalorder %s34, 1
      %p52 = por %p50, %p51
      %p54 = scmp.ne.s32.totalorder %s39, %s53
      %p55 = scmp.eq.s32.totalorder %s34, 0
      %p56 = por %p54, %p55
      %s58 = sadd.s32 %s57, 1
      %p61 = scmp.eq.s32.totalorder %s28, 1
      %p62 = scmp.ne.s32.totalorder %s57, %s59
      %p63 = scmp.eq.s32.totalorder %s28, 0
      %p64 = por %p62, %p63
      %p65 = scmp.ne.s32.totalorder %s57, %s59
      %p66 = scmp.eq.s32.totalorder %s33, 1
      %p67 = por %p65, %p66
      %p68 = scmp.ne.s32.totalorder %s59, %s60
      %p69 = scmp.eq.s32.totalorder %s33, 0
      %p70 = por %p68, %p69
      %p71 = scmp.ne.s32.totalorder %s59, %s60
      %p72 = scmp.eq.s32.totalorder %s34, 1
      %p73 = por %p71, %p72
      %p75 = scmp.ne.s32.totalorder %s60, %s74
      %p76 = scmp.eq.s32.totalorder %s34, 0
      %p77 = por %p75, %p76
      %s79 = sadd.s32 %s78, 1
      %p82 = scmp.eq.s32.totalorder %s28, 1
      %p83 = scmp.ne.s32.totalorder %s78, %s80
      %p84 = scmp.eq.s32.totalorder %s28, 0
      %p85 = por %p83, %p84
      %p86 = scmp.ne.s32.totalorder %s78, %s80
      %p87 = scmp.eq.s32.totalorder %s33, 1
      %p88 = por %p86, %p87
      %p89 = scmp.ne.s32.totalorder %s80, %s81
      %p90 = scmp.eq.s32.totalorder %s33, 0
      %p91 = por %p89, %p90
      %p92 = scmp.ne.s32.totalorder %s80, %s81
      %p93 = scmp.eq.s32.totalorder %s34, 1
      %p94 = por %p92, %p93
      %p96 = scmp.ne.s32.totalorder %s81, %s95
      %p97 = scmp.eq.s32.totalorder %s34, 0
      %p98 = por %p96, %p97
      %s99 = ssub.s32 %s28, %s35
      %p100 = scmp.eq.s32.totalorder %s99, 0
      %s102 = sadd.s32 %s101, 1
      %s103 = scalar_select %p100, %s101, %s102
      %p106 = pneg %p100
      %p107 = scmp.eq.s32.totalorder %s28, 1
      %p108 = por %p106, %p107
      %p109 = scmp.ne.s32.totalorder %s101, %s104
      %p110 = scmp.eq.s32.totalorder %s28, 0
      %p111 = por %p109, %p110
      %p112 = scmp.ne.s32.totalorder %s101, %s104
      %p113 = scmp.eq.s32.totalorder %s33, 1
      %p114 = por %p112, %p113
      %p115 = scmp.ne.s32.totalorder %s104, %s105
      %p116 = scmp.eq.s32.totalorder %s33, 0
      %p117 = por %p115, %p116
      %p118 = scmp.ne.s32.totalorder %s104, %s105
      %p119 = scmp.eq.s32.totalorder %s34, 1
      %p120 = por %p118, %p119
      %p122 = scmp.ne.s32.totalorder %s105, %s121
      %p123 = scmp.eq.s32.totalorder %s34, 0
      %p124 = por %p122, %p123
      %s125 = ssub.s32 %s28, %s35
      %p126 = scmp.eq.s32.totalorder %s125, 0
      %s128 = sadd.s32 %s127, 1
      %s129 = scalar_select %p126, %s127, %s128
      %p132 = pneg %p126
      %p133 = scmp.eq.s32.totalorder %s28, 1
      %p134 = por %p132, %p133
      %p135 = scmp.ne.s32.totalorder %s127, %s130
      %p136 = scmp.eq.s32.totalorder %s28, 0
      %p137 = por %p135, %p136
      %p138 = scmp.ne.s32.totalorder %s127, %s130
      %p139 = scmp.eq.s32.totalorder %s33, 1
      %p140 = por %p138, %p139
      %p141 = scmp.ne.s32.totalorder %s130, %s131
      %p142 = scmp.eq.s32.totalorder %s33, 0
      %p143 = por %p141, %p142
      %p144 = scmp.ne.s32.totalorder %s130, %s131
      %p145 = scmp.eq.s32.totalorder %s34, 1
      %p146 = por %p144, %p145
      %p148 = scmp.ne.s32.totalorder %s131, %s147
      %p149 = scmp.eq.s32.totalorder %s34, 0
      %p150 = por %p148, %p149
      %s151 = ssub.s32 %s28, %s35
      %p152 = scmp.eq.s32.totalorder %s151, 0
      %s154 = sadd.s32 %s153, 1
      %s155 = scalar_select %p152, %s153, %s154
      %p158 = pneg %p152
      %p159 = scmp.eq.s32.totalorder %s28, 1
      %p160 = por %p158, %p159
      %p161 = scmp.ne.s32.totalorder %s153, %s156
      %p162 = scmp.eq.s32.totalorder %s28, 0
      %p163 = por %p161, %p162
      %p164 = scmp.ne.s32.totalorder %s153, %s156
      %p165 = scmp.eq.s32.totalorder %s33, 1
      %p166 = por %p164, %p165
      %p167 = scmp.ne.s32.totalorder %s156, %s157
      %p168 = scmp.eq.s32.totalorder %s33, 0
      %p169 = por %p167, %p168
      %p170 = scmp.ne.s32.totalorder %s156, %s157
      %p171 = scmp.eq.s32.totalorder %s34, 1
      %p172 = por %p170, %p171
      %p174 = scmp.ne.s32.totalorder %s157, %s173
      %p175 = scmp.eq.s32.totalorder %s34, 0
      %p176 = por %p174, %p175
      %s177 = ssub.s32 %s28, %s35
      %p178 = scmp.eq.s32.totalorder %s177, 0
      %s180 = sadd.s32 %s179, 1
      %s181 = scalar_select %p178, %s179, %s180
      %p184 = pneg %p178
      %p185 = scmp.eq.s32.totalorder %s28, 1
      %p186 = por %p184, %p185
      %p187 = scmp.ne.s32.totalorder %s179, %s182
      %p188 = scmp.eq.s32.totalorder %s28, 0
      %p189 = por %p187, %p188
      %p190 = scmp.ne.s32.totalorder %s179, %s182
      %p191 = scmp.eq.s32.totalorder %s33, 1
      %p192 = por %p190, %p191
      %p193 = scmp.ne.s32.totalorder %s182, %s183
      %p194 = scmp.eq.s32.totalorder %s33, 0
      %p195 = por %p193, %p194
      %p196 = scmp.ne.s32.totalorder %s182, %s183
      %p197 = scmp.eq.s32.totalorder %s34, 1
      %p198 = por %p196, %p197
      %p200 = scmp.ne.s32.totalorder %s183, %s199
      %p201 = scmp.eq.s32.totalorder %s34, 0
      %p202 = por %p200, %p201
      %s203 = ssub.s32 %s28, %s35
      %p204 = scmp.eq.s32.totalorder %s203, 0
      %s206 = sadd.s32 %s205, 1
      %s207 = scalar_select %p204, %s205, %s206
      %p210 = pneg %p204
      %p211 = scmp.eq.s32.totalorder %s28, 1
      %p212 = por %p210, %p211
      %p213 = scmp.ne.s32.totalorder %s205, %s208
      %p214 = scmp.eq.s32.totalorder %s28, 0
      %p215 = por %p213, %p214
      %p216 = scmp.ne.s32.totalorder %s205, %s208
      %p217 = scmp.eq.s32.totalorder %s33, 1
      %p218 = por %p216, %p217
      %p219 = scmp.ne.s32.totalorder %s208, %s209
      %p220 = scmp.eq.s32.totalorder %s33, 0
      %p221 = por %p219, %p220
      %p222 = scmp.ne.s32.totalorder %s208, %s209
      %p223 = scmp.eq.s32.totalorder %s34, 1
      %p224 = por %p222, %p223
      %p226 = scmp.ne.s32.totalorder %s209, %s225
      %p227 = scmp.eq.s32.totalorder %s34, 0
      %p228 = por %p226, %p227
      %s229 = ssub.s32 %s28, %s35
      %p230 = scmp.eq.s32.totalorder %s229, 0
      %s232 = sadd.s32 %s231, 1
      %s233 = scalar_select %p230, %s231, %s232
      %p236 = pneg %p230
      %p237 = scmp.eq.s32.totalorder %s28, 1
      %p238 = por %p236, %p237
      %p239 = scmp.ne.s32.totalorder %s231, %s234
      %p240 = scmp.eq.s32.totalorder %s28, 0
      %p241 = por %p239, %p240
      %p242 = scmp.ne.s32.totalorder %s231, %s234
      %p243 = scmp.eq.s32.totalorder %s33, 1
      %p244 = por %p242, %p243
      %p245 = scmp.ne.s32.totalorder %s234, %s235
      %p246 = scmp.eq.s32.totalorder %s33, 0
      %p247 = por %p245, %p246
      %p248 = scmp.ne.s32.totalorder %s234, %s235
      %p249 = scmp.eq.s32.totalorder %s34, 1
      %p250 = por %p248, %p249
      %p252 = scmp.ne.s32.totalorder %s235, %s251
      %p253 = scmp.eq.s32.totalorder %s34, 0
      %p254 = por %p252, %p253
      %s255 = ssub.s32 %s28, %s35
      %p256 = scmp.eq.s32.totalorder %s255, 0
      %s258 = sadd.s32 %s257, 1
      %s259 = scalar_select %p256, %s257, %s258
      %p262 = pneg %p256
      %p263 = scmp.eq.s32.totalorder %s28, 1
      %p264 = por %p262, %p263
      %p265 = scmp.ne.s32.totalorder %s257, %s260
      %p266 = scmp.eq.s32.totalorder %s28, 0
      %p267 = por %p265, %p266
      %p268 = scmp.ne.s32.totalorder %s257, %s260
      %p269 = scmp.eq.s32.totalorder %s33, 1
      %p270 = por %p268, %p269
      %p271 = scmp.ne.s32.totalorder %s260, %s261
      %p272 = scmp.eq.s32.totalorder %s33, 0
      %p273 = por %p271, %p272
      %p274 = scmp.ne.s32.totalorder %s260, %s261
      %p275 = scmp.eq.s32.totalorder %s34, 1
      %p276 = por %p274, %p275
      %p278 = scmp.ne.s32.totalorder %s261, %s277
      %p279 = scmp.eq.s32.totalorder %s34, 0
      %p280 = por %p278, %p279
      %s281 = ssub.s32 %s28, %s35
      %p282 = scmp.eq.s32.totalorder %s281, 0
      %s284 = sadd.s32 %s283, 1
      %s285 = scalar_select %p282, %s283, %s284
      %p288 = pneg %p282
      %p289 = scmp.eq.s32.totalorder %s28, 1
      %p290 = por %p288, %p289
      %p291 = scmp.ne.s32.totalorder %s283, %s286
      %p292 = scmp.eq.s32.totalorder %s28, 0
      %p293 = por %p291, %p292
      %p294 = scmp.ne.s32.totalorder %s283, %s286
      %p295 = scmp.eq.s32.totalorder %s33, 1
      %p296 = por %p294, %p295
      %p297 = scmp.ne.s32.totalorder %s286, %s287
      %p298 = scmp.eq.s32.totalorder %s33, 0
      %p299 = por %p297, %p298
      %p300 = scmp.ne.s32.totalorder %s286, %s287
      %p301 = scmp.eq.s32.totalorder %s34, 1
      %p302 = por %p300, %p301
      %p304 = scmp.ne.s32.totalorder %s287, %s303
      %p305 = scmp.eq.s32.totalorder %s34, 0
      %p306 = por %p304, %p305
      %s307 = ssub.s32 %s28, %s35
      %p308 = scmp.eq.s32.totalorder %s307, 0
      %s310 = sadd.s32 %s309, 1
      %s311 = scalar_select %p308, %s309, %s310
      %p314 = pneg %p308
      %p315 = scmp.eq.s32.totalorder %s28, 1
      %p316 = por %p314, %p315
      %p317 = scmp.ne.s32.totalorder %s309, %s312
      %p318 = scmp.eq.s32.totalorder %s28, 0
      %p319 = por %p317, %p318
      %p320 = scmp.ne.s32.totalorder %s309, %s312
      %p321 = scmp.eq.s32.totalorder %s33, 1
      %p322 = por %p320, %p321
      %p323 = scmp.ne.s32.totalorder %s312, %s313
      %p324 = scmp.eq.s32.totalorder %s33, 0
      %p325 = por %p323, %p324
      %p326 = scmp.ne.s32.totalorder %s312, %s313
      %p327 = scmp.eq.s32.totalorder %s34, 1
      %p328 = por %p326, %p327
      %p330 = scmp.ne.s32.totalorder %s313, %s329
      %p331 = scmp.eq.s32.totalorder %s34, 0
      %p332 = por %p330, %p331
      %s333 = ssub.s32 %s28, %s35
      %p334 = scmp.eq.s32.totalorder %s333, 0
      %s336 = sadd.s32 %s335, 1
      %s337 = scalar_select %p334, %s335, %s336
      %p340 = pneg %p334
      %p341 = scmp.eq.s32.totalorder %s28, 1
      %p342 = por %p340, %p341
      %p343 = scmp.ne.s32.totalorder %s335, %s338
      %p344 = scmp.eq.s32.totalorder %s28, 0
      %p345 = por %p343, %p344
      %p346 = scmp.ne.s32.totalorder %s335, %s338
      %p347 = scmp.eq.s32.totalorder %s33, 1
      %p348 = por %p346, %p347
      %p349 = scmp.ne.s32.totalorder %s338, %s339
      %p350 = scmp.eq.s32.totalorder %s33, 0
      %p351 = por %p349, %p350
      %p352 = scmp.ne.s32.totalorder %s338, %s339
      %p353 = scmp.eq.s32.totalorder %s34, 1
      %p354 = por %p352, %p353
      %p356 = scmp.ne.s32.totalorder %s339, %s355
      %p357 = scmp.eq.s32.totalorder %s34, 0
      %p358 = por %p356, %p357
      %s359 = ssub.s32 %s28, %s35
      %p360 = scmp.eq.s32.totalorder %s359, 0
      %s362 = sadd.s32 %s361, 1
      %s363 = scalar_select %p360, %s361, %s362
      %p366 = pneg %p360
      %p367 = scmp.eq.s32.totalorder %s28, 1
      %p368 = por %p366, %p367
      %p369 = scmp.ne.s32.totalorder %s361, %s364
      %p370 = scmp.eq.s32.totalorder %s28, 0
      %p371 = por %p369, %p370
      %p372 = scmp.ne.s32.totalorder %s361, %s364
      %p373 = scmp.eq.s32.totalorder %s33, 1
      %p374 = por %p372, %p373
      %p375 = scmp.ne.s32.totalorder %s364, %s365
      %p376 = scmp.eq.s32.totalorder %s33, 0
      %p377 = por %p375, %p376
      %p378 = scmp.ne.s32.totalorder %s364, %s365
      %p379 = scmp.eq.s32.totalorder %s34, 1
      %p380 = por %p378, %p379
      %p382 = scmp.ne.s32.totalorder %s365, %s381
      %p383 = scmp.eq.s32.totalorder %s34, 0
      %p384 = por %p382, %p383
      %s385 = ssub.s32 %s28, %s35
      %p386 = scmp.eq.s32.totalorder %s385, 0
      %s388 = sadd.s32 %s387, 1
      %s389 = scalar_select %p386, %s387, %s388
      %p392 = pneg %p386
      %p393 = scmp.eq.s32.totalorder %s28, 1
      %p394 = por %p392, %p393
      %p395 = scmp.ne.s32.totalorder %s387, %s390
      %p396 = scmp.eq.s32.totalorder %s28, 0
      %p397 = por %p395, %p396
      %p398 = scmp.ne.s32.totalorder %s387, %s390
      %p399 = scmp.eq.s32.totalorder %s33, 1
      %p400 = por %p398, %p399
      %p401 = scmp.ne.s32.totalorder %s390, %s391
      %p402 = scmp.eq.s32.totalorder %s33, 0
      %p403 = por %p401, %p402
      %p404 = scmp.ne.s32.totalorder %s390, %s391
      %p405 = scmp.eq.s32.totalorder %s34, 1
      %p406 = por %p404, %p405
      %p408 = scmp.ne.s32.totalorder %s391, %s407
      %p409 = scmp.eq.s32.totalorder %s34, 0
      %p410 = por %p408, %p409
      %s411 = ssub.s32 %s28, %s35
      %p412 = scmp.eq.s32.totalorder %s411, 0
      %s414 = sadd.s32 %s413, 1
      %s415 = scalar_select %p412, %s413, %s414
      %p418 = pneg %p412
      %p419 = scmp.eq.s32.totalorder %s28, 1
      %p420 = por %p418, %p419
      %p421 = scmp.ne.s32.totalorder %s413, %s416
      %p422 = scmp.eq.s32.totalorder %s28, 0
      %p423 = por %p421, %p422
      %p424 = scmp.ne.s32.totalorder %s413, %s416
      %p425 = scmp.eq.s32.totalorder %s33, 1
      %p426 = por %p424, %p425
      %p427 = scmp.ne.s32.totalorder %s416, %s417
      %p428 = scmp.eq.s32.totalorder %s33, 0
      %p429 = por %p427, %p428
      %p430 = scmp.ne.s32.totalorder %s416, %s417
      %p431 = scmp.eq.s32.totalorder %s34, 1
      %p432 = por %p430, %p431
      %p434 = scmp.ne.s32.totalorder %s417, %s433
      %p435 = scmp.eq.s32.totalorder %s34, 0
      %p436 = por %p434, %p435
      %s437 = ssub.s32 %s28, %s35
      %p438 = scmp.eq.s32.totalorder %s437, 0
      %s440 = sadd.s32 %s439, 1
      %s441 = scalar_select %p438, %s439, %s440
      %p444 = pneg %p438
      %p445 = scmp.eq.s32.totalorder %s28, 1
      %p446 = por %p444, %p445
      %p447 = scmp.ne.s32.totalorder %s439, %s442
      %p448 = scmp.eq.s32.totalorder %s28, 0
      %p449 = por %p447, %p448
      %p450 = scmp.ne.s32.totalorder %s439, %s442
      %p451 = scmp.eq.s32.totalorder %s33, 1
      %p452 = por %p450, %p451
      %p453 = scmp.ne.s32.totalorder %s442, %s443
      %p454 = scmp.eq.s32.totalorder %s33, 0
      %p455 = por %p453, %p454
      %p456 = scmp.ne.s32.totalorder %s442, %s443
      %p457 = scmp.eq.s32.totalorder %s34, 1
      %p458 = por %p456, %p457
      %p460 = scmp.ne.s32.totalorder %s443, %s459
      %p461 = scmp.eq.s32.totalorder %s34, 0
      %p462 = por %p460, %p461
      %s464 = sadd.s32 %s463, 1
      %p467 = scmp.eq.s32.totalorder %s28, 1
      %p468 = scmp.ne.s32.totalorder %s463, %s465
      %p469 = scmp.eq.s32.totalorder %s28, 0
      %p470 = por %p468, %p469
      %p471 = scmp.ne.s32.totalorder %s463, %s465
      %p472 = scmp.eq.s32.totalorder %s33, 1
      %p473 = por %p471, %p472
      %p474 = scmp.ne.s32.totalorder %s465, %s466
      %p475 = scmp.eq.s32.totalorder %s33, 0
      %p476 = por %p474, %p475
      %p477 = scmp.ne.s32.totalorder %s465, %s466
      %p478 = scmp.eq.s32.totalorder %s34, 1
      %p479 = por %p477, %p478
      %p481 = scmp.ne.s32.totalorder %s466, %s480
      %p482 = scmp.eq.s32.totalorder %s34, 0
      %p483 = por %p481, %p482
      %s485 = sadd.s32 %s484, 1
      %p488 = scmp.eq.s32.totalorder %s28, 1
      %p489 = scmp.ne.s32.totalorder %s484, %s486
      %p490 = scmp.eq.s32.totalorder %s28, 0
      %p491 = por %p489, %p490
      %p492 = scmp.ne.s32.totalorder %s484, %s486
      %p493 = scmp.eq.s32.totalorder %s33, 1
      %p494 = por %p492, %p493
      %p495 = scmp.ne.s32.totalorder %s486, %s487
      %p496 = scmp.eq.s32.totalorder %s33, 0
      %p497 = por %p495, %p496
      %p498 = scmp.ne.s32.totalorder %s486, %s487
      %p499 = scmp.eq.s32.totalorder %s34, 1
      %p500 = por %p498, %p499
      %p502 = scmp.ne.s32.totalorder %s487, %s501
      %p503 = scmp.eq.s32.totalorder %s34, 0
      %p504 = por %p502, %p503
      %s506 = sadd.s32 %s505, 1
      %p509 = scmp.eq.s32.totalorder %s28, 1
      %p510 = scmp.ne.s32.totalorder %s505, %s507
      %p511 = scmp.eq.s32.totalorder %s28, 0
      %p512 = por %p510, %p511
      %p513 = scmp.ne.s32.totalorder %s505, %s507
      %p514 = scmp.eq.s32.totalorder %s33, 1
      %p515 = por %p513, %p514
      %p516 = scmp.ne.s32.totalorder %s507, %s508
      %p517 = scmp.eq.s32.totalorder %s33, 0
      %p518 = por %p516, %p517
      %p519 = scmp.ne.s32.totalorder %s507, %s508
      %p520 = scmp.eq.s32.totalorder %s34, 1
      %p521 = por %p519, %p520
      %p523 = scmp.ne.s32.totalorder %s508, %s522
      %p524 = scmp.eq.s32.totalorder %s34, 0
      %p525 = por %p523, %p524
      %s527 = sadd.s32 %s526, 1
      %p530 = scmp.eq.s32.totalorder %s28, 1
      %p531 = scmp.ne.s32.totalorder %s526, %s528
      %p532 = scmp.eq.s32.totalorder %s28, 0
      %p533 = por %p531, %p532
      %p534 = scmp.ne.s32.totalorder %s526, %s528
      %p535 = scmp.eq.s32.totalorder %s33, 1
      %p536 = por %p534, %p535
      %p537 = scmp.ne.s32.totalorder %s528, %s529
      %p538 = scmp.eq.s32.totalorder %s33, 0
      %p539 = por %p537, %p538
      %p540 = scmp.ne.s32.totalorder %s528, %s529
      %p541 = scmp.eq.s32.totalorder %s34, 1
      %p542 = por %p540, %p541
      %p544 = scmp.ne.s32.totalorder %s529, %s543
      %p545 = scmp.eq.s32.totalorder %s34, 0
      %p546 = por %p544, %p545
      %s548 = sadd.s32 %s547, 1
      %p551 = scmp.eq.s32.totalorder %s28, 1
      %p552 = scmp.ne.s32.totalorder %s547, %s549
      %p553 = scmp.eq.s32.totalorder %s28, 0
      %p554 = por %p552, %p553
      %p555 = scmp.ne.s32.totalorder %s547, %s549
      %p556 = scmp.eq.s32.totalorder %s33, 1
      %p557 = por %p555, %p556
      %p558 = scmp.ne.s32.totalorder %s549, %s550
      %p559 = scmp.eq.s32.totalorder %s33, 0
      %p560 = por %p558, %p559
      %p561 = scmp.ne.s32.totalorder %s549, %s550
      %p562 = scmp.eq.s32.totalorder %s34, 1
      %p563 = por %p561, %p562
      %p565 = scmp.ne.s32.totalorder %s550, %s564
      %p566 = scmp.eq.s32.totalorder %s34, 0
      %p567 = por %p565, %p566
      %p568 = scmp.le.s32.totalorder 1, %s28
      %p569 = scmp.lt.s32.totalorder %s28, 3
      %p570 = pnand %p568, %p569
      %p571 = pneg %p570
      // Predicated region
      $region9: #{vit_forward.1} parent=5 // pred_check
        _
      $region10: #{vit_forward.1} parent=5 // pred_check_branch
        %573 = sbr.rel (%p570) target = $region12
      $region11: #{vit_forward.1} parent=5 // pred_region
        %s574 = ssub.s32 %s28, 1
        // Predicated region
        $region13: #{vit_forward.1} parent=11 // pred_check
          %p575 = pneg %p49
        $region14: #{vit_forward.1} parent=11 // pred_check_branch
          %577 = sbr.rel (%p575) target = $region16
        $region15: #{vit_forward.1} parent=11 // pred_region
          _
        $region16: #{vit_forward.1} parent=11 // pred_fallthru
          _
        // Predicated region
        $region17: #{vit_forward.1} parent=11 // pred_check
          %p578 = pneg %p70
        $region18: #{vit_forward.1} parent=11 // pred_check_branch
          %580 = sbr.rel (%p578) target = $region20
        $region19: #{vit_forward.1} parent=11 // pred_region
          _
        $region20: #{vit_forward.1} parent=11 // pred_fallthru
          _
        // Predicated region
        $region21: #{vit_forward.1} parent=11 // pred_check
          %p581 = pneg %p91
        $region22: #{vit_forward.1} parent=11 // pred_check_branch
          %583 = sbr.rel (%p581) target = $region24
        $region23: #{vit_forward.1} parent=11 // pred_region
          _
        $region24: #{vit_forward.1} parent=11 // pred_fallthru
          _
        // Predicated region
        $region25: #{vit_forward.1} parent=11 // pred_check
          %p584 = pneg %p476
        $region26: #{vit_forward.1} parent=11 // pred_check_branch
          %586 = sbr.rel (%p584) target = $region28
        $region27: #{vit_forward.1} parent=11 // pred_region
          _
        $region28: #{vit_forward.1} parent=11 // pred_fallthru
          _
        // Predicated region
        $region29: #{vit_forward.1} parent=11 // pred_check
          %p587 = pneg %p497
        $region30: #{vit_forward.1} parent=11 // pred_check_branch
          %589 = sbr.rel (%p587) target = $region32
        $region31: #{vit_forward.1} parent=11 // pred_region
          _
        $region32: #{vit_forward.1} parent=11 // pred_fallthru
          _
        // Predicated region
        $region33: #{vit_forward.1} parent=11 // pred_check
          %p590 = pneg %p518
        $region34: #{vit_forward.1} parent=11 // pred_check_branch
          %592 = sbr.rel (%p590) target = $region36
        $region35: #{vit_forward.1} parent=11 // pred_region
          _
        $region36: #{vit_forward.1} parent=11 // pred_fallthru
          _
        // Predicated region
        $region37: #{vit_forward.1} parent=11 // pred_check
          %p593 = pneg %p539
        $region38: #{vit_forward.1} parent=11 // pred_check_branch
          %595 = sbr.rel (%p593) target = $region40
        $region39: #{vit_forward.1} parent=11 // pred_region
          _
        $region40: #{vit_forward.1} parent=11 // pred_fallthru
          _
      $region12: #{vit_forward.1} parent=5 // pred_fallthru
        _
      %p596 = scmp.lt.s32.totalorder %s28, 2
      // Predicated region
      $region41: #{vit_forward.1} parent=5 // pred_check
        %p597 = pneg %p596
      $region42: #{vit_forward.1} parent=5 // pred_check_branch
        %599 = sbr.rel (%p597) target = $region44
      $region43: #{vit_forward.1} parent=5 // pred_region
        // Predicated region
        $region45: #{vit_forward.1} parent=43 // pred_check
          %p600 = pneg %p111
        $region46: #{vit_forward.1} parent=43 // pred_check_branch
          %602 = sbr.rel (%p600) target = $region48
        $region47: #{vit_forward.1} parent=43 // pred_region
          %p603 = scmp.lt.s32.totalorder %s28, 1
          %s604 = scalar_select %p603, %s28, 1
          %s605 = scalar_lea.vmem %s3, %s604
        $region48: #{vit_forward.1} parent=43 // pred_fallthru
          _
        // Predicated region
        $region49: #{vit_forward.1} parent=43 // pred_check
          %p606 = pneg %p137
        $region50: #{vit_forward.1} parent=43 // pred_check_branch
          %608 = sbr.rel (%p606) target = $region52
        $region51: #{vit_forward.1} parent=43 // pred_region
          %p609 = scmp.lt.s32.totalorder %s28, 1
          %s610 = scalar_select %p609, %s28, 1
          %s611 = scalar_lea.vmem %s4, %s610
        $region52: #{vit_forward.1} parent=43 // pred_fallthru
          _
        // Predicated region
        $region53: #{vit_forward.1} parent=43 // pred_check
          %p612 = pneg %p163
        $region54: #{vit_forward.1} parent=43 // pred_check_branch
          %614 = sbr.rel (%p612) target = $region56
        $region55: #{vit_forward.1} parent=43 // pred_region
          %p615 = scmp.lt.s32.totalorder %s28, 1
          %s616 = scalar_select %p615, %s28, 1
          %s617 = smul.addr %s616, 4
          %s618 = smul.addr %s617, 8
          %s619 = scalar_lea.vmem %s5, %s618
        $region56: #{vit_forward.1} parent=43 // pred_fallthru
          _
        // Predicated region
        $region57: #{vit_forward.1} parent=43 // pred_check
          %p620 = pneg %p189
        $region58: #{vit_forward.1} parent=43 // pred_check_branch
          %622 = sbr.rel (%p620) target = $region60
        $region59: #{vit_forward.1} parent=43 // pred_region
          %p623 = scmp.lt.s32.totalorder %s28, 1
          %s624 = scalar_select %p623, %s28, 1
          %s625 = scalar_lea.vmem %s6, %s624
        $region60: #{vit_forward.1} parent=43 // pred_fallthru
          _
        // Predicated region
        $region61: #{vit_forward.1} parent=43 // pred_check
          %p626 = pneg %p215
        $region62: #{vit_forward.1} parent=43 // pred_check_branch
          %628 = sbr.rel (%p626) target = $region64
        $region63: #{vit_forward.1} parent=43 // pred_region
          %p629 = scmp.lt.s32.totalorder %s28, 1
          %s630 = scalar_select %p629, %s28, 1
          %s631 = smul.addr %s630, 4
          %s632 = smul.addr %s631, 8
          %s633 = scalar_lea.vmem %s7, %s632
        $region64: #{vit_forward.1} parent=43 // pred_fallthru
          _
        // Predicated region
        $region65: #{vit_forward.1} parent=43 // pred_check
          %p634 = pneg %p241
        $region66: #{vit_forward.1} parent=43 // pred_check_branch
          %636 = sbr.rel (%p634) target = $region68
        $region67: #{vit_forward.1} parent=43 // pred_region
          %p637 = scmp.lt.s32.totalorder %s28, 1
          %s638 = scalar_select %p637, %s28, 1
          %s639 = scalar_lea.vmem %s8, %s638
        $region68: #{vit_forward.1} parent=43 // pred_fallthru
          _
        // Predicated region
        $region69: #{vit_forward.1} parent=43 // pred_check
          %p640 = pneg %p267
        $region70: #{vit_forward.1} parent=43 // pred_check_branch
          %642 = sbr.rel (%p640) target = $region72
        $region71: #{vit_forward.1} parent=43 // pred_region
          %p643 = scmp.lt.s32.totalorder %s28, 1
          %s644 = scalar_select %p643, %s28, 1
          %s645 = scalar_lea.vmem %s9, %s644
        $region72: #{vit_forward.1} parent=43 // pred_fallthru
          _
        // Predicated region
        $region73: #{vit_forward.1} parent=43 // pred_check
          %p646 = pneg %p293
        $region74: #{vit_forward.1} parent=43 // pred_check_branch
          %648 = sbr.rel (%p646) target = $region76
        $region75: #{vit_forward.1} parent=43 // pred_region
          %p649 = scmp.lt.s32.totalorder %s28, 1
          %s650 = scalar_select %p649, %s28, 1
          %s651 = scalar_lea.vmem %s10, %s650
        $region76: #{vit_forward.1} parent=43 // pred_fallthru
          _
        // Predicated region
        $region77: #{vit_forward.1} parent=43 // pred_check
          %p652 = pneg %p319
        $region78: #{vit_forward.1} parent=43 // pred_check_branch
          %654 = sbr.rel (%p652) target = $region80
        $region79: #{vit_forward.1} parent=43 // pred_region
          %p655 = scmp.lt.s32.totalorder %s28, 1
          %s656 = scalar_select %p655, %s28, 1
          %s657 = scalar_lea.vmem %s11, %s656
        $region80: #{vit_forward.1} parent=43 // pred_fallthru
          _
        // Predicated region
        $region81: #{vit_forward.1} parent=43 // pred_check
          %p658 = pneg %p345
        $region82: #{vit_forward.1} parent=43 // pred_check_branch
          %660 = sbr.rel (%p658) target = $region84
        $region83: #{vit_forward.1} parent=43 // pred_region
          %p661 = scmp.lt.s32.totalorder %s28, 1
          %s662 = scalar_select %p661, %s28, 1
          %s663 = smul.addr %s662, 4
          %s664 = smul.addr %s663, 8
          %s665 = scalar_lea.vmem %s12, %s664
        $region84: #{vit_forward.1} parent=43 // pred_fallthru
          _
        // Predicated region
        $region85: #{vit_forward.1} parent=43 // pred_check
          %p666 = pneg %p371
        $region86: #{vit_forward.1} parent=43 // pred_check_branch
          %668 = sbr.rel (%p666) target = $region88
        $region87: #{vit_forward.1} parent=43 // pred_region
          %p669 = scmp.lt.s32.totalorder %s28, 1
          %s670 = scalar_select %p669, %s28, 1
          %s671 = scalar_lea.vmem %s13, %s670
        $region88: #{vit_forward.1} parent=43 // pred_fallthru
          _
        // Predicated region
        $region89: #{vit_forward.1} parent=43 // pred_check
          %p672 = pneg %p397
        $region90: #{vit_forward.1} parent=43 // pred_check_branch
          %674 = sbr.rel (%p672) target = $region92
        $region91: #{vit_forward.1} parent=43 // pred_region
          %p675 = scmp.lt.s32.totalorder %s28, 1
          %s676 = scalar_select %p675, %s28, 1
          %s677 = smul.addr %s676, 16
          %s678 = smul.addr %s677, 8
          %s679 = scalar_lea.vmem %s14, %s678
        $region92: #{vit_forward.1} parent=43 // pred_fallthru
          _
        // Predicated region
        $region93: #{vit_forward.1} parent=43 // pred_check
          %p680 = pneg %p423
        $region94: #{vit_forward.1} parent=43 // pred_check_branch
          %682 = sbr.rel (%p680) target = $region96
        $region95: #{vit_forward.1} parent=43 // pred_region
          %p683 = scmp.lt.s32.totalorder %s28, 1
          %s684 = scalar_select %p683, %s28, 1
          %s685 = scalar_lea.vmem %s15, %s684
        $region96: #{vit_forward.1} parent=43 // pred_fallthru
          _
        // Predicated region
        $region97: #{vit_forward.1} parent=43 // pred_check
          %p686 = pneg %p449
        $region98: #{vit_forward.1} parent=43 // pred_check_branch
          %688 = sbr.rel (%p686) target = $region100
        $region99: #{vit_forward.1} parent=43 // pred_region
          %p689 = scmp.lt.s32.totalorder %s28, 1
          %s690 = scalar_select %p689, %s28, 1
          %s691 = scalar_lea.vmem %s16, %s690
        $region100: #{vit_forward.1} parent=43 // pred_fallthru
          _
      $region44: #{vit_forward.1} parent=5 // pred_fallthru
        _
      %p692 = scmp.le.s32.totalorder 1, %s28
      %p693 = scmp.lt.s32.totalorder %s28, 3
      %p694 = pnand %p692, %p693
      %p695 = pneg %p694
      // Predicated region
      $region101: #{vit_forward.1} parent=5 // pred_check
        _
      $region102: #{vit_forward.1} parent=5 // pred_check_branch
        %697 = sbr.rel (%p694) target = $region104
      $region103: #{vit_forward.1} parent=5 // pred_region
        %s698 = ssub.s32 %s28, 1
        %p699 = pneg %p49
        %p700 = pneg %p46
        %p701 = pneg %p70
        %p702 = pneg %p67
        %p703 = pneg %p91
        %p704 = pneg %p88
        %p705 = scmp.lt.s32.totalorder %s33, 1
        %s706 = scalar_select %p705, %s33, 1
        %s707 = scalar_lea.vmem %s3, %s706
        %p708 = pneg %p117
        %p709 = pneg %p114
        %p710 = scmp.lt.s32.totalorder %s33, 1
        %s711 = scalar_select %p710, %s33, 1
        %s712 = scalar_lea.vmem %s4, %s711
        %p713 = pneg %p143
        %p714 = pneg %p140
        %p715 = scmp.lt.s32.totalorder %s33, 1
        %s716 = scalar_select %p715, %s33, 1
        %s717 = smul.addr %s716, 4
        %s718 = smul.addr %s717, 8
        %s719 = scalar_lea.vmem %s5, %s718
        %p720 = pneg %p169
        %p721 = pneg %p166
        %p722 = scmp.lt.s32.totalorder %s33, 1
        %s723 = scalar_select %p722, %s33, 1
        %s724 = scalar_lea.vmem %s6, %s723
        %p725 = pneg %p195
        %p726 = pneg %p192
        %p727 = scmp.lt.s32.totalorder %s33, 1
        %s728 = scalar_select %p727, %s33, 1
        %s729 = smul.addr %s728, 4
        %s730 = smul.addr %s729, 8
        %s731 = scalar_lea.vmem %s7, %s730
        %p732 = pneg %p221
        %p733 = pneg %p218
        %p734 = scmp.lt.s32.totalorder %s33, 1
        %s735 = scalar_select %p734, %s33, 1
        %s736 = scalar_lea.vmem %s8, %s735
        %p737 = pneg %p247
        %p738 = pneg %p244
        %p739 = scmp.lt.s32.totalorder %s33, 1
        %s740 = scalar_select %p739, %s33, 1
        %s741 = scalar_lea.vmem %s9, %s740
        %p742 = pneg %p273
        %p743 = pneg %p270
        %p744 = scmp.lt.s32.totalorder %s33, 1
        %s745 = scalar_select %p744, %s33, 1
        %s746 = scalar_lea.vmem %s10, %s745
        %p747 = pneg %p299
        %p748 = pneg %p296
        %p749 = scmp.lt.s32.totalorder %s33, 1
        %s750 = scalar_select %p749, %s33, 1
        %s751 = scalar_lea.vmem %s11, %s750
        %p752 = pneg %p325
        %p753 = pneg %p322
        %p754 = scmp.lt.s32.totalorder %s33, 1
        %s755 = scalar_select %p754, %s33, 1
        %s756 = smul.addr %s755, 4
        %s757 = smul.addr %s756, 8
        %s758 = scalar_lea.vmem %s12, %s757
        %p759 = pneg %p351
        %p760 = pneg %p348
        %p761 = scmp.lt.s32.totalorder %s33, 1
        %s762 = scalar_select %p761, %s33, 1
        %s763 = scalar_lea.vmem %s13, %s762
        %p764 = pneg %p377
        %p765 = pneg %p374
        %p766 = scmp.lt.s32.totalorder %s33, 1
        %s767 = scalar_select %p766, %s33, 1
        %s768 = smul.addr %s767, 16
        %s769 = smul.addr %s768, 8
        %s770 = scalar_lea.vmem %s14, %s769
        %p771 = pneg %p403
        %p772 = pneg %p400
        %p773 = scmp.lt.s32.totalorder %s33, 1
        %s774 = scalar_select %p773, %s33, 1
        %s775 = scalar_lea.vmem %s15, %s774
        %p776 = pneg %p429
        %p777 = pneg %p426
        %p778 = scmp.lt.s32.totalorder %s33, 1
        %s779 = scalar_select %p778, %s33, 1
        %s780 = scalar_lea.vmem %s16, %s779
        %p781 = pneg %p455
        %p782 = pneg %p452
        %p783 = pneg %p476
        %p784 = pneg %p473
        %p785 = pneg %p497
        %p786 = pneg %p494
        %p787 = pneg %p518
        %p788 = pneg %p515
        %p789 = pneg %p539
        %p790 = pneg %p536
        %p791 = pneg %p560
        %p792 = pneg %p557
        %p793 = scmp.lt.s32.totalorder %s33, 1
        %s794 = scalar_select %p793, %s33, 1
        %s795 = scalar_lea.vmem %s3, %s794
        %p796 = scmp.lt.s32.totalorder %s33, 1
        %s797 = scalar_select %p796, %s33, 1
        %s798 = scalar_lea.vmem %s4, %s797
        %p799 = scmp.lt.s32.totalorder %s33, 1
        %s800 = scalar_select %p799, %s33, 1
        %s801 = smul.addr %s800, 4
        %s802 = smul.addr %s801, 8
        %s803 = scalar_lea.vmem %s5, %s802
        %p804 = scmp.lt.s32.totalorder %s33, 1
        %s805 = scalar_select %p804, %s33, 1
        %s806 = scalar_lea.vmem %s6, %s805
        %p807 = scmp.lt.s32.totalorder %s33, 1
        %s808 = scalar_select %p807, %s33, 1
        %s809 = smul.addr %s808, 4
        %s810 = smul.addr %s809, 8
        %s811 = scalar_lea.vmem %s7, %s810
        %p812 = scmp.lt.s32.totalorder %s33, 1
        %s813 = scalar_select %p812, %s33, 1
        %s814 = scalar_lea.vmem %s8, %s813
        %p815 = scmp.lt.s32.totalorder %s33, 1
        %s816 = scalar_select %p815, %s33, 1
        %s817 = scalar_lea.vmem %s9, %s816
        %p818 = scmp.lt.s32.totalorder %s33, 1
        %s819 = scalar_select %p818, %s33, 1
        %s820 = scalar_lea.vmem %s10, %s819
        %p821 = scmp.lt.s32.totalorder %s33, 1
        %s822 = scalar_select %p821, %s33, 1
        %s823 = scalar_lea.vmem %s11, %s822
        %p824 = scmp.lt.s32.totalorder %s33, 1
        %s825 = scalar_select %p824, %s33, 1
        %s826 = smul.addr %s825, 4
        %s827 = smul.addr %s826, 8
        %s828 = scalar_lea.vmem %s12, %s827
        %p829 = scmp.lt.s32.totalorder %s33, 1
        %s830 = scalar_select %p829, %s33, 1
        %s831 = scalar_lea.vmem %s13, %s830
        %p832 = scmp.lt.s32.totalorder %s33, 1
        %s833 = scalar_select %p832, %s33, 1
        %s834 = smul.addr %s833, 16
        %s835 = smul.addr %s834, 8
        %s836 = scalar_lea.vmem %s14, %s835
        %p837 = scmp.lt.s32.totalorder %s33, 1
        %s838 = scalar_select %p837, %s33, 1
        %s839 = scalar_lea.vmem %s15, %s838
        %p840 = scmp.lt.s32.totalorder %s33, 1
        %s841 = scalar_select %p840, %s33, 1
        %s842 = scalar_lea.vmem %s16, %s841
        %p843 = scmp.eq.s32.totalorder %s33, 0
        // Predicated region
        $region105: #{vit_forward.1} parent=103 // pred_check
          %p844 = pneg %p843
        $region106: #{vit_forward.1} parent=103 // pred_check_branch
          %846 = sbr.rel (%p844) target = $region108
        $region107: #{vit_forward.1} parent=103 // pred_region
          %v847 = vld [vmem:[%s0] sm:$0xff]
          %v848 = vld [vmem:[%s0 + $0x8] sm:$0xff]
          %v849 = vld [vmem:[%s0 + $0x10] sm:$0xff]
          %v850 = vld [vmem:[%s0 + $0x18] sm:$0xff]
          %v851 = vld [vmem:[%s0 + $0x20] sm:$0xff]
          %v852 = vld [vmem:[%s0 + $0x28] sm:$0xff]
          %v853 = vld [vmem:[%s1] sm:$0xff]
          %v854 = vld [vmem:[%s1 + $0x8] sm:$0xff]
          %v855 = vld [vmem:[%s1 + $0x10] sm:$0xff]
          %v856 = vld [vmem:[%s1 + $0x18] sm:$0xff]
          %v857 = vld [vmem:[%s1 + $0x20] sm:$0xff]
          %v858 = vld [vmem:[%s1 + $0x28] sm:$0xff]
          %v859 = vld [vmem:[%s2] sm:$0xff]
          %v860 = vld [vmem:[%s2 + $0x8] sm:$0xff]
          %v861 = vld [vmem:[%s2 + $0x10] sm:$0xff]
          %v862 = vld [vmem:[%s2 + $0x18] sm:$0xff]
          %v863 = vld [vmem:[%s2 + $0x20] sm:$0xff]
          %v864 = vld [vmem:[%s2 + $0x28] sm:$0xff]
          %vm865 = vcmask 392192
          %v867 = vsel %vm865, %v847, 0
          %v870 = vsel %vm865, %v848, 0
          %v873 = vsel %vm865, %v849, 0
          %v876 = vsel %vm865, %v850, 0
          %v879 = vsel %vm865, %v851, 0
          %v882 = vsel %vm865, %v852, 0
          %884 = vmatprep.subr.mxu0 0.0
          %885 = vmatpush1.msra.mxu0 %v853
          %886 = vmatprep.subr.mxu0 0.0
          %887 = vmatpush1.msra.mxu0 %v854
          %888 = vmatprep.subr.mxu0 0.0
          %889 = vmatpush1.msra.mxu0 %v855
          %890 = vmatprep.subr.mxu0 0.0
          %891 = vmatpush1.msra.mxu0 %v856
          %892 = vmatprep.subr.mxu0 0.0
          %893 = vmatpush1.msra.mxu0 %v857
          %894 = vmatprep.subr.mxu0 0.0
          %895 = vmatpush1.msra.mxu0 %v858
          %896 = vmatprep.subr.mxu0 0.0
          %897 = vmatpush1.msra.mxu0 0.0
          %898 = vmatprep.subr.mxu0 0.0
          %899 = vmatpush1.msra.mxu0 0.0
          %900 = vmatprep.subr.mxu0 0.0
          %901 = vmatpush1.msra.mxu0 0.0
          %902 = vmatprep.subr.mxu0 0.0
          %903 = vmatpush1.msra.mxu0 0.0
          %904 = vmatprep.subr.mxu0 0.0
          %905 = vmatpush1.msra.mxu0 0.0
          %906 = vmatprep.subr.mxu0 0.0
          %907 = vmatpush1.msra.mxu0 0.0
          %908 = vmatprep.subr.mxu0 0.0
          %909 = vmatpush1.msra.mxu0 0.0
          %910 = vmatprep.subr.mxu0 0.0
          %911 = vmatpush1.msra.mxu0 0.0
          %912 = vmatprep.subr.mxu0 0.0
          %913 = vmatpush1.msra.mxu0 0.0
          %914 = vmatprep.subr.mxu0 0.0
          %915 = vmatpush1.msra.mxu0 0.0
          %916 = vmatprep.subr.mxu0 0.0
          %917 = vmatpush1.msra.mxu0 0.0
          %918 = vmatprep.subr.mxu0 0.0
          %919 = vmatpush1.msra.mxu0 0.0
          %920 = vmatprep.subr.mxu0 0.0
          %921 = vmatpush1.msra.mxu0 0.0
          %922 = vmatprep.subr.mxu0 0.0
          %923 = vmatpush1.msra.mxu0 0.0
          %924 = vmatprep.subr.mxu0 0.0
          %925 = vmatpush1.msra.mxu0 0.0
          %926 = vmatprep.subr.mxu0 0.0
          %927 = vmatpush1.msra.mxu0 0.0
          %928 = vmatprep.subr.mxu0 0.0
          %929 = vmatpush1.msra.mxu0 0.0
          %930 = vmatprep.subr.mxu0 0.0
          %931 = vmatpush1.msra.mxu0 0.0
          %932 = vmatprep.subr.mxu0 0.0
          %933 = vmatpush1.msra.mxu0 0.0
          %934 = vmatprep.subr.mxu0 0.0
          %935 = vmatpush1.msra.mxu0 0.0
          %936 = vmatprep.subr.mxu0 0.0
          %937 = vmatpush1.msra.mxu0 0.0
          %938 = vmatprep.subr.mxu0 0.0
          %939 = vmatpush1.msra.mxu0 0.0
          %940 = vmatprep.subr.mxu0 0.0
          %941 = vmatpush1.msra.mxu0 0.0
          %942 = vmatprep.subr.mxu0 0.0
          %943 = vmatpush1.msra.mxu0 0.0
          %944 = vmatprep.subr.mxu0 0.0
          %945 = vmatpush1.msra.mxu0 0.0
          %946 = vmatprep.subr.mxu0 0.0
          %947 = vmatpush1.msra.mxu0 0.0
          %948 = vmatprep.mubr.f32.mxu0 0.0
          %949 = vmatmul.mubr.f32.gmra.mrb[0].mxu0 %v867
          %v950 = vpop.f32.mrb[0].mxu0
          %v951 = vadd.f32 %v859, %v950
          %v952 = vpop.f32.mrb[0].mxu0
          %953 = vmatprep.mubr.f32.mxu0 0.0
          %954 = vmatmul.mubr.f32.gmra.mrb[0].mxu0 %v870
          %v955 = vpop.f32.mrb[0].mxu0
          %v956 = vadd.f32 %v860, %v955
          %v957 = vpop.f32.mrb[0].mxu0
          %958 = vmatprep.mubr.f32.mxu0 0.0
          %959 = vmatmul.mubr.f32.gmra.mrb[0].mxu0 %v873
          %v960 = vpop.f32.mrb[0].mxu0
          %v961 = vadd.f32 %v861, %v960
          %v962 = vpop.f32.mrb[0].mxu0
          %963 = vmatprep.mubr.f32.mxu0 0.0
          %964 = vmatmul.mubr.f32.gmra.mrb[0].mxu0 %v876
          %v965 = vpop.f32.mrb[0].mxu0
          %v966 = vadd.f32 %v862, %v965
          %v967 = vpop.f32.mrb[0].mxu0
          %968 = vmatprep.mubr.f32.mxu0 0.0
          %969 = vmatmul.mubr.f32.gmra.mrb[0].mxu0 %v879
          %v970 = vpop.f32.mrb[0].mxu0
          %v971 = vadd.f32 %v863, %v970
          %v972 = vpop.f32.mrb[0].mxu0
          %973 = vmatprep.mubr.f32.mxu0 0.0
          %974 = vmatmul.mubr.f32.gmra.mrb[0].mxu0 %v882
          %v975 = vpop.f32.mrb[0].mxu0
          %v976 = vadd.f32 %v864, %v975
          %v977 = vpop.f32.mrb[0].mxu0
          %978 = vdwg.mxu0
          %vm979 = vcmask 261120
          %980 = vst.msk [vmem:[#allocation2] sm:$0xff] %vm979, %v951
          %981 = vst.msk [vmem:[#allocation2 + $0x8] sm:$0xff] %vm979, %v956
          %982 = vst.msk [vmem:[#allocation2 + $0x10] sm:$0xff] %vm979, %v961
          %983 = vst.msk [vmem:[#allocation2 + $0x18] sm:$0xff] %vm979, %v966
          %984 = vst.msk [vmem:[#allocation2 + $0x20] sm:$0xff] %vm979, %v971
          %985 = vst.msk [vmem:[#allocation2 + $0x28] sm:$0xff] %vm979, %v976
        $region108: #{vit_forward.1} parent=103 // pred_fallthru
          _
        %v986 = vld [vmem:[#allocation2] sm:$0xff]
        %v987 = vld [vmem:[#allocation2 + $0x8] sm:$0xff]
        %v988 = vld [vmem:[#allocation2 + $0x10] sm:$0xff]
        %v989 = vld [vmem:[#allocation2 + $0x18] sm:$0xff]
        %v990 = vld [vmem:[#allocation2 + $0x20] sm:$0xff]
        %v991 = vld [vmem:[#allocation2 + $0x28] sm:$0xff]
        %v992 = vlaneseq
        %v993 = vand.u32 %v992, 127
        %vm994 = vcmp.lt.s32.totalorder %v993, 17
        %v995 = vld [vmem:[%s795] sm:$0x1]
        %v996 = vld [vmem:[%s798] sm:$0x1]
        %vm997 = vcmask 261120
        %v998 = vsel %vm997, %v986, 0.0
        %999 = vadd.xlane.f32.xlu0 %v998
        %v1000 = vpop.xlane.xlu0 %999
        %v1001 = vsel %vm997, %v987, 0.0
        %1002 = vadd.xlane.f32.xlu0 %v1001
        %v1003 = vpop.xlane.xlu0 %1002
        %v1004 = vsel %vm997, %v988, 0.0
        %1005 = vadd.xlane.f32.xlu0 %v1004
        %v1006 = vpop.xlane.xlu0 %1005
        %v1007 = vsel %vm997, %v989, 0.0
        %1008 = vadd.xlane.f32.xlu0 %v1007
        %v1009 = vpop.xlane.xlu0 %1008
        %v1010 = vsel %vm997, %v990, 0.0
        %1011 = vadd.xlane.f32.xlu0 %v1010
        %v1012 = vpop.xlane.xlu0 %1011
        %v1013 = vsel %vm997, %v991, 0.0
        %1014 = vadd.xlane.f32.xlu0 %v1013
        %v1015 = vpop.xlane.xlu0 %1014
        %v1016 = vrcp.pop 32.0
        %v1017 = vmul.f32 %v1000, %v1016
        %v1018 = vmul.f32 %v1003, %v1016
        %v1019 = vmul.f32 %v1006, %v1016
        %v1020 = vmul.f32 %v1009, %v1016
        %v1021 = vmul.f32 %v1012, %v1016
        %v1022 = vmul.f32 %v1015, %v1016
        %v1023 = vsub.f32 %v986, %v1017
        %v1024 = vsub.f32 %v987, %v1018
        %v1025 = vsub.f32 %v988, %v1019
        %v1026 = vsub.f32 %v989, %v1020
        %v1027 = vsub.f32 %v990, %v1021
        %v1028 = vsub.f32 %v991, %v1022
        %v1029 = vmul.f32 %v1023, %v1023
        %v1030 = vmul.f32 %v1024, %v1024
        %v1031 = vmul.f32 %v1025, %v1025
        %v1032 = vmul.f32 %v1026, %v1026
        %v1033 = vmul.f32 %v1027, %v1027
        %v1034 = vmul.f32 %v1028, %v1028
        %v1035 = vsel %vm997, %v1029, 0.0
        %1036 = vadd.xlane.f32.xlu0 %v1035
        %v1037 = vpop.xlane.xlu0 %1036
        %v1038 = vsel %vm997, %v1030, 0.0
        %1039 = vadd.xlane.f32.xlu0 %v1038
        %v1040 = vpop.xlane.xlu0 %1039
        %v1041 = vsel %vm997, %v1031, 0.0
        %1042 = vadd.xlane.f32.xlu0 %v1041
        %v1043 = vpop.xlane.xlu0 %1042
        %v1044 = vsel %vm997, %v1032, 0.0
        %1045 = vadd.xlane.f32.xlu0 %v1044
        %v1046 = vpop.xlane.xlu0 %1045
        %v1047 = vsel %vm997, %v1033, 0.0
        %1048 = vadd.xlane.f32.xlu0 %v1047
        %v1049 = vpop.xlane.xlu0 %1048
        %v1050 = vsel %vm997, %v1034, 0.0
        %1051 = vadd.xlane.f32.xlu0 %v1050
        %v1052 = vpop.xlane.xlu0 %1051
        %v1053 = vmul.f32 %v1037, %v1016
        %v1054 = vmul.f32 %v1040, %v1016
        %v1055 = vmul.f32 %v1043, %v1016
        %v1056 = vmul.f32 %v1046, %v1016
        %v1057 = vmul.f32 %v1049, %v1016
        %v1058 = vmul.f32 %v1052, %v1016
        %v1059 = vadd.f32 %v1053, 1e-06
        %v1060 = vadd.f32 %v1054, 1e-06
        %v1061 = vadd.f32 %v1055, 1e-06
        %v1062 = vadd.f32 %v1056, 1e-06
        %v1063 = vadd.f32 %v1057, 1e-06
        %v1064 = vadd.f32 %v1058, 1e-06
        %v1065 = vrsqrt.pop %v1059
        %v1066 = vrsqrt.pop %v1060
        %v1067 = vrsqrt.pop %v1061
        %v1068 = vrsqrt.pop %v1062
        %v1069 = vrsqrt.pop %v1063
        %v1070 = vrsqrt.pop %v1064
        %v1071 = vmul.f32 %v1023, %v1065
        %v1072 = vmul.f32 %v1024, %v1066
        %v1073 = vmul.f32 %v1025, %v1067
        %v1074 = vmul.f32 %v1026, %v1068
        %v1075 = vmul.f32 %v1027, %v1069
        %v1076 = vmul.f32 %v1028, %v1070
        %v1078 = vlaneseq
        %v1079 = vshrl.u32 %v1078, 7
        %v1080 = vsub.s32 0, %v1079
        %v1081 = vrot.slane %v995, %v1080
        %v1083 = vmul.f32 %v1071, %v1081
        %v1084 = vmul.f32 %v1072, %v1081
        %v1085 = vmul.f32 %v1073, %v1081
        %v1086 = vmul.f32 %v1074, %v1081
        %v1087 = vmul.f32 %v1075, %v1081
        %v1088 = vmul.f32 %v1076, %v1081
        %v1090 = vlaneseq
        %v1091 = vshrl.u32 %v1090, 7
        %v1092 = vsub.s32 0, %v1091
        %v1093 = vrot.slane %v996, %v1092
        %v1095 = vadd.f32 %v1083, %v1093
        %v1096 = vadd.f32 %v1084, %v1093
        %v1097 = vadd.f32 %v1085, %v1093
        %v1098 = vadd.f32 %v1086, %v1093
        %v1099 = vadd.f32 %v1087, %v1093
        %v1100 = vadd.f32 %v1088, %v1093
        %v1101 = vld [vmem:[%s803] sm:$0xff]
        %v1102 = vld [vmem:[%s803 + $0x8] sm:$0xff]
        %v1103 = vld [vmem:[%s803 + $0x10] sm:$0xff]
        %v1104 = vld [vmem:[%s803 + $0x18] sm:$0xff]
        %v1105 = vld [vmem:[%s806] sm:$0x1]
        %v1107 = vlaneseq
        %v1108 = vshrl.u32 %v1107, 7
        %v1109 = vsub.s32 0, %v1108
        %v1110 = vrot.slane %v1105, %v1109
        %v1113 = vsel %vm997, %v1095, 0
        %v1116 = vsel %vm997, %v1096, 0
        %v1119 = vsel %vm997, %v1097, 0
        %v1122 = vsel %vm997, %v1098, 0
        %v1125 = vsel %vm997, %v1099, 0
        %v1128 = vsel %vm997, %v1100, 0
        %1130 = vmatprep.subr.mxu0 0.0
        %1131 = vmatpush1.msra.mxu0 %v1101
        %1132 = vmatprep.subr.mxu0 0.0
        %1133 = vmatpush1.msra.mxu0 %v1102
        %1134 = vmatprep.subr.mxu0 0.0
        %1135 = vmatpush1.msra.mxu0 %v1103
        %1136 = vmatprep.subr.mxu0 0.0
        %1137 = vmatpush1.msra.mxu0 %v1104
        %1138 = vmatprep.subr.mxu0 0.0
        %1139 = vmatpush1.msra.mxu0 0.0
        %1140 = vmatprep.subr.mxu0 0.0
        %1141 = vmatpush1.msra.mxu0 0.0
        %1142 = vmatprep.subr.mxu0 0.0
        %1143 = vmatpush1.msra.mxu0 0.0
        %1144 = vmatprep.subr.mxu0 0.0
        %1145 = vmatpush1.msra.mxu0 0.0
        %1146 = vmatprep.subr.mxu0 0.0
        %1147 = vmatpush1.msra.mxu0 0.0
        %1148 = vmatprep.subr.mxu0 0.0
        %1149 = vmatpush1.msra.mxu0 0.0
        %1150 = vmatprep.subr.mxu0 0.0
        %1151 = vmatpush1.msra.mxu0 0.0
        %1152 = vmatprep.subr.mxu0 0.0
        %1153 = vmatpush1.msra.mxu0 0.0
        %1154 = vmatprep.subr.mxu0 0.0
        %1155 = vmatpush1.msra.mxu0 0.0
        %1156 = vmatprep.subr.mxu0 0.0
        %1157 = vmatpush1.msra.mxu0 0.0
        %1158 = vmatprep.subr.mxu0 0.0
        %1159 = vmatpush1.msra.mxu0 0.0
        %1160 = vmatprep.subr.mxu0 0.0
        %1161 = vmatpush1.msra.mxu0 0.0
        %1162 = vmatprep.subr.mxu0 0.0
        %1163 = vmatpush1.msra.mxu0 0.0
        %1164 = vmatprep.subr.mxu0 0.0
        %1165 = vmatpush1.msra.mxu0 0.0
        %1166 = vmatprep.subr.mxu0 0.0
        %1167 = vmatpush1.msra.mxu0 0.0
        %1168 = vmatprep.subr.mxu0 0.0
        %1169 = vmatpush1.msra.mxu0 0.0
        %1170 = vmatprep.subr.mxu0 0.0
        %1171 = vmatpush1.msra.mxu0 0.0
        %1172 = vmatprep.subr.mxu0 0.0
        %1173 = vmatpush1.msra.mxu0 0.0
        %1174 = vmatprep.subr.mxu0 0.0
        %1175 = vmatpush1.msra.mxu0 0.0
        %1176 = vmatprep.subr.mxu0 0.0
        %1177 = vmatpush1.msra.mxu0 0.0
        %1178 = vmatprep.subr.mxu0 0.0
        %1179 = vmatpush1.msra.mxu0 0.0
        %1180 = vmatprep.subr.mxu0 0.0
        %1181 = vmatpush1.msra.mxu0 0.0
        %1182 = vmatprep.subr.mxu0 0.0
        %1183 = vmatpush1.msra.mxu0 0.0
        %1184 = vmatprep.subr.mxu0 0.0
        %1185 = vmatpush1.msra.mxu0 0.0
        %1186 = vmatprep.subr.mxu0 0.0
        %1187 = vmatpush1.msra.mxu0 0.0
        %1188 = vmatprep.subr.mxu0 0.0
        %1189 = vmatpush1.msra.mxu0 0.0
        %1190 = vmatprep.subr.mxu0 0.0
        %1191 = vmatpush1.msra.mxu0 0.0
        %1192 = vmatprep.subr.mxu0 0.0
        %1193 = vmatpush1.msra.mxu0 0.0
        %1194 = vmatprep.mubr.f32.mxu0 0.0
        %1195 = vmatmul.mubr.f32.gmra.mrb[0].mxu0 %v1113
        %v1196 = vpop.f32.mrb[0].mxu0
        %v1197 = vadd.f32 %v1110, %v1196
        %v1198 = vpop.f32.mrb[0].mxu0
        %1199 = vmatprep.mubr.f32.mxu0 0.0
        %1200 = vmatmul.mubr.f32.gmra.mrb[0].mxu0 %v1116
        %v1201 = vpop.f32.mrb[0].mxu0
        %v1202 = vadd.f32 %v1110, %v1201
        %v1203 = vpop.f32.mrb[0].mxu0
        %1204 = vmatprep.mubr.f32.mxu0 0.0
        %1205 = vmatmul.mubr.f32.gmra.mrb[0].mxu0 %v1119
        %v1206 = vpop.f32.mrb[0].mxu0
        %v1207 = vadd.f32 %v1110, %v1206
        %v1208 = vpop.f32.mrb[0].mxu0
        %1209 = vmatprep.mubr.f32.mxu0 0.0
        %1210 = vmatmul.mubr.f32.gmra.mrb[0].mxu0 %v1122
        %v1211 = vpop.f32.mrb[0].mxu0
        %v1212 = vadd.f32 %v1110, %v1211
        %v1213 = vpop.f32.mrb[0].mxu0
        %1214 = vmatprep.mubr.f32.mxu0 0.0
        %1215 = vmatmul.mubr.f32.gmra.mrb[0].mxu0 %v1125
        %v1216 = vpop.f32.mrb[0].mxu0
        %v1217 = vadd.f32 %v1110, %v1216
        %v1218 = vpop.f32.mrb[0].mxu0
        %1219 = vmatprep.mubr.f32.mxu0 0.0
        %1220 = vmatmul.mubr.f32.gmra.mrb[0].mxu0 %v1128
        %v1221 = vpop.f32.mrb[0].mxu0
        %v1222 = vadd.f32 %v1110, %v1221
        %v1223 = vpop.f32.mrb[0].mxu0
        %1224 = vdwg.mxu0
        %1228 = vrot.lane.b32.xlu0 %v1197, 96
        %v1229 = vpop.permute.xlu0 %1228
        %1230 = vrot.lane.b32.xlu0 %v1202, 96
        %v1231 = vpop.permute.xlu0 %1230
        %1232 = vrot.lane.b32.xlu0 %v1207, 96
        %v1233 = vpop.permute.xlu0 %1232
        %vm1234 = vcmask 64512
        %v1235 = vsel %vm1234, %v1197, 0
        %v1237 = vsel %vm1234, %v1202, 0
        %v1239 = vsel %vm1234, %v1207, 0
        %v1241 = vsel %vm1234, %v1229, 0
        %v1243 = vsel %vm1234, %v1231, 0
        %v1245 = vsel %vm1234, %v1233, 0
        %1247 = vmatprep.subr.mxu0 0.0
        %1248 = vmatpush1.xpose.msra.mxu0 %v1241
        %1249 = vmatprep.subr.mxu0 0.0
        %1250 = vmatpush1.xpose.msra.mxu0 %v1243
        %1251 = vmatprep.subr.mxu0 0.0
        %1252 = vmatpush1.xpose.msra.mxu0 %v1245
        %1253 = vmatprep.subr.mxu0 0.0
        %1254 = vmatpush1.xpose.msra.mxu0 0.0
        %1255 = vmatprep.subr.mxu0 0.0
        %1256 = vmatpush1.xpose.msra.mxu0 0.0
        %1257 = vmatprep.subr.mxu0 0.0
        %1258 = vmatpush1.xpose.msra.mxu0 0.0
        %1259 = vmatprep.subr.mxu0 0.0
        %1260 = vmatpush1.xpose.msra.mxu0 0.0
        %1261 = vmatprep.subr.mxu0 0.0
        %1262 = vmatpush1.xpose.msra.mxu0 0.0
        %1263 = vmatprep.subr.mxu0 0.0
        %1264 = vmatpush1.xpose.msra.mxu0 0.0
        %1265 = vmatprep.subr.mxu0 0.0
        %1266 = vmatpush1.xpose.msra.mxu0 0.0
        %1267 = vmatprep.subr.mxu0 0.0
        %1268 = vmatpush1.xpose.msra.mxu0 0.0
        %1269 = vmatprep.subr.mxu0 0.0
        %1270 = vmatpush1.xpose.msra.mxu0 0.0
        %1271 = vmatprep.subr.mxu0 0.0
        %1272 = vmatpush1.xpose.msra.mxu0 0.0
        %1273 = vmatprep.subr.mxu0 0.0
        %1274 = vmatpush1.xpose.msra.mxu0 0.0
        %1275 = vmatprep.subr.mxu0 0.0
        %1276 = vmatpush1.xpose.msra.mxu0 0.0
        %1277 = vmatprep.subr.mxu0 0.0
        %1278 = vmatpush1.xpose.msra.mxu0 0.0
        %1279 = vmatprep.subr.mxu0 0.0
        %1280 = vmatpush1.xpose.msra.mxu0 0.0
        %1281 = vmatprep.subr.mxu0 0.0
        %1282 = vmatpush1.xpose.msra.mxu0 0.0
        %1283 = vmatprep.subr.mxu0 0.0
        %1284 = vmatpush1.xpose.msra.mxu0 0.0
        %1285 = vmatprep.subr.mxu0 0.0
        %1286 = vmatpush1.xpose.msra.mxu0 0.0
        %1287 = vmatprep.subr.mxu0 0.0
        %1288 = vmatpush1.xpose.msra.mxu0 0.0
        %1289 = vmatprep.subr.mxu0 0.0
        %1290 = vmatpush1.xpose.msra.mxu0 0.0
        %1291 = vmatprep.subr.mxu0 0.0
        %1292 = vmatpush1.xpose.msra.mxu0 0.0
        %1293 = vmatprep.subr.mxu0 0.0
        %1294 = vmatpush1.xpose.msra.mxu0 0.0
        %1295 = vmatprep.subr.mxu0 0.0
        %1296 = vmatpush1.xpose.msra.mxu0 0.0
        %1297 = vmatprep.subr.mxu0 0.0
        %1298 = vmatpush1.xpose.msra.mxu0 0.0
        %1299 = vmatprep.subr.mxu0 0.0
        %1300 = vmatpush1.xpose.msra.mxu0 0.0
        %1301 = vmatprep.subr.mxu0 0.0
        %1302 = vmatpush1.xpose.msra.mxu0 0.0
        %1303 = vmatprep.subr.mxu0 0.0
        %1304 = vmatpush1.xpose.msra.mxu0 0.0
        %1305 = vmatprep.subr.mxu0 0.0
        %1306 = vmatpush1.xpose.msra.mxu0 0.0
        %1307 = vmatprep.subr.mxu0 0.0
        %1308 = vmatpush1.xpose.msra.mxu0 0.0
        %1309 = vmatprep.subr.mxu0 0.0
        %1310 = vmatpush1.xpose.msra.mxu0 0.0
        %1311 = vmatprep.mubr.f32.mxu0 0.0
        %1312 = vmatmul.mubr.f32.gmra.mrb[0].mxu0 %v1235
        %v1313 = vpop.f32.mrb[0].mxu0
        %v1314 = vadd.f32 0.0, %v1313
        %v1315 = vpop.f32.mrb[0].mxu0
        %1316 = vmatprep.mubr.f32.mxu0 0.0
        %1317 = vmatmul.mubr.f32.gmra.mrb[0].mxu0 %v1237
        %v1318 = vpop.f32.mrb[0].mxu0
        %v1319 = vadd.f32 0.0, %v1318
        %v1320 = vpop.f32.mrb[0].mxu0
        %1321 = vmatprep.mubr.f32.mxu0 0.0
        %1322 = vmatmul.mubr.f32.gmra.mrb[0].mxu0 %v1239
        %v1323 = vpop.f32.mrb[0].mxu0
        %v1324 = vadd.f32 0.0, %v1323
        %v1325 = vpop.f32.mrb[0].mxu0
        %1326 = vdwg.mxu0
        %1330 = vrot.lane.b32.xlu0 %v1212, 96
        %v1331 = vpop.permute.xlu0 %1330
        %1332 = vrot.lane.b32.xlu0 %v1217, 96
        %v1333 = vpop.permute.xlu0 %1332
        %1334 = vrot.lane.b32.xlu0 %v1222, 96
        %v1335 = vpop.permute.xlu0 %1334
        %v1336 = vsel %vm1234, %v1212, 0
        %v1338 = vsel %vm1234, %v1217, 0
        %v1340 = vsel %vm1234, %v1222, 0
        %v1342 = vsel %vm1234, %v1331, 0
        %v1344 = vsel %vm1234, %v1333, 0
        %v1346 = vsel %vm1234, %v1335, 0
        %1348 = vmatprep.subr.mxu0 0.0
        %1349 = vmatpush1.xpose.msra.mxu0 %v1342
        %1350 = vmatprep.subr.mxu0 0.0
        %1351 = vmatpush1.xpose.msra.mxu0 %v1344
        %1352 = vmatprep.subr.mxu0 0.0
        %1353 = vmatpush1.xpose.msra.mxu0 %v1346
        %1354 = vmatprep.subr.mxu0 0.0
        %1355 = vmatpush1.xpose.msra.mxu0 0.0
        %1356 = vmatprep.subr.mxu0 0.0
        %1357 = vmatpush1.xpose.msra.mxu0 0.0
        %1358 = vmatprep.subr.mxu0 0.0
        %1359 = vmatpush1.xpose.msra.mxu0 0.0
        %1360 = vmatprep.subr.mxu0 0.0
        %1361 = vmatpush1.xpose.msra.mxu0 0.0
        %1362 = vmatprep.subr.mxu0 0.0
        %1363 = vmatpush1.xpose.msra.mxu0 0.0
        %1364 = vmatprep.subr.mxu0 0.0
        %1365 = vmatpush1.xpose.msra.mxu0 0.0
        %1366 = vmatprep.subr.mxu0 0.0
        %1367 = vmatpush1.xpose.msra.mxu0 0.0
        %1368 = vmatprep.subr.mxu0 0.0
        %1369 = vmatpush1.xpose.msra.mxu0 0.0
        %1370 = vmatprep.subr.mxu0 0.0
        %1371 = vmatpush1.xpose.msra.mxu0 0.0
        %1372 = vmatprep.subr.mxu0 0.0
        %1373 = vmatpush1.xpose.msra.mxu0 0.0
        %1374 = vmatprep.subr.mxu0 0.0
        %1375 = vmatpush1.xpose.msra.mxu0 0.0
        %1376 = vmatprep.subr.mxu0 0.0
        %1377 = vmatpush1.xpose.msra.mxu0 0.0
        %1378 = vmatprep.subr.mxu0 0.0
        %1379 = vmatpush1.xpose.msra.mxu0 0.0
        %1380 = vmatprep.subr.mxu0 0.0
        %1381 = vmatpush1.xpose.msra.mxu0 0.0
        %1382 = vmatprep.subr.mxu0 0.0
        %1383 = vmatpush1.xpose.msra.mxu0 0.0
        %1384 = vmatprep.subr.mxu0 0.0
        %1385 = vmatpush1.xpose.msra.mxu0 0.0
        %1386 = vmatprep.subr.mxu0 0.0
        %1387 = vmatpush1.xpose.msra.mxu0 0.0
        %1388 = vmatprep.subr.mxu0 0.0
        %1389 = vmatpush1.xpose.msra.mxu0 0.0
        %1390 = vmatprep.subr.mxu0 0.0
        %1391 = vmatpush1.xpose.msra.mxu0 0.0
        %1392 = vmatprep.subr.mxu0 0.0
        %1393 = vmatpush1.xpose.msra.mxu0 0.0
        %1394 = vmatprep.subr.mxu0 0.0
        %1395 = vmatpush1.xpose.msra.mxu0 0.0
        %1396 = vmatprep.subr.mxu0 0.0
        %1397 = vmatpush1.xpose.msra.mxu0 0.0
        %1398 = vmatprep.subr.mxu0 0.0
        %1399 = vmatpush1.xpose.msra.mxu0 0.0
        %1400 = vmatprep.subr.mxu0 0.0
        %1401 = vmatpush1.xpose.msra.mxu0 0.0
        %1402 = vmatprep.subr.mxu0 0.0
        %1403 = vmatpush1.xpose.msra.mxu0 0.0
        %1404 = vmatprep.subr.mxu0 0.0
        %1405 = vmatpush1.xpose.msra.mxu0 0.0
        %1406 = vmatprep.subr.mxu0 0.0
        %1407 = vmatpush1.xpose.msra.mxu0 0.0
        %1408 = vmatprep.subr.mxu0 0.0
        %1409 = vmatpush1.xpose.msra.mxu0 0.0
        %1410 = vmatprep.subr.mxu0 0.0
        %1411 = vmatpush1.xpose.msra.mxu0 0.0
        %1412 = vmatprep.mubr.f32.mxu0 0.0
        %1413 = vmatmul.mubr.f32.gmra.mrb[0].mxu0 %v1336
        %v1414 = vpop.f32.mrb[0].mxu0
        %v1415 = vadd.f32 0.0, %v1414
        %v1416 = vpop.f32.mrb[0].mxu0
        %1417 = vmatprep.mubr.f32.mxu0 0.0
        %1418 = vmatmul.mubr.f32.gmra.mrb[0].mxu0 %v1338
        %v1419 = vpop.f32.mrb[0].mxu0
        %v1420 = vadd.f32 0.0, %v1419
        %v1421 = vpop.f32.mrb[0].mxu0
        %1422 = vmatprep.mubr.f32.mxu0 0.0
        %1423 = vmatmul.mubr.f32.gmra.mrb[0].mxu0 %v1340
        %v1424 = vpop.f32.mrb[0].mxu0
        %v1425 = vadd.f32 0.0, %v1424
        %v1426 = vpop.f32.mrb[0].mxu0
        %1427 = vdwg.mxu0
        %v1428 = vmul.f32 %v1314, 0.35355338
        %v1429 = vmul.f32 %v1319, 0.35355338
        %v1430 = vmul.f32 %v1324, 0.35355338
        %v1431 = vmul.f32 %v1415, 0.35355338
        %v1432 = vmul.f32 %v1420, 0.35355338
        %v1433 = vmul.f32 %v1425, 0.35355338
        %v1434 = vsel %vm994, 1, 0
        %vm1435 = vcmp.eq.s32.totalorder %v1434, 1
        %v1436 = vsel %vm1435, %v1428, -1e+30
        %v1437 = vsel %vm1435, %v1429, -1e+30
        %v1438 = vsel %vm1435, %v1430, -1e+30
        %v1439 = vsel %vm1435, %v1431, -1e+30
        %v1440 = vsel %vm1435, %v1432, -1e+30
        %v1441 = vsel %vm1435, %v1433, -1e+30
        %vm1442 = vcmask 195584
        %v1443 = vsel %vm1442, %v1436, -inf
        %1444 = vmax.xlane.f32.xlu0 %v1443
        %v1445 = vpop.xlane.xlu0 %1444
        %v1446 = vsel %vm1442, %v1437, -inf
        %1447 = vmax.xlane.f32.xlu0 %v1446
        %v1448 = vpop.xlane.xlu0 %1447
        %v1449 = vsel %vm1442, %v1438, -inf
        %1450 = vmax.xlane.f32.xlu0 %v1449
        %v1451 = vpop.xlane.xlu0 %1450
        %v1452 = vsel %vm1442, %v1439, -inf
        %1453 = vmax.xlane.f32.xlu0 %v1452
        %v1454 = vpop.xlane.xlu0 %1453
        %v1455 = vsel %vm1442, %v1440, -inf
        %1456 = vmax.xlane.f32.xlu0 %v1455
        %v1457 = vpop.xlane.xlu0 %1456
        %v1458 = vsel %vm1442, %v1441, -inf
        %1459 = vmax.xlane.f32.xlu0 %v1458
        %v1460 = vpop.xlane.xlu0 %1459
        %v1461 = vsub.f32 %v1436, %v1445
        %v1462 = vsub.f32 %v1437, %v1448
        %v1463 = vsub.f32 %v1438, %v1451
        %v1464 = vsub.f32 %v1439, %v1454
        %v1465 = vsub.f32 %v1440, %v1457
        %v1466 = vsub.f32 %v1441, %v1460
        %v1467 = vmul.f32 %v1461, 1.442695
        %v1468 = vpow.pop %v1467
        %v1469 = vmul.f32 %v1462, 1.442695
        %v1470 = vpow.pop %v1469
        %v1471 = vmul.f32 %v1463, 1.442695
        %v1472 = vpow.pop %v1471
        %v1473 = vmul.f32 %v1464, 1.442695
        %v1474 = vpow.pop %v1473
        %v1475 = vmul.f32 %v1465, 1.442695
        %v1476 = vpow.pop %v1475
        %v1477 = vmul.f32 %v1466, 1.442695
        %v1478 = vpow.pop %v1477
        %v1479 = vsel %vm1442, %v1468, 0.0
        %1480 = vadd.xlane.f32.xlu0 %v1479
        %v1481 = vpop.xlane.xlu0 %1480
        %v1482 = vsel %vm1442, %v1470, 0.0
        %1483 = vadd.xlane.f32.xlu0 %v1482
        %v1484 = vpop.xlane.xlu0 %1483
        %v1485 = vsel %vm1442, %v1472, 0.0
        %1486 = vadd.xlane.f32.xlu0 %v1485
        %v1487 = vpop.xlane.xlu0 %1486
        %v1488 = vsel %vm1442, %v1474, 0.0
        %1489 = vadd.xlane.f32.xlu0 %v1488
        %v1490 = vpop.xlane.xlu0 %1489
        %v1491 = vsel %vm1442, %v1476, 0.0
        %1492 = vadd.xlane.f32.xlu0 %v1491
        %v1493 = vpop.xlane.xlu0 %1492
        %v1494 = vsel %vm1442, %v1478, 0.0
        %1495 = vadd.xlane.f32.xlu0 %v1494
        %v1496 = vpop.xlane.xlu0 %1495
        %v1497 = vrcp.pop %v1481
        %v1498 = vmul.f32 %v1468, %v1497
        %v1499 = vrcp.pop %v1484
        %v1500 = vmul.f32 %v1470, %v1499
        %v1501 = vrcp.pop %v1487
        %v1502 = vmul.f32 %v1472, %v1501
        %v1503 = vrcp.pop %v1490
        %v1504 = vmul.f32 %v1474, %v1503
        %v1505 = vrcp.pop %v1493
        %v1506 = vmul.f32 %v1476, %v1505
        %v1507 = vrcp.pop %v1496
        %v1508 = vmul.f32 %v1478, %v1507
        %1509 = vrot.lane.b32.xlu0 %v1197, 64
        %v1510 = vpop.permute.xlu0 %1509
        %1511 = vrot.lane.b32.xlu0 %v1202, 64
        %v1512 = vpop.permute.xlu0 %1511
        %1513 = vrot.lane.b32.xlu0 %v1207, 64
        %v1514 = vpop.permute.xlu0 %1513
        %v1519 = vsel %vm1442, %v1498, 0
        %v1522 = vsel %vm1442, %v1500, 0
        %v1525 = vsel %vm1442, %v1502, 0
        %1527 = vmatprep.subr.mxu0 0.0
        %1528 = vmatpush1.msra.mxu0 %v1510
        %1529 = vmatprep.subr.mxu0 0.0
        %1530 = vmatpush1.msra.mxu0 %v1512
        %1531 = vmatprep.subr.mxu0 0.0
        %1532 = vmatpush1.msra.mxu0 %v1514
        %1533 = vmatprep.subr.mxu0 0.0
        %1534 = vmatpush1.msra.mxu0 0.0
        %1535 = vmatprep.subr.mxu0 0.0
        %1536 = vmatpush1.msra.mxu0 0.0
        %1537 = vmatprep.subr.mxu0 0.0
        %1538 = vmatpush1.msra.mxu0 0.0
        %1539 = vmatprep.subr.mxu0 0.0
        %1540 = vmatpush1.msra.mxu0 0.0
        %1541 = vmatprep.subr.mxu0 0.0
        %1542 = vmatpush1.msra.mxu0 0.0
        %1543 = vmatprep.subr.mxu0 0.0
        %1544 = vmatpush1.msra.mxu0 0.0
        %1545 = vmatprep.subr.mxu0 0.0
        %1546 = vmatpush1.msra.mxu0 0.0
        %1547 = vmatprep.subr.mxu0 0.0
        %1548 = vmatpush1.msra.mxu0 0.0
        %1549 = vmatprep.subr.mxu0 0.0
        %1550 = vmatpush1.msra.mxu0 0.0
        %1551 = vmatprep.subr.mxu0 0.0
        %1552 = vmatpush1.msra.mxu0 0.0
        %1553 = vmatprep.subr.mxu0 0.0
        %1554 = vmatpush1.msra.mxu0 0.0
        %1555 = vmatprep.subr.mxu0 0.0
        %1556 = vmatpush1.msra.mxu0 0.0
        %1557 = vmatprep.subr.mxu0 0.0
        %1558 = vmatpush1.msra.mxu0 0.0
        %1559 = vmatprep.subr.mxu0 0.0
        %1560 = vmatpush1.msra.mxu0 0.0
        %1561 = vmatprep.subr.mxu0 0.0
        %1562 = vmatpush1.msra.mxu0 0.0
        %1563 = vmatprep.subr.mxu0 0.0
        %1564 = vmatpush1.msra.mxu0 0.0
        %1565 = vmatprep.subr.mxu0 0.0
        %1566 = vmatpush1.msra.mxu0 0.0
        %1567 = vmatprep.subr.mxu0 0.0
        %1568 = vmatpush1.msra.mxu0 0.0
        %1569 = vmatprep.subr.mxu0 0.0
        %1570 = vmatpush1.msra.mxu0 0.0
        %1571 = vmatprep.subr.mxu0 0.0
        %1572 = vmatpush1.msra.mxu0 0.0
        %1573 = vmatprep.subr.mxu0 0.0
        %1574 = vmatpush1.msra.mxu0 0.0
        %1575 = vmatprep.subr.mxu0 0.0
        %1576 = vmatpush1.msra.mxu0 0.0
        %1577 = vmatprep.subr.mxu0 0.0
        %1578 = vmatpush1.msra.mxu0 0.0
        %1579 = vmatprep.subr.mxu0 0.0
        %1580 = vmatpush1.msra.mxu0 0.0
        %1581 = vmatprep.subr.mxu0 0.0
        %1582 = vmatpush1.msra.mxu0 0.0
        %1583 = vmatprep.subr.mxu0 0.0
        %1584 = vmatpush1.msra.mxu0 0.0
        %1585 = vmatprep.subr.mxu0 0.0
        %1586 = vmatpush1.msra.mxu0 0.0
        %1587 = vmatprep.subr.mxu0 0.0
        %1588 = vmatpush1.msra.mxu0 0.0
        %1589 = vmatprep.subr.mxu0 0.0
        %1590 = vmatpush1.msra.mxu0 0.0
        %1591 = vmatprep.mubr.f32.mxu0 0.0
        %1592 = vmatmul.mubr.f32.gmra.mrb[0].mxu0 %v1519
        %v1593 = vpop.f32.mrb[0].mxu0
        %v1594 = vadd.f32 0.0, %v1593
        %v1595 = vpop.f32.mrb[0].mxu0
        %1596 = vmatprep.mubr.f32.mxu0 0.0
        %1597 = vmatmul.mubr.f32.gmra.mrb[0].mxu0 %v1522
        %v1598 = vpop.f32.mrb[0].mxu0
        %v1599 = vadd.f32 0.0, %v1598
        %v1600 = vpop.f32.mrb[0].mxu0
        %1601 = vmatprep.mubr.f32.mxu0 0.0
        %1602 = vmatmul.mubr.f32.gmra.mrb[0].mxu0 %v1525
        %v1603 = vpop.f32.mrb[0].mxu0
        %v1604 = vadd.f32 0.0, %v1603
        %v1605 = vpop.f32.mrb[0].mxu0
        %1606 = vdwg.mxu0
        %1607 = vrot.lane.b32.xlu0 %v1212, 64
        %v1608 = vpop.permute.xlu0 %1607
        %1609 = vrot.lane.b32.xlu0 %v1217, 64
        %v1610 = vpop.permute.xlu0 %1609
        %1611 = vrot.lane.b32.xlu0 %v1222, 64
        %v1612 = vpop.permute.xlu0 %1611
        %v1617 = vsel %vm1442, %v1504, 0
        %v1620 = vsel %vm1442, %v1506, 0
        %v1623 = vsel %vm1442, %v1508, 0
        %1625 = vmatprep.subr.mxu0 0.0
        %1626 = vmatpush1.msra.mxu0 %v1608
        %1627 = vmatprep.subr.mxu0 0.0
        %1628 = vmatpush1.msra.mxu0 %v1610
        %1629 = vmatprep.subr.mxu0 0.0
        %1630 = vmatpush1.msra.mxu0 %v1612
        %1631 = vmatprep.subr.mxu0 0.0
        %1632 = vmatpush1.msra.mxu0 0.0
        %1633 = vmatprep.subr.mxu0 0.0
        %1634 = vmatpush1.msra.mxu0 0.0
        %1635 = vmatprep.subr.mxu0 0.0
        %1636 = vmatpush1.msra.mxu0 0.0
        %1637 = vmatprep.subr.mxu0 0.0
        %1638 = vmatpush1.msra.mxu0 0.0
        %1639 = vmatprep.subr.mxu0 0.0
        %1640 = vmatpush1.msra.mxu0 0.0
        %1641 = vmatprep.subr.mxu0 0.0
        %1642 = vmatpush1.msra.mxu0 0.0
        %1643 = vmatprep.subr.mxu0 0.0
        %1644 = vmatpush1.msra.mxu0 0.0
        %1645 = vmatprep.subr.mxu0 0.0
        %1646 = vmatpush1.msra.mxu0 0.0
        %1647 = vmatprep.subr.mxu0 0.0
        %1648 = vmatpush1.msra.mxu0 0.0
        %1649 = vmatprep.subr.mxu0 0.0
        %1650 = vmatpush1.msra.mxu0 0.0
        %1651 = vmatprep.subr.mxu0 0.0
        %1652 = vmatpush1.msra.mxu0 0.0
        %1653 = vmatprep.subr.mxu0 0.0
        %1654 = vmatpush1.msra.mxu0 0.0
        %1655 = vmatprep.subr.mxu0 0.0
        %1656 = vmatpush1.msra.mxu0 0.0
        %1657 = vmatprep.subr.mxu0 0.0
        %1658 = vmatpush1.msra.mxu0 0.0
        %1659 = vmatprep.subr.mxu0 0.0
        %1660 = vmatpush1.msra.mxu0 0.0
        %1661 = vmatprep.subr.mxu0 0.0
        %1662 = vmatpush1.msra.mxu0 0.0
        %1663 = vmatprep.subr.mxu0 0.0
        %1664 = vmatpush1.msra.mxu0 0.0
        %1665 = vmatprep.subr.mxu0 0.0
        %1666 = vmatpush1.msra.mxu0 0.0
        %1667 = vmatprep.subr.mxu0 0.0
        %1668 = vmatpush1.msra.mxu0 0.0
        %1669 = vmatprep.subr.mxu0 0.0
        %1670 = vmatpush1.msra.mxu0 0.0
        %1671 = vmatprep.subr.mxu0 0.0
        %1672 = vmatpush1.msra.mxu0 0.0
        %1673 = vmatprep.subr.mxu0 0.0
        %1674 = vmatpush1.msra.mxu0 0.0
        %1675 = vmatprep.subr.mxu0 0.0
        %1676 = vmatpush1.msra.mxu0 0.0
        %1677 = vmatprep.subr.mxu0 0.0
        %1678 = vmatpush1.msra.mxu0 0.0
        %1679 = vmatprep.subr.mxu0 0.0
        %1680 = vmatpush1.msra.mxu0 0.0
        %1681 = vmatprep.subr.mxu0 0.0
        %1682 = vmatpush1.msra.mxu0 0.0
        %1683 = vmatprep.subr.mxu0 0.0
        %1684 = vmatpush1.msra.mxu0 0.0
        %1685 = vmatprep.subr.mxu0 0.0
        %1686 = vmatpush1.msra.mxu0 0.0
        %1687 = vmatprep.subr.mxu0 0.0
        %1688 = vmatpush1.msra.mxu0 0.0
        %1689 = vmatprep.mubr.f32.mxu0 0.0
        %1690 = vmatmul.mubr.f32.gmra.mrb[0].mxu0 %v1617
        %v1691 = vpop.f32.mrb[0].mxu0
        %v1692 = vadd.f32 0.0, %v1691
        %v1693 = vpop.f32.mrb[0].mxu0
        %1694 = vmatprep.mubr.f32.mxu0 0.0
        %1695 = vmatmul.mubr.f32.gmra.mrb[0].mxu0 %v1620
        %v1696 = vpop.f32.mrb[0].mxu0
        %v1697 = vadd.f32 0.0, %v1696
        %v1698 = vpop.f32.mrb[0].mxu0
        %1699 = vmatprep.mubr.f32.mxu0 0.0
        %1700 = vmatmul.mubr.f32.gmra.mrb[0].mxu0 %v1623
        %v1701 = vpop.f32.mrb[0].mxu0
        %v1702 = vadd.f32 0.0, %v1701
        %v1703 = vpop.f32.mrb[0].mxu0
        %1704 = vdwg.mxu0
        %1705 = vrot.lane.b32.xlu0 %v1197, 120
        %v1706 = vpop.permute.xlu0 %1705
        %1707 = vrot.lane.b32.xlu0 %v1202, 120
        %v1708 = vpop.permute.xlu0 %1707
        %1709 = vrot.lane.b32.xlu0 %v1207, 120
        %v1710 = vpop.permute.xlu0 %1709
        %1711 = vrot.lane.b32.xlu0 %v1197, 88
        %v1712 = vpop.permute.xlu0 %1711
        %1713 = vrot.lane.b32.xlu0 %v1202, 88
        %v1714 = vpop.permute.xlu0 %1713
        %1715 = vrot.lane.b32.xlu0 %v1207, 88
        %v1716 = vpop.permute.xlu0 %1715
        %v1717 = vsel %vm1234, %v1706, 0
        %v1719 = vsel %vm1234, %v1708, 0
        %v1721 = vsel %vm1234, %v1710, 0
        %v1723 = vsel %vm1234, %v1712, 0
        %v1725 = vsel %vm1234, %v1714, 0
        %v1727 = vsel %vm1234, %v1716, 0
        %1729 = vmatprep.subr.mxu0 0.0
        %1730 = vmatpush1.xpose.msra.mxu0 %v1723
        %1731 = vmatprep.subr.mxu0 0.0
        %1732 = vmatpush1.xpose.msra.mxu0 %v1725
        %1733 = vmatprep.subr.mxu0 0.0
        %1734 = vmatpush1.xpose.msra.mxu0 %v1727
        %1735 = vmatprep.subr.mxu0 0.0
        %1736 = vmatpush1.xpose.msra.mxu0 0.0
        %1737 = vmatprep.subr.mxu0 0.0
        %1738 = vmatpush1.xpose.msra.mxu0 0.0
        %1739 = vmatprep.subr.mxu0 0.0
        %1740 = vmatpush1.xpose.msra.mxu0 0.0
        %1741 = vmatprep.subr.mxu0 0.0
        %1742 = vmatpush1.xpose.msra.mxu0 0.0
        %1743 = vmatprep.subr.mxu0 0.0
        %1744 = vmatpush1.xpose.msra.mxu0 0.0
        %1745 = vmatprep.subr.mxu0 0.0
        %1746 = vmatpush1.xpose.msra.mxu0 0.0
        %1747 = vmatprep.subr.mxu0 0.0
        %1748 = vmatpush1.xpose.msra.mxu0 0.0
        %1749 = vmatprep.subr.mxu0 0.0
        %1750 = vmatpush1.xpose.msra.mxu0 0.0
        %1751 = vmatprep.subr.mxu0 0.0
        %1752 = vmatpush1.xpose.msra.mxu0 0.0
        %1753 = vmatprep.subr.mxu0 0.0
        %1754 = vmatpush1.xpose.msra.mxu0 0.0
        %1755 = vmatprep.subr.mxu0 0.0
        %1756 = vmatpush1.xpose.msra.mxu0 0.0
        %1757 = vmatprep.subr.mxu0 0.0
        %1758 = vmatpush1.xpose.msra.mxu0 0.0
        %1759 = vmatprep.subr.mxu0 0.0
        %1760 = vmatpush1.xpose.msra.mxu0 0.0
        %1761 = vmatprep.subr.mxu0 0.0
        %1762 = vmatpush1.xpose.msra.mxu0 0.0
        %1763 = vmatprep.subr.mxu0 0.0
        %1764 = vmatpush1.xpose.msra.mxu0 0.0
        %1765 = vmatprep.subr.mxu0 0.0
        %1766 = vmatpush1.xpose.msra.mxu0 0.0
        %1767 = vmatprep.subr.mxu0 0.0
        %1768 = vmatpush1.xpose.msra.mxu0 0.0
        %1769 = vmatprep.subr.mxu0 0.0
        %1770 = vmatpush1.xpose.msra.mxu0 0.0
        %1771 = vmatprep.subr.mxu0 0.0
        %1772 = vmatpush1.xpose.msra.mxu0 0.0
        %1773 = vmatprep.subr.mxu0 0.0
        %1774 = vmatpush1.xpose.msra.mxu0 0.0
        %1775 = vmatprep.subr.mxu0 0.0
        %1776 = vmatpush1.xpose.msra.mxu0 0.0
        %1777 = vmatprep.subr.mxu0 0.0
        %1778 = vmatpush1.xpose.msra.mxu0 0.0
        %1779 = vmatprep.subr.mxu0 0.0
        %1780 = vmatpush1.xpose.msra.mxu0 0.0
        %1781 = vmatprep.subr.mxu0 0.0
        %1782 = vmatpush1.xpose.msra.mxu0 0.0
        %1783 = vmatprep.subr.mxu0 0.0
        %1784 = vmatpush1.xpose.msra.mxu0 0.0
        %1785 = vmatprep.subr.mxu0 0.0
        %1786 = vmatpush1.xpose.msra.mxu0 0.0
        %1787 = vmatprep.subr.mxu0 0.0
        %1788 = vmatpush1.xpose.msra.mxu0 0.0
        %1789 = vmatprep.subr.mxu0 0.0
        %1790 = vmatpush1.xpose.msra.mxu0 0.0
        %1791 = vmatprep.subr.mxu0 0.0
        %1792 = vmatpush1.xpose.msra.mxu0 0.0
        %1793 = vmatprep.mubr.f32.mxu0 0.0
        %1794 = vmatmul.mubr.f32.gmra.mrb[0].mxu0 %v1717
        %v1795 = vpop.f32.mrb[0].mxu0
        %v1796 = vadd.f32 0.0, %v1795
        %v1797 = vpop.f32.mrb[0].mxu0
        %1798 = vmatprep.mubr.f32.mxu0 0.0
        %1799 = vmatmul.mubr.f32.gmra.mrb[0].mxu0 %v1719
        %v1800 = vpop.f32.mrb[0].mxu0
        %v1801 = vadd.f32 0.0, %v1800
        %v1802 = vpop.f32.mrb[0].mxu0
        %1803 = vmatprep.mubr.f32.mxu0 0.0
        %1804 = vmatmul.mubr.f32.gmra.mrb[0].mxu0 %v1721
        %v1805 = vpop.f32.mrb[0].mxu0
        %v1806 = vadd.f32 0.0, %v1805
        %v1807 = vpop.f32.mrb[0].mxu0
        %1808 = vdwg.mxu0
        %1809 = vrot.lane.b32.xlu0 %v1212, 120
        %v1810 = vpop.permute.xlu0 %1809
        %1811 = vrot.lane.b32.xlu0 %v1217, 120
        %v1812 = vpop.permute.xlu0 %1811
        %1813 = vrot.lane.b32.xlu0 %v1222, 120
        %v1814 = vpop.permute.xlu0 %1813
        %1815 = vrot.lane.b32.xlu0 %v1212, 88
        %v1816 = vpop.permute.xlu0 %1815
        %1817 = vrot.lane.b32.xlu0 %v1217, 88
        %v1818 = vpop.permute.xlu0 %1817
        %1819 = vrot.lane.b32.xlu0 %v1222, 88
        %v1820 = vpop.permute.xlu0 %1819
        %v1821 = vsel %vm1234, %v1810, 0
        %v1823 = vsel %vm1234, %v1812, 0
        %v1825 = vsel %vm1234, %v1814, 0
        %v1827 = vsel %vm1234, %v1816, 0
        %v1829 = vsel %vm1234, %v1818, 0
        %v1831 = vsel %vm1234, %v1820, 0
        %1833 = vmatprep.subr.mxu0 0.0
        %1834 = vmatpush1.xpose.msra.mxu0 %v1827
        %1835 = vmatprep.subr.mxu0 0.0
        %1836 = vmatpush1.xpose.msra.mxu0 %v1829
        %1837 = vmatprep.subr.mxu0 0.0
        %1838 = vmatpush1.xpose.msra.mxu0 %v1831
        %1839 = vmatprep.subr.mxu0 0.0
        %1840 = vmatpush1.xpose.msra.mxu0 0.0
        %1841 = vmatprep.subr.mxu0 0.0
        %1842 = vmatpush1.xpose.msra.mxu0 0.0
        %1843 = vmatprep.subr.mxu0 0.0
        %1844 = vmatpush1.xpose.msra.mxu0 0.0
        %1845 = vmatprep.subr.mxu0 0.0
        %1846 = vmatpush1.xpose.msra.mxu0 0.0
        %1847 = vmatprep.subr.mxu0 0.0
        %1848 = vmatpush1.xpose.msra.mxu0 0.0
        %1849 = vmatprep.subr.mxu0 0.0
        %1850 = vmatpush1.xpose.msra.mxu0 0.0
        %1851 = vmatprep.subr.mxu0 0.0
        %1852 = vmatpush1.xpose.msra.mxu0 0.0
        %1853 = vmatprep.subr.mxu0 0.0
        %1854 = vmatpush1.xpose.msra.mxu0 0.0
        %1855 = vmatprep.subr.mxu0 0.0
        %1856 = vmatpush1.xpose.msra.mxu0 0.0
        %1857 = vmatprep.subr.mxu0 0.0
        %1858 = vmatpush1.xpose.msra.mxu0 0.0
        %1859 = vmatprep.subr.mxu0 0.0
        %1860 = vmatpush1.xpose.msra.mxu0 0.0
        %1861 = vmatprep.subr.mxu0 0.0
        %1862 = vmatpush1.xpose.msra.mxu0 0.0
        %1863 = vmatprep.subr.mxu0 0.0
        %1864 = vmatpush1.xpose.msra.mxu0 0.0
        %1865 = vmatprep.subr.mxu0 0.0
        %1866 = vmatpush1.xpose.msra.mxu0 0.0
        %1867 = vmatprep.subr.mxu0 0.0
        %1868 = vmatpush1.xpose.msra.mxu0 0.0
        %1869 = vmatprep.subr.mxu0 0.0
        %1870 = vmatpush1.xpose.msra.mxu0 0.0
        %1871 = vmatprep.subr.mxu0 0.0
        %1872 = vmatpush1.xpose.msra.mxu0 0.0
        %1873 = vmatprep.subr.mxu0 0.0
        %1874 = vmatpush1.xpose.msra.mxu0 0.0
        %1875 = vmatprep.subr.mxu0 0.0
        %1876 = vmatpush1.xpose.msra.mxu0 0.0
        %1877 = vmatprep.subr.mxu0 0.0
        %1878 = vmatpush1.xpose.msra.mxu0 0.0
        %1879 = vmatprep.subr.mxu0 0.0
        %1880 = vmatpush1.xpose.msra.mxu0 0.0
        %1881 = vmatprep.subr.mxu0 0.0
        %1882 = vmatpush1.xpose.msra.mxu0 0.0
        %1883 = vmatprep.subr.mxu0 0.0
        %1884 = vmatpush1.xpose.msra.mxu0 0.0
        %1885 = vmatprep.subr.mxu0 0.0
        %1886 = vmatpush1.xpose.msra.mxu0 0.0
        %1887 = vmatprep.subr.mxu0 0.0
        %1888 = vmatpush1.xpose.msra.mxu0 0.0
        %1889 = vmatprep.subr.mxu0 0.0
        %1890 = vmatpush1.xpose.msra.mxu0 0.0
        %1891 = vmatprep.subr.mxu0 0.0
        %1892 = vmatpush1.xpose.msra.mxu0 0.0
        %1893 = vmatprep.subr.mxu0 0.0
        %1894 = vmatpush1.xpose.msra.mxu0 0.0
        %1895 = vmatprep.subr.mxu0 0.0
        %1896 = vmatpush1.xpose.msra.mxu0 0.0
        %1897 = vmatprep.mubr.f32.mxu0 0.0
        %1898 = vmatmul.mubr.f32.gmra.mrb[0].mxu0 %v1821
        %v1899 = vpop.f32.mrb[0].mxu0
        %v1900 = vadd.f32 0.0, %v1899
        %v1901 = vpop.f32.mrb[0].mxu0
        %1902 = vmatprep.mubr.f32.mxu0 0.0
        %1903 = vmatmul.mubr.f32.gmra.mrb[0].mxu0 %v1823
        %v1904 = vpop.f32.mrb[0].mxu0
        %v1905 = vadd.f32 0.0, %v1904
        %v1906 = vpop.f32.mrb[0].mxu0
        %1907 = vmatprep.mubr.f32.mxu0 0.0
        %1908 = vmatmul.mubr.f32.gmra.mrb[0].mxu0 %v1825
        %v1909 = vpop.f32.mrb[0].mxu0
        %v1910 = vadd.f32 0.0, %v1909
        %v1911 = vpop.f32.mrb[0].mxu0
        %1912 = vdwg.mxu0
        %v1913 = vmul.f32 %v1796, 0.35355338
        %v1914 = vmul.f32 %v1801, 0.35355338
        %v1915 = vmul.f32 %v1806, 0.35355338
        %v1916 = vmul.f32 %v1900, 0.35355338
        %v1917 = vmul.f32 %v1905, 0.35355338
        %v1918 = vmul.f32 %v1910, 0.35355338
        %v1919 = vsel %vm1435, %v1913, -1e+30
        %v1920 = vsel %vm1435, %v1914, -1e+30
        %v1921 = vsel %vm1435, %v1915, -1e+30
        %v1922 = vsel %vm1435, %v1916, -1e+30
        %v1923 = vsel %vm1435, %v1917, -1e+30
        %v1924 = vsel %vm1435, %v1918, -1e+30
        %v1925 = vsel %vm1442, %v1919, -inf
        %1926 = vmax.xlane.f32.xlu0 %v1925
        %v1927 = vpop.xlane.xlu0 %1926
        %v1928 = vsel %vm1442, %v1920, -inf
        %1929 = vmax.xlane.f32.xlu0 %v1928
        %v1930 = vpop.xlane.xlu0 %1929
        %v1931 = vsel %vm1442, %v1921, -inf
        %1932 = vmax.xlane.f32.xlu0 %v1931
        %v1933 = vpop.xlane.xlu0 %1932
        %v1934 = vsel %vm1442, %v1922, -inf
        %1935 = vmax.xlane.f32.xlu0 %v1934
        %v1936 = vpop.xlane.xlu0 %1935
        %v1937 = vsel %vm1442, %v1923, -inf
        %1938 = vmax.xlane.f32.xlu0 %v1937
        %v1939 = vpop.xlane.xlu0 %1938
        %v1940 = vsel %vm1442, %v1924, -inf
        %1941 = vmax.xlane.f32.xlu0 %v1940
        %v1942 = vpop.xlane.xlu0 %1941
        %v1943 = vsub.f32 %v1919, %v1927
        %v1944 = vsub.f32 %v1920, %v1930
        %v1945 = vsub.f32 %v1921, %v1933
        %v1946 = vsub.f32 %v1922, %v1936
        %v1947 = vsub.f32 %v1923, %v1939
        %v1948 = vsub.f32 %v1924, %v1942
        %v1949 = vmul.f32 %v1943, 1.442695
        %v1950 = vpow.pop %v1949
        %v1951 = vmul.f32 %v1944, 1.442695
        %v1952 = vpow.pop %v1951
        %v1953 = vmul.f32 %v1945, 1.442695
        %v1954 = vpow.pop %v1953
        %v1955 = vmul.f32 %v1946, 1.442695
        %v1956 = vpow.pop %v1955
        %v1957 = vmul.f32 %v1947, 1.442695
        %v1958 = vpow.pop %v1957
        %v1959 = vmul.f32 %v1948, 1.442695
        %v1960 = vpow.pop %v1959
        %v1961 = vsel %vm1442, %v1950, 0.0
        %1962 = vadd.xlane.f32.xlu0 %v1961
        %v1963 = vpop.xlane.xlu0 %1962
        %v1964 = vsel %vm1442, %v1952, 0.0
        %1965 = vadd.xlane.f32.xlu0 %v1964
        %v1966 = vpop.xlane.xlu0 %1965
        %v1967 = vsel %vm1442, %v1954, 0.0
        %1968 = vadd.xlane.f32.xlu0 %v1967
        %v1969 = vpop.xlane.xlu0 %1968
        %v1970 = vsel %vm1442, %v1956, 0.0
        %1971 = vadd.xlane.f32.xlu0 %v1970
        %v1972 = vpop.xlane.xlu0 %1971
        %v1973 = vsel %vm1442, %v1958, 0.0
        %1974 = vadd.xlane.f32.xlu0 %v1973
        %v1975 = vpop.xlane.xlu0 %1974
        %v1976 = vsel %vm1442, %v1960, 0.0
        %1977 = vadd.xlane.f32.xlu0 %v1976
        %v1978 = vpop.xlane.xlu0 %1977
        %v1979 = vrcp.pop %v1963
        %v1980 = vmul.f32 %v1950, %v1979
        %v1981 = vrcp.pop %v1966
        %v1982 = vmul.f32 %v1952, %v1981
        %v1983 = vrcp.pop %v1969
        %v1984 = vmul.f32 %v1954, %v1983
        %v1985 = vrcp.pop %v1972
        %v1986 = vmul.f32 %v1956, %v1985
        %v1987 = vrcp.pop %v1975
        %v1988 = vmul.f32 %v1958, %v1987
        %v1989 = vrcp.pop %v1978
        %v1990 = vmul.f32 %v1960, %v1989
        %1991 = vrot.lane.b32.xlu0 %v1197, 56
        %v1992 = vpop.permute.xlu0 %1991
        %1993 = vrot.lane.b32.xlu0 %v1202, 56
        %v1994 = vpop.permute.xlu0 %1993
        %1995 = vrot.lane.b32.xlu0 %v1207, 56
        %v1996 = vpop.permute.xlu0 %1995
        %v2001 = vsel %vm1442, %v1980, 0
        %v2004 = vsel %vm1442, %v1982, 0
        %v2007 = vsel %vm1442, %v1984, 0
        %2009 = vmatprep.subr.mxu0 0.0
        %2010 = vmatpush1.msra.mxu0 %v1992
        %2011 = vmatprep.subr.mxu0 0.0
        %2012 = vmatpush1.msra.mxu0 %v1994
        %2013 = vmatprep.subr.mxu0 0.0
        %2014 = vmatpush1.msra.mxu0 %v1996
        %2015 = vmatprep.subr.mxu0 0.0
        %2016 = vmatpush1.msra.mxu0 0.0
        %2017 = vmatprep.subr.mxu0 0.0
        %2018 = vmatpush1.msra.mxu0 0.0
        %2019 = vmatprep.subr.mxu0 0.0
        %2020 = vmatpush1.msra.mxu0 0.0
        %2021 = vmatprep.subr.mxu0 0.0
        %2022 = vmatpush1.msra.mxu0 0.0
        %2023 = vmatprep.subr.mxu0 0.0
        %2024 = vmatpush1.msra.mxu0 0.0
        %2025 = vmatprep.subr.mxu0 0.0
        %2026 = vmatpush1.msra.mxu0 0.0
        %2027 = vmatprep.subr.mxu0 0.0
        %2028 = vmatpush1.msra.mxu0 0.0
        %2029 = vmatprep.subr.mxu0 0.0
        %2030 = vmatpush1.msra.mxu0 0.0
        %2031 = vmatprep.subr.mxu0 0.0
        %2032 = vmatpush1.msra.mxu0 0.0
        %2033 = vmatprep.subr.mxu0 0.0
        %2034 = vmatpush1.msra.mxu0 0.0
        %2035 = vmatprep.subr.mxu0 0.0
        %2036 = vmatpush1.msra.mxu0 0.0
        %2037 = vmatprep.subr.mxu0 0.0
        %2038 = vmatpush1.msra.mxu0 0.0
        %2039 = vmatprep.subr.mxu0 0.0
        %2040 = vmatpush1.msra.mxu0 0.0
        %2041 = vmatprep.subr.mxu0 0.0
        %2042 = vmatpush1.msra.mxu0 0.0
        %2043 = vmatprep.subr.mxu0 0.0
        %2044 = vmatpush1.msra.mxu0 0.0
        %2045 = vmatprep.subr.mxu0 0.0
        %2046 = vmatpush1.msra.mxu0 0.0
        %2047 = vmatprep.subr.mxu0 0.0
        %2048 = vmatpush1.msra.mxu0 0.0
        %2049 = vmatprep.subr.mxu0 0.0
        %2050 = vmatpush1.msra.mxu0 0.0
        %2051 = vmatprep.subr.mxu0 0.0
        %2052 = vmatpush1.msra.mxu0 0.0
        %2053 = vmatprep.subr.mxu0 0.0
        %2054 = vmatpush1.msra.mxu0 0.0
        %2055 = vmatprep.subr.mxu0 0.0
        %2056 = vmatpush1.msra.mxu0 0.0
        %2057 = vmatprep.subr.mxu0 0.0
        %2058 = vmatpush1.msra.mxu0 0.0
        %2059 = vmatprep.subr.mxu0 0.0
        %2060 = vmatpush1.msra.mxu0 0.0
        %2061 = vmatprep.subr.mxu0 0.0
        %2062 = vmatpush1.msra.mxu0 0.0
        %2063 = vmatprep.subr.mxu0 0.0
        %2064 = vmatpush1.msra.mxu0 0.0
        %2065 = vmatprep.subr.mxu0 0.0
        %2066 = vmatpush1.msra.mxu0 0.0
        %2067 = vmatprep.subr.mxu0 0.0
        %2068 = vmatpush1.msra.mxu0 0.0
        %2069 = vmatprep.subr.mxu0 0.0
        %2070 = vmatpush1.msra.mxu0 0.0
        %2071 = vmatprep.subr.mxu0 0.0
        %2072 = vmatpush1.msra.mxu0 0.0
        %2073 = vmatprep.mubr.f32.mxu0 0.0
        %2074 = vmatmul.mubr.f32.gmra.mrb[0].mxu0 %v2001
        %v2075 = vpop.f32.mrb[0].mxu0
        %v2076 = vadd.f32 0.0, %v2075
        %v2077 = vpop.f32.mrb[0].mxu0
        %2078 = vmatprep.mubr.f32.mxu0 0.0
        %2079 = vmatmul.mubr.f32.gmra.mrb[0].mxu0 %v2004
        %v2080 = vpop.f32.mrb[0].mxu0
        %v2081 = vadd.f32 0.0, %v2080
        %v2082 = vpop.f32.mrb[0].mxu0
        %2083 = vmatprep.mubr.f32.mxu0 0.0
        %2084 = vmatmul.mubr.f32.gmra.mrb[0].mxu0 %v2007
        %v2085 = vpop.f32.mrb[0].mxu0
        %v2086 = vadd.f32 0.0, %v2085
        %v2087 = vpop.f32.mrb[0].mxu0
        %2088 = vdwg.mxu0
        %2089 = vrot.lane.b32.xlu0 %v1212, 56
        %v2090 = vpop.permute.xlu0 %2089
        %2091 = vrot.lane.b32.xlu0 %v1217, 56
        %v2092 = vpop.permute.xlu0 %2091
        %2093 = vrot.lane.b32.xlu0 %v1222, 56
        %v2094 = vpop.permute.xlu0 %2093
        %v2099 = vsel %vm1442, %v1986, 0
        %v2102 = vsel %vm1442, %v1988, 0
        %v2105 = vsel %vm1442, %v1990, 0
        %2107 = vmatprep.subr.mxu0 0.0
        %2108 = vmatpush1.msra.mxu0 %v2090
        %2109 = vmatprep.subr.mxu0 0.0
        %2110 = vmatpush1.msra.mxu0 %v2092
        %2111 = vmatprep.subr.mxu0 0.0
        %2112 = vmatpush1.msra.mxu0 %v2094
        %2113 = vmatprep.subr.mxu0 0.0
        %2114 = vmatpush1.msra.mxu0 0.0
        %2115 = vmatprep.subr.mxu0 0.0
        %2116 = vmatpush1.msra.mxu0 0.0
        %2117 = vmatprep.subr.mxu0 0.0
        %2118 = vmatpush1.msra.mxu0 0.0
        %2119 = vmatprep.subr.mxu0 0.0
        %2120 = vmatpush1.msra.mxu0 0.0
        %2121 = vmatprep.subr.mxu0 0.0
        %2122 = vmatpush1.msra.mxu0 0.0
        %2123 = vmatprep.subr.mxu0 0.0
        %2124 = vmatpush1.msra.mxu0 0.0
        %2125 = vmatprep.subr.mxu0 0.0
        %2126 = vmatpush1.msra.mxu0 0.0
        %2127 = vmatprep.subr.mxu0 0.0
        %2128 = vmatpush1.msra.mxu0 0.0
        %2129 = vmatprep.subr.mxu0 0.0
        %2130 = vmatpush1.msra.mxu0 0.0
        %2131 = vmatprep.subr.mxu0 0.0
        %2132 = vmatpush1.msra.mxu0 0.0
        %2133 = vmatprep.subr.mxu0 0.0
        %2134 = vmatpush1.msra.mxu0 0.0
        %2135 = vmatprep.subr.mxu0 0.0
        %2136 = vmatpush1.msra.mxu0 0.0
        %2137 = vmatprep.subr.mxu0 0.0
        %2138 = vmatpush1.msra.mxu0 0.0
        %2139 = vmatprep.subr.mxu0 0.0
        %2140 = vmatpush1.msra.mxu0 0.0
        %2141 = vmatprep.subr.mxu0 0.0
        %2142 = vmatpush1.msra.mxu0 0.0
        %2143 = vmatprep.subr.mxu0 0.0
        %2144 = vmatpush1.msra.mxu0 0.0
        %2145 = vmatprep.subr.mxu0 0.0
        %2146 = vmatpush1.msra.mxu0 0.0
        %2147 = vmatprep.subr.mxu0 0.0
        %2148 = vmatpush1.msra.mxu0 0.0
        %2149 = vmatprep.subr.mxu0 0.0
        %2150 = vmatpush1.msra.mxu0 0.0
        %2151 = vmatprep.subr.mxu0 0.0
        %2152 = vmatpush1.msra.mxu0 0.0
        %2153 = vmatprep.subr.mxu0 0.0
        %2154 = vmatpush1.msra.mxu0 0.0
        %2155 = vmatprep.subr.mxu0 0.0
        %2156 = vmatpush1.msra.mxu0 0.0
        %2157 = vmatprep.subr.mxu0 0.0
        %2158 = vmatpush1.msra.mxu0 0.0
        %2159 = vmatprep.subr.mxu0 0.0
        %2160 = vmatpush1.msra.mxu0 0.0
        %2161 = vmatprep.subr.mxu0 0.0
        %2162 = vmatpush1.msra.mxu0 0.0
        %2163 = vmatprep.subr.mxu0 0.0
        %2164 = vmatpush1.msra.mxu0 0.0
        %2165 = vmatprep.subr.mxu0 0.0
        %2166 = vmatpush1.msra.mxu0 0.0
        %2167 = vmatprep.subr.mxu0 0.0
        %2168 = vmatpush1.msra.mxu0 0.0
        %2169 = vmatprep.subr.mxu0 0.0
        %2170 = vmatpush1.msra.mxu0 0.0
        %2171 = vmatprep.mubr.f32.mxu0 0.0
        %2172 = vmatmul.mubr.f32.gmra.mrb[0].mxu0 %v2099
        %v2173 = vpop.f32.mrb[0].mxu0
        %v2174 = vadd.f32 0.0, %v2173
        %v2175 = vpop.f32.mrb[0].mxu0
        %2176 = vmatprep.mubr.f32.mxu0 0.0
        %2177 = vmatmul.mubr.f32.gmra.mrb[0].mxu0 %v2102
        %v2178 = vpop.f32.mrb[0].mxu0
        %v2179 = vadd.f32 0.0, %v2178
        %v2180 = vpop.f32.mrb[0].mxu0
        %2181 = vmatprep.mubr.f32.mxu0 0.0
        %2182 = vmatmul.mubr.f32.gmra.mrb[0].mxu0 %v2105
        %v2183 = vpop.f32.mrb[0].mxu0
        %v2184 = vadd.f32 0.0, %v2183
        %v2185 = vpop.f32.mrb[0].mxu0
        %2186 = vdwg.mxu0
        %2187 = vrot.lane.b32.xlu0 %v1197, 112
        %v2188 = vpop.permute.xlu0 %2187
        %2189 = vrot.lane.b32.xlu0 %v1202, 112
        %v2190 = vpop.permute.xlu0 %2189
        %2191 = vrot.lane.b32.xlu0 %v1207, 112
        %v2192 = vpop.permute.xlu0 %2191
        %2193 = vrot.lane.b32.xlu0 %v1197, 80
        %v2194 = vpop.permute.xlu0 %2193
        %2195 = vrot.lane.b32.xlu0 %v1202, 80
        %v2196 = vpop.permute.xlu0 %2195
        %2197 = vrot.lane.b32.xlu0 %v1207, 80
        %v2198 = vpop.permute.xlu0 %2197
        %v2199 = vsel %vm1234, %v2188, 0
        %v2201 = vsel %vm1234, %v2190, 0
        %v2203 = vsel %vm1234, %v2192, 0
        %v2205 = vsel %vm1234, %v2194, 0
        %v2207 = vsel %vm1234, %v2196, 0
        %v2209 = vsel %vm1234, %v2198, 0
        %2211 = vmatprep.subr.mxu0 0.0
        %2212 = vmatpush1.xpose.msra.mxu0 %v2205
        %2213 = vmatprep.subr.mxu0 0.0
        %2214 = vmatpush1.xpose.msra.mxu0 %v2207
        %2215 = vmatprep.subr.mxu0 0.0
        %2216 = vmatpush1.xpose.msra.mxu0 %v2209
        %2217 = vmatprep.subr.mxu0 0.0
        %2218 = vmatpush1.xpose.msra.mxu0 0.0
        %2219 = vmatprep.subr.mxu0 0.0
        %2220 = vmatpush1.xpose.msra.mxu0 0.0
        %2221 = vmatprep.subr.mxu0 0.0
        %2222 = vmatpush1.xpose.msra.mxu0 0.0
        %2223 = vmatprep.subr.mxu0 0.0
        %2224 = vmatpush1.xpose.msra.mxu0 0.0
        %2225 = vmatprep.subr.mxu0 0.0
        %2226 = vmatpush1.xpose.msra.mxu0 0.0
        %2227 = vmatprep.subr.mxu0 0.0
        %2228 = vmatpush1.xpose.msra.mxu0 0.0
        %2229 = vmatprep.subr.mxu0 0.0
        %2230 = vmatpush1.xpose.msra.mxu0 0.0
        %2231 = vmatprep.subr.mxu0 0.0
        %2232 = vmatpush1.xpose.msra.mxu0 0.0
        %2233 = vmatprep.subr.mxu0 0.0
        %2234 = vmatpush1.xpose.msra.mxu0 0.0
        %2235 = vmatprep.subr.mxu0 0.0
        %2236 = vmatpush1.xpose.msra.mxu0 0.0
        %2237 = vmatprep.subr.mxu0 0.0
        %2238 = vmatpush1.xpose.msra.mxu0 0.0
        %2239 = vmatprep.subr.mxu0 0.0
        %2240 = vmatpush1.xpose.msra.mxu0 0.0
        %2241 = vmatprep.subr.mxu0 0.0
        %2242 = vmatpush1.xpose.msra.mxu0 0.0
        %2243 = vmatprep.subr.mxu0 0.0
        %2244 = vmatpush1.xpose.msra.mxu0 0.0
        %2245 = vmatprep.subr.mxu0 0.0
        %2246 = vmatpush1.xpose.msra.mxu0 0.0
        %2247 = vmatprep.subr.mxu0 0.0
        %2248 = vmatpush1.xpose.msra.mxu0 0.0
        %2249 = vmatprep.subr.mxu0 0.0
        %2250 = vmatpush1.xpose.msra.mxu0 0.0
        %2251 = vmatprep.subr.mxu0 0.0
        %2252 = vmatpush1.xpose.msra.mxu0 0.0
        %2253 = vmatprep.subr.mxu0 0.0
        %2254 = vmatpush1.xpose.msra.mxu0 0.0
        %2255 = vmatprep.subr.mxu0 0.0
        %2256 = vmatpush1.xpose.msra.mxu0 0.0
        %2257 = vmatprep.subr.mxu0 0.0
        %2258 = vmatpush1.xpose.msra.mxu0 0.0
        %2259 = vmatprep.subr.mxu0 0.0
        %2260 = vmatpush1.xpose.msra.mxu0 0.0
        %2261 = vmatprep.subr.mxu0 0.0
        %2262 = vmatpush1.xpose.msra.mxu0 0.0
        %2263 = vmatprep.subr.mxu0 0.0
        %2264 = vmatpush1.xpose.msra.mxu0 0.0
        %2265 = vmatprep.subr.mxu0 0.0
        %2266 = vmatpush1.xpose.msra.mxu0 0.0
        %2267 = vmatprep.subr.mxu0 0.0
        %2268 = vmatpush1.xpose.msra.mxu0 0.0
        %2269 = vmatprep.subr.mxu0 0.0
        %2270 = vmatpush1.xpose.msra.mxu0 0.0
        %2271 = vmatprep.subr.mxu0 0.0
        %2272 = vmatpush1.xpose.msra.mxu0 0.0
        %2273 = vmatprep.subr.mxu0 0.0
        %2274 = vmatpush1.xpose.msra.mxu0 0.0
        %2275 = vmatprep.mubr.f32.mxu0 0.0
        %2276 = vmatmul.mubr.f32.gmra.mrb[0].mxu0 %v2199
        %v2277 = vpop.f32.mrb[0].mxu0
        %v2278 = vadd.f32 0.0, %v2277
        %v2279 = vpop.f32.mrb[0].mxu0
        %2280 = vmatprep.mubr.f32.mxu0 0.0
        %2281 = vmatmul.mubr.f32.gmra.mrb[0].mxu0 %v2201
        %v2282 = vpop.f32.mrb[0].mxu0
        %v2283 = vadd.f32 0.0, %v2282
        %v2284 = vpop.f32.mrb[0].mxu0
        %2285 = vmatprep.mubr.f32.mxu0 0.0
        %2286 = vmatmul.mubr.f32.gmra.mrb[0].mxu0 %v2203
        %v2287 = vpop.f32.mrb[0].mxu0
        %v2288 = vadd.f32 0.0, %v2287
        %v2289 = vpop.f32.mrb[0].mxu0
        %2290 = vdwg.mxu0
        %2291 = vrot.lane.b32.xlu0 %v1212, 112
        %v2292 = vpop.permute.xlu0 %2291
        %2293 = vrot.lane.b32.xlu0 %v1217, 112
        %v2294 = vpop.permute.xlu0 %2293
        %2295 = vrot.lane.b32.xlu0 %v1222, 112
        %v2296 = vpop.permute.xlu0 %2295
        %2297 = vrot.lane.b32.xlu0 %v1212, 80
        %v2298 = vpop.permute.xlu0 %2297
        %2299 = vrot.lane.b32.xlu0 %v1217, 80
        %v2300 = vpop.permute.xlu0 %2299
        %2301 = vrot.lane.b32.xlu0 %v1222, 80
        %v2302 = vpop.permute.xlu0 %2301
        %v2303 = vsel %vm1234, %v2292, 0
        %v2305 = vsel %vm1234, %v2294, 0
        %v2307 = vsel %vm1234, %v2296, 0
        %v2309 = vsel %vm1234, %v2298, 0
        %v2311 = vsel %vm1234, %v2300, 0
        %v2313 = vsel %vm1234, %v2302, 0
        %2315 = vmatprep.subr.mxu0 0.0
        %2316 = vmatpush1.xpose.msra.mxu0 %v2309
        %2317 = vmatprep.subr.mxu0 0.0
        %2318 = vmatpush1.xpose.msra.mxu0 %v2311
        %2319 = vmatprep.subr.mxu0 0.0
        %2320 = vmatpush1.xpose.msra.mxu0 %v2313
        %2321 = vmatprep.subr.mxu0 0.0
        %2322 = vmatpush1.xpose.msra.mxu0 0.0
        %2323 = vmatprep.subr.mxu0 0.0
        %2324 = vmatpush1.xpose.msra.mxu0 0.0
        %2325 = vmatprep.subr.mxu0 0.0
        %2326 = vmatpush1.xpose.msra.mxu0 0.0
        %2327 = vmatprep.subr.mxu0 0.0
        %2328 = vmatpush1.xpose.msra.mxu0 0.0
        %2329 = vmatprep.subr.mxu0 0.0
        %2330 = vmatpush1.xpose.msra.mxu0 0.0
        %2331 = vmatprep.subr.mxu0 0.0
        %2332 = vmatpush1.xpose.msra.mxu0 0.0
        %2333 = vmatprep.subr.mxu0 0.0
        %2334 = vmatpush1.xpose.msra.mxu0 0.0
        %2335 = vmatprep.subr.mxu0 0.0
        %2336 = vmatpush1.xpose.msra.mxu0 0.0
        %2337 = vmatprep.subr.mxu0 0.0
        %2338 = vmatpush1.xpose.msra.mxu0 0.0
        %2339 = vmatprep.subr.mxu0 0.0
        %2340 = vmatpush1.xpose.msra.mxu0 0.0
        %2341 = vmatprep.subr.mxu0 0.0
        %2342 = vmatpush1.xpose.msra.mxu0 0.0
        %2343 = vmatprep.subr.mxu0 0.0
        %2344 = vmatpush1.xpose.msra.mxu0 0.0
        %2345 = vmatprep.subr.mxu0 0.0
        %2346 = vmatpush1.xpose.msra.mxu0 0.0
        %2347 = vmatprep.subr.mxu0 0.0
        %2348 = vmatpush1.xpose.msra.mxu0 0.0
        %2349 = vmatprep.subr.mxu0 0.0
        %2350 = vmatpush1.xpose.msra.mxu0 0.0
        %2351 = vmatprep.subr.mxu0 0.0
        %2352 = vmatpush1.xpose.msra.mxu0 0.0
        %2353 = vmatprep.subr.mxu0 0.0
        %2354 = vmatpush1.xpose.msra.mxu0 0.0
        %2355 = vmatprep.subr.mxu0 0.0
        %2356 = vmatpush1.xpose.msra.mxu0 0.0
        %2357 = vmatprep.subr.mxu0 0.0
        %2358 = vmatpush1.xpose.msra.mxu0 0.0
        %2359 = vmatprep.subr.mxu0 0.0
        %2360 = vmatpush1.xpose.msra.mxu0 0.0
        %2361 = vmatprep.subr.mxu0 0.0
        %2362 = vmatpush1.xpose.msra.mxu0 0.0
        %2363 = vmatprep.subr.mxu0 0.0
        %2364 = vmatpush1.xpose.msra.mxu0 0.0
        %2365 = vmatprep.subr.mxu0 0.0
        %2366 = vmatpush1.xpose.msra.mxu0 0.0
        %2367 = vmatprep.subr.mxu0 0.0
        %2368 = vmatpush1.xpose.msra.mxu0 0.0
        %2369 = vmatprep.subr.mxu0 0.0
        %2370 = vmatpush1.xpose.msra.mxu0 0.0
        %2371 = vmatprep.subr.mxu0 0.0
        %2372 = vmatpush1.xpose.msra.mxu0 0.0
        %2373 = vmatprep.subr.mxu0 0.0
        %2374 = vmatpush1.xpose.msra.mxu0 0.0
        %2375 = vmatprep.subr.mxu0 0.0
        %2376 = vmatpush1.xpose.msra.mxu0 0.0
        %2377 = vmatprep.subr.mxu0 0.0
        %2378 = vmatpush1.xpose.msra.mxu0 0.0
        %2379 = vmatprep.mubr.f32.mxu0 0.0
        %2380 = vmatmul.mubr.f32.gmra.mrb[0].mxu0 %v2303
        %v2381 = vpop.f32.mrb[0].mxu0
        %v2382 = vadd.f32 0.0, %v2381
        %v2383 = vpop.f32.mrb[0].mxu0
        %2384 = vmatprep.mubr.f32.mxu0 0.0
        %2385 = vmatmul.mubr.f32.gmra.mrb[0].mxu0 %v2305
        %v2386 = vpop.f32.mrb[0].mxu0
        %v2387 = vadd.f32 0.0, %v2386
        %v2388 = vpop.f32.mrb[0].mxu0
        %2389 = vmatprep.mubr.f32.mxu0 0.0
        %2390 = vmatmul.mubr.f32.gmra.mrb[0].mxu0 %v2307
        %v2391 = vpop.f32.mrb[0].mxu0
        %v2392 = vadd.f32 0.0, %v2391
        %v2393 = vpop.f32.mrb[0].mxu0
        %2394 = vdwg.mxu0
        %v2395 = vmul.f32 %v2278, 0.35355338
        %v2396 = vmul.f32 %v2283, 0.35355338
        %v2397 = vmul.f32 %v2288, 0.35355338
        %v2398 = vmul.f32 %v2382, 0.35355338
        %v2399 = vmul.f32 %v2387, 0.35355338
        %v2400 = vmul.f32 %v2392, 0.35355338
        %v2401 = vsel %vm1435, %v2395, -1e+30
        %v2402 = vsel %vm1435, %v2396, -1e+30
        %v2403 = vsel %vm1435, %v2397, -1e+30
        %v2404 = vsel %vm1435, %v2398, -1e+30
        %v2405 = vsel %vm1435, %v2399, -1e+30
        %v2406 = vsel %vm1435, %v2400, -1e+30
        %v2407 = vsel %vm1442, %v2401, -inf
        %2408 = vmax.xlane.f32.xlu0 %v2407
        %v2409 = vpop.xlane.xlu0 %2408
        %v2410 = vsel %vm1442, %v2402, -inf
        %2411 = vmax.xlane.f32.xlu0 %v2410
        %v2412 = vpop.xlane.xlu0 %2411
        %v2413 = vsel %vm1442, %v2403, -inf
        %2414 = vmax.xlane.f32.xlu0 %v2413
        %v2415 = vpop.xlane.xlu0 %2414
        %v2416 = vsel %vm1442, %v2404, -inf
        %2417 = vmax.xlane.f32.xlu0 %v2416
        %v2418 = vpop.xlane.xlu0 %2417
        %v2419 = vsel %vm1442, %v2405, -inf
        %2420 = vmax.xlane.f32.xlu0 %v2419
        %v2421 = vpop.xlane.xlu0 %2420
        %v2422 = vsel %vm1442, %v2406, -inf
        %2423 = vmax.xlane.f32.xlu0 %v2422
        %v2424 = vpop.xlane.xlu0 %2423
        %v2425 = vsub.f32 %v2401, %v2409
        %v2426 = vsub.f32 %v2402, %v2412
        %v2427 = vsub.f32 %v2403, %v2415
        %v2428 = vsub.f32 %v2404, %v2418
        %v2429 = vsub.f32 %v2405, %v2421
        %v2430 = vsub.f32 %v2406, %v2424
        %v2431 = vmul.f32 %v2425, 1.442695
        %v2432 = vpow.pop %v2431
        %v2433 = vmul.f32 %v2426, 1.442695
        %v2434 = vpow.pop %v2433
        %v2435 = vmul.f32 %v2427, 1.442695
        %v2436 = vpow.pop %v2435
        %v2437 = vmul.f32 %v2428, 1.442695
        %v2438 = vpow.pop %v2437
        %v2439 = vmul.f32 %v2429, 1.442695
        %v2440 = vpow.pop %v2439
        %v2441 = vmul.f32 %v2430, 1.442695
        %v2442 = vpow.pop %v2441
        %v2443 = vsel %vm1442, %v2432, 0.0
        %2444 = vadd.xlane.f32.xlu0 %v2443
        %v2445 = vpop.xlane.xlu0 %2444
        %v2446 = vsel %vm1442, %v2434, 0.0
        %2447 = vadd.xlane.f32.xlu0 %v2446
        %v2448 = vpop.xlane.xlu0 %2447
        %v2449 = vsel %vm1442, %v2436, 0.0
        %2450 = vadd.xlane.f32.xlu0 %v2449
        %v2451 = vpop.xlane.xlu0 %2450
        %v2452 = vsel %vm1442, %v2438, 0.0
        %2453 = vadd.xlane.f32.xlu0 %v2452
        %v2454 = vpop.xlane.xlu0 %2453
        %v2455 = vsel %vm1442, %v2440, 0.0
        %2456 = vadd.xlane.f32.xlu0 %v2455
        %v2457 = vpop.xlane.xlu0 %2456
        %v2458 = vsel %vm1442, %v2442, 0.0
        %2459 = vadd.xlane.f32.xlu0 %v2458
        %v2460 = vpop.xlane.xlu0 %2459
        %v2461 = vrcp.pop %v2445
        %v2462 = vmul.f32 %v2432, %v2461
        %v2463 = vrcp.pop %v2448
        %v2464 = vmul.f32 %v2434, %v2463
        %v2465 = vrcp.pop %v2451
        %v2466 = vmul.f32 %v2436, %v2465
        %v2467 = vrcp.pop %v2454
        %v2468 = vmul.f32 %v2438, %v2467
        %v2469 = vrcp.pop %v2457
        %v2470 = vmul.f32 %v2440, %v2469
        %v2471 = vrcp.pop %v2460
        %v2472 = vmul.f32 %v2442, %v2471
        %2473 = vrot.lane.b32.xlu0 %v1197, 48
        %v2474 = vpop.permute.xlu0 %2473
        %2475 = vrot.lane.b32.xlu0 %v1202, 48
        %v2476 = vpop.permute.xlu0 %2475
        %2477 = vrot.lane.b32.xlu0 %v1207, 48
        %v2478 = vpop.permute.xlu0 %2477
        %v2483 = vsel %vm1442, %v2462, 0
        %v2486 = vsel %vm1442, %v2464, 0
        %v2489 = vsel %vm1442, %v2466, 0
        %2491 = vmatprep.subr.mxu0 0.0
        %2492 = vmatpush1.msra.mxu0 %v2474
        %2493 = vmatprep.subr.mxu0 0.0
        %2494 = vmatpush1.msra.mxu0 %v2476
        %2495 = vmatprep.subr.mxu0 0.0
        %2496 = vmatpush1.msra.mxu0 %v2478
        %2497 = vmatprep.subr.mxu0 0.0
        %2498 = vmatpush1.msra.mxu0 0.0
        %2499 = vmatprep.subr.mxu0 0.0
        %2500 = vmatpush1.msra.mxu0 0.0
        %2501 = vmatprep.subr.mxu0 0.0
        %2502 = vmatpush1.msra.mxu0 0.0
        %2503 = vmatprep.subr.mxu0 0.0
        %2504 = vmatpush1.msra.mxu0 0.0
        %2505 = vmatprep.subr.mxu0 0.0
        %2506 = vmatpush1.msra.mxu0 0.0
        %2507 = vmatprep.subr.mxu0 0.0
        %2508 = vmatpush1.msra.mxu0 0.0
        %2509 = vmatprep.subr.mxu0 0.0
        %2510 = vmatpush1.msra.mxu0 0.0
        %2511 = vmatprep.subr.mxu0 0.0
        %2512 = vmatpush1.msra.mxu0 0.0
        %2513 = vmatprep.subr.mxu0 0.0
        %2514 = vmatpush1.msra.mxu0 0.0
        %2515 = vmatprep.subr.mxu0 0.0
        %2516 = vmatpush1.msra.mxu0 0.0
        %2517 = vmatprep.subr.mxu0 0.0
        %2518 = vmatpush1.msra.mxu0 0.0
        %2519 = vmatprep.subr.mxu0 0.0
        %2520 = vmatpush1.msra.mxu0 0.0
        %2521 = vmatprep.subr.mxu0 0.0
        %2522 = vmatpush1.msra.mxu0 0.0
        %2523 = vmatprep.subr.mxu0 0.0
        %2524 = vmatpush1.msra.mxu0 0.0
        %2525 = vmatprep.subr.mxu0 0.0
        %2526 = vmatpush1.msra.mxu0 0.0
        %2527 = vmatprep.subr.mxu0 0.0
        %2528 = vmatpush1.msra.mxu0 0.0
        %2529 = vmatprep.subr.mxu0 0.0
        %2530 = vmatpush1.msra.mxu0 0.0
        %2531 = vmatprep.subr.mxu0 0.0
        %2532 = vmatpush1.msra.mxu0 0.0
        %2533 = vmatprep.subr.mxu0 0.0
        %2534 = vmatpush1.msra.mxu0 0.0
        %2535 = vmatprep.subr.mxu0 0.0
        %2536 = vmatpush1.msra.mxu0 0.0
        %2537 = vmatprep.subr.mxu0 0.0
        %2538 = vmatpush1.msra.mxu0 0.0
        %2539 = vmatprep.subr.mxu0 0.0
        %2540 = vmatpush1.msra.mxu0 0.0
        %2541 = vmatprep.subr.mxu0 0.0
        %2542 = vmatpush1.msra.mxu0 0.0
        %2543 = vmatprep.subr.mxu0 0.0
        %2544 = vmatpush1.msra.mxu0 0.0
        %2545 = vmatprep.subr.mxu0 0.0
        %2546 = vmatpush1.msra.mxu0 0.0
        %2547 = vmatprep.subr.mxu0 0.0
        %2548 = vmatpush1.msra.mxu0 0.0
        %2549 = vmatprep.subr.mxu0 0.0
        %2550 = vmatpush1.msra.mxu0 0.0
        %2551 = vmatprep.subr.mxu0 0.0
        %2552 = vmatpush1.msra.mxu0 0.0
        %2553 = vmatprep.subr.mxu0 0.0
        %2554 = vmatpush1.msra.mxu0 0.0
        %2555 = vmatprep.mubr.f32.mxu0 0.0
        %2556 = vmatmul.mubr.f32.gmra.mrb[0].mxu0 %v2483
        %v2557 = vpop.f32.mrb[0].mxu0
        %v2558 = vadd.f32 0.0, %v2557
        %v2559 = vpop.f32.mrb[0].mxu0
        %2560 = vmatprep.mubr.f32.mxu0 0.0
        %2561 = vmatmul.mubr.f32.gmra.mrb[0].mxu0 %v2486
        %v2562 = vpop.f32.mrb[0].mxu0
        %v2563 = vadd.f32 0.0, %v2562
        %v2564 = vpop.f32.mrb[0].mxu0
        %2565 = vmatprep.mubr.f32.mxu0 0.0
        %2566 = vmatmul.mubr.f32.gmra.mrb[0].mxu0 %v2489
        %v2567 = vpop.f32.mrb[0].mxu0
        %v2568 = vadd.f32 0.0, %v2567
        %v2569 = vpop.f32.mrb[0].mxu0
        %2570 = vdwg.mxu0
        %2571 = vrot.lane.b32.xlu0 %v1212, 48
        %v2572 = vpop.permute.xlu0 %2571
        %2573 = vrot.lane.b32.xlu0 %v1217, 48
        %v2574 = vpop.permute.xlu0 %2573
        %2575 = vrot.lane.b32.xlu0 %v1222, 48
        %v2576 = vpop.permute.xlu0 %2575
        %v2581 = vsel %vm1442, %v2468, 0
        %v2584 = vsel %vm1442, %v2470, 0
        %v2587 = vsel %vm1442, %v2472, 0
        %2589 = vmatprep.subr.mxu0 0.0
        %2590 = vmatpush1.msra.mxu0 %v2572
        %2591 = vmatprep.subr.mxu0 0.0
        %2592 = vmatpush1.msra.mxu0 %v2574
        %2593 = vmatprep.subr.mxu0 0.0
        %2594 = vmatpush1.msra.mxu0 %v2576
        %2595 = vmatprep.subr.mxu0 0.0
        %2596 = vmatpush1.msra.mxu0 0.0
        %2597 = vmatprep.subr.mxu0 0.0
        %2598 = vmatpush1.msra.mxu0 0.0
        %2599 = vmatprep.subr.mxu0 0.0
        %2600 = vmatpush1.msra.mxu0 0.0
        %2601 = vmatprep.subr.mxu0 0.0
        %2602 = vmatpush1.msra.mxu0 0.0
        %2603 = vmatprep.subr.mxu0 0.0
        %2604 = vmatpush1.msra.mxu0 0.0
        %2605 = vmatprep.subr.mxu0 0.0
        %2606 = vmatpush1.msra.mxu0 0.0
        %2607 = vmatprep.subr.mxu0 0.0
        %2608 = vmatpush1.msra.mxu0 0.0
        %2609 = vmatprep.subr.mxu0 0.0
        %2610 = vmatpush1.msra.mxu0 0.0
        %2611 = vmatprep.subr.mxu0 0.0
        %2612 = vmatpush1.msra.mxu0 0.0
        %2613 = vmatprep.subr.mxu0 0.0
        %2614 = vmatpush1.msra.mxu0 0.0
        %2615 = vmatprep.subr.mxu0 0.0
        %2616 = vmatpush1.msra.mxu0 0.0
        %2617 = vmatprep.subr.mxu0 0.0
        %2618 = vmatpush1.msra.mxu0 0.0
        %2619 = vmatprep.subr.mxu0 0.0
        %2620 = vmatpush1.msra.mxu0 0.0
        %2621 = vmatprep.subr.mxu0 0.0
        %2622 = vmatpush1.msra.mxu0 0.0
        %2623 = vmatprep.subr.mxu0 0.0
        %2624 = vmatpush1.msra.mxu0 0.0
        %2625 = vmatprep.subr.mxu0 0.0
        %2626 = vmatpush1.msra.mxu0 0.0
        %2627 = vmatprep.subr.mxu0 0.0
        %2628 = vmatpush1.msra.mxu0 0.0
        %2629 = vmatprep.subr.mxu0 0.0
        %2630 = vmatpush1.msra.mxu0 0.0
        %2631 = vmatprep.subr.mxu0 0.0
        %2632 = vmatpush1.msra.mxu0 0.0
        %2633 = vmatprep.subr.mxu0 0.0
        %2634 = vmatpush1.msra.mxu0 0.0
        %2635 = vmatprep.subr.mxu0 0.0
        %2636 = vmatpush1.msra.mxu0 0.0
        %2637 = vmatprep.subr.mxu0 0.0
        %2638 = vmatpush1.msra.mxu0 0.0
        %2639 = vmatprep.subr.mxu0 0.0
        %2640 = vmatpush1.msra.mxu0 0.0
        %2641 = vmatprep.subr.mxu0 0.0
        %2642 = vmatpush1.msra.mxu0 0.0
        %2643 = vmatprep.subr.mxu0 0.0
        %2644 = vmatpush1.msra.mxu0 0.0
        %2645 = vmatprep.subr.mxu0 0.0
        %2646 = vmatpush1.msra.mxu0 0.0
        %2647 = vmatprep.subr.mxu0 0.0
        %2648 = vmatpush1.msra.mxu0 0.0
        %2649 = vmatprep.subr.mxu0 0.0
        %2650 = vmatpush1.msra.mxu0 0.0
        %2651 = vmatprep.subr.mxu0 0.0
        %2652 = vmatpush1.msra.mxu0 0.0
        %2653 = vmatprep.mubr.f32.mxu0 0.0
        %2654 = vmatmul.mubr.f32.gmra.mrb[0].mxu0 %v2581
        %v2655 = vpop.f32.mrb[0].mxu0
        %v2656 = vadd.f32 0.0, %v2655
        %v2657 = vpop.f32.mrb[0].mxu0
        %2658 = vmatprep.mubr.f32.mxu0 0.0
        %2659 = vmatmul.mubr.f32.gmra.mrb[0].mxu0 %v2584
        %v2660 = vpop.f32.mrb[0].mxu0
        %v2661 = vadd.f32 0.0, %v2660
        %v2662 = vpop.f32.mrb[0].mxu0
        %2663 = vmatprep.mubr.f32.mxu0 0.0
        %2664 = vmatmul.mubr.f32.gmra.mrb[0].mxu0 %v2587
        %v2665 = vpop.f32.mrb[0].mxu0
        %v2666 = vadd.f32 0.0, %v2665
        %v2667 = vpop.f32.mrb[0].mxu0
        %2668 = vdwg.mxu0
        %2669 = vrot.lane.b32.xlu0 %v1197, 104
        %v2670 = vpop.permute.xlu0 %2669
        %2671 = vrot.lane.b32.xlu0 %v1202, 104
        %v2672 = vpop.permute.xlu0 %2671
        %2673 = vrot.lane.b32.xlu0 %v1207, 104
        %v2674 = vpop.permute.xlu0 %2673
        %2675 = vrot.lane.b32.xlu0 %v1197, 72
        %v2676 = vpop.permute.xlu0 %2675
        %2677 = vrot.lane.b32.xlu0 %v1202, 72
        %v2678 = vpop.permute.xlu0 %2677
        %2679 = vrot.lane.b32.xlu0 %v1207, 72
        %v2680 = vpop.permute.xlu0 %2679
        %v2681 = vsel %vm1234, %v2670, 0
        %v2683 = vsel %vm1234, %v2672, 0
        %v2685 = vsel %vm1234, %v2674, 0
        %v2687 = vsel %vm1234, %v2676, 0
        %v2689 = vsel %vm1234, %v2678, 0
        %v2691 = vsel %vm1234, %v2680, 0
        %2693 = vmatprep.subr.mxu0 0.0
        %2694 = vmatpush1.xpose.msra.mxu0 %v2687
        %2695 = vmatprep.subr.mxu0 0.0
        %2696 = vmatpush1.xpose.msra.mxu0 %v2689
        %2697 = vmatprep.subr.mxu0 0.0
        %2698 = vmatpush1.xpose.msra.mxu0 %v2691
        %2699 = vmatprep.subr.mxu0 0.0
        %2700 = vmatpush1.xpose.msra.mxu0 0.0
        %2701 = vmatprep.subr.mxu0 0.0
        %2702 = vmatpush1.xpose.msra.mxu0 0.0
        %2703 = vmatprep.subr.mxu0 0.0
        %2704 = vmatpush1.xpose.msra.mxu0 0.0
        %2705 = vmatprep.subr.mxu0 0.0
        %2706 = vmatpush1.xpose.msra.mxu0 0.0
        %2707 = vmatprep.subr.mxu0 0.0
        %2708 = vmatpush1.xpose.msra.mxu0 0.0
        %2709 = vmatprep.subr.mxu0 0.0
        %2710 = vmatpush1.xpose.msra.mxu0 0.0
        %2711 = vmatprep.subr.mxu0 0.0
        %2712 = vmatpush1.xpose.msra.mxu0 0.0
        %2713 = vmatprep.subr.mxu0 0.0
        %2714 = vmatpush1.xpose.msra.mxu0 0.0
        %2715 = vmatprep.subr.mxu0 0.0
        %2716 = vmatpush1.xpose.msra.mxu0 0.0
        %2717 = vmatprep.subr.mxu0 0.0
        %2718 = vmatpush1.xpose.msra.mxu0 0.0
        %2719 = vmatprep.subr.mxu0 0.0
        %2720 = vmatpush1.xpose.msra.mxu0 0.0
        %2721 = vmatprep.subr.mxu0 0.0
        %2722 = vmatpush1.xpose.msra.mxu0 0.0
        %2723 = vmatprep.subr.mxu0 0.0
        %2724 = vmatpush1.xpose.msra.mxu0 0.0
        %2725 = vmatprep.subr.mxu0 0.0
        %2726 = vmatpush1.xpose.msra.mxu0 0.0
        %2727 = vmatprep.subr.mxu0 0.0
        %2728 = vmatpush1.xpose.msra.mxu0 0.0
        %2729 = vmatprep.subr.mxu0 0.0
        %2730 = vmatpush1.xpose.msra.mxu0 0.0
        %2731 = vmatprep.subr.mxu0 0.0
        %2732 = vmatpush1.xpose.msra.mxu0 0.0
        %2733 = vmatprep.subr.mxu0 0.0
        %2734 = vmatpush1.xpose.msra.mxu0 0.0
        %2735 = vmatprep.subr.mxu0 0.0
        %2736 = vmatpush1.xpose.msra.mxu0 0.0
        %2737 = vmatprep.subr.mxu0 0.0
        %2738 = vmatpush1.xpose.msra.mxu0 0.0
        %2739 = vmatprep.subr.mxu0 0.0
        %2740 = vmatpush1.xpose.msra.mxu0 0.0
        %2741 = vmatprep.subr.mxu0 0.0
        %2742 = vmatpush1.xpose.msra.mxu0 0.0
        %2743 = vmatprep.subr.mxu0 0.0
        %2744 = vmatpush1.xpose.msra.mxu0 0.0
        %2745 = vmatprep.subr.mxu0 0.0
        %2746 = vmatpush1.xpose.msra.mxu0 0.0
        %2747 = vmatprep.subr.mxu0 0.0
        %2748 = vmatpush1.xpose.msra.mxu0 0.0
        %2749 = vmatprep.subr.mxu0 0.0
        %2750 = vmatpush1.xpose.msra.mxu0 0.0
        %2751 = vmatprep.subr.mxu0 0.0
        %2752 = vmatpush1.xpose.msra.mxu0 0.0
        %2753 = vmatprep.subr.mxu0 0.0
        %2754 = vmatpush1.xpose.msra.mxu0 0.0
        %2755 = vmatprep.subr.mxu0 0.0
        %2756 = vmatpush1.xpose.msra.mxu0 0.0
        %2757 = vmatprep.mubr.f32.mxu0 0.0
        %2758 = vmatmul.mubr.f32.gmra.mrb[0].mxu0 %v2681
        %v2759 = vpop.f32.mrb[0].mxu0
        %v2760 = vadd.f32 0.0, %v2759
        %v2761 = vpop.f32.mrb[0].mxu0
        %2762 = vmatprep.mubr.f32.mxu0 0.0
        %2763 = vmatmul.mubr.f32.gmra.mrb[0].mxu0 %v2683
        %v2764 = vpop.f32.mrb[0].mxu0
        %v2765 = vadd.f32 0.0, %v2764
        %v2766 = vpop.f32.mrb[0].mxu0
        %2767 = vmatprep.mubr.f32.mxu0 0.0
        %2768 = vmatmul.mubr.f32.gmra.mrb[0].mxu0 %v2685
        %v2769 = vpop.f32.mrb[0].mxu0
        %v2770 = vadd.f32 0.0, %v2769
        %v2771 = vpop.f32.mrb[0].mxu0
        %2772 = vdwg.mxu0
        %2773 = vrot.lane.b32.xlu0 %v1212, 104
        %v2774 = vpop.permute.xlu0 %2773
        %2775 = vrot.lane.b32.xlu0 %v1217, 104
        %v2776 = vpop.permute.xlu0 %2775
        %2777 = vrot.lane.b32.xlu0 %v1222, 104
        %v2778 = vpop.permute.xlu0 %2777
        %2779 = vrot.lane.b32.xlu0 %v1212, 72
        %v2780 = vpop.permute.xlu0 %2779
        %2781 = vrot.lane.b32.xlu0 %v1217, 72
        %v2782 = vpop.permute.xlu0 %2781
        %2783 = vrot.lane.b32.xlu0 %v1222, 72
        %v2784 = vpop.permute.xlu0 %2783
        %v2785 = vsel %vm1234, %v2774, 0
        %v2787 = vsel %vm1234, %v2776, 0
        %v2789 = vsel %vm1234, %v2778, 0
        %v2791 = vsel %vm1234, %v2780, 0
        %v2793 = vsel %vm1234, %v2782, 0
        %v2795 = vsel %vm1234, %v2784, 0
        %2797 = vmatprep.subr.mxu0 0.0
        %2798 = vmatpush1.xpose.msra.mxu0 %v2791
        %2799 = vmatprep.subr.mxu0 0.0
        %2800 = vmatpush1.xpose.msra.mxu0 %v2793
        %2801 = vmatprep.subr.mxu0 0.0
        %2802 = vmatpush1.xpose.msra.mxu0 %v2795
        %2803 = vmatprep.subr.mxu0 0.0
        %2804 = vmatpush1.xpose.msra.mxu0 0.0
        %2805 = vmatprep.subr.mxu0 0.0
        %2806 = vmatpush1.xpose.msra.mxu0 0.0
        %2807 = vmatprep.subr.mxu0 0.0
        %2808 = vmatpush1.xpose.msra.mxu0 0.0
        %2809 = vmatprep.subr.mxu0 0.0
        %2810 = vmatpush1.xpose.msra.mxu0 0.0
        %2811 = vmatprep.subr.mxu0 0.0
        %2812 = vmatpush1.xpose.msra.mxu0 0.0
        %2813 = vmatprep.subr.mxu0 0.0
        %2814 = vmatpush1.xpose.msra.mxu0 0.0
        %2815 = vmatprep.subr.mxu0 0.0
        %2816 = vmatpush1.xpose.msra.mxu0 0.0
        %2817 = vmatprep.subr.mxu0 0.0
        %2818 = vmatpush1.xpose.msra.mxu0 0.0
        %2819 = vmatprep.subr.mxu0 0.0
        %2820 = vmatpush1.xpose.msra.mxu0 0.0
        %2821 = vmatprep.subr.mxu0 0.0
        %2822 = vmatpush1.xpose.msra.mxu0 0.0
        %2823 = vmatprep.subr.mxu0 0.0
        %2824 = vmatpush1.xpose.msra.mxu0 0.0
        %2825 = vmatprep.subr.mxu0 0.0
        %2826 = vmatpush1.xpose.msra.mxu0 0.0
        %2827 = vmatprep.subr.mxu0 0.0
        %2828 = vmatpush1.xpose.msra.mxu0 0.0
        %2829 = vmatprep.subr.mxu0 0.0
        %2830 = vmatpush1.xpose.msra.mxu0 0.0
        %2831 = vmatprep.subr.mxu0 0.0
        %2832 = vmatpush1.xpose.msra.mxu0 0.0
        %2833 = vmatprep.subr.mxu0 0.0
        %2834 = vmatpush1.xpose.msra.mxu0 0.0
        %2835 = vmatprep.subr.mxu0 0.0
        %2836 = vmatpush1.xpose.msra.mxu0 0.0
        %2837 = vmatprep.subr.mxu0 0.0
        %2838 = vmatpush1.xpose.msra.mxu0 0.0
        %2839 = vmatprep.subr.mxu0 0.0
        %2840 = vmatpush1.xpose.msra.mxu0 0.0
        %2841 = vmatprep.subr.mxu0 0.0
        %2842 = vmatpush1.xpose.msra.mxu0 0.0
        %2843 = vmatprep.subr.mxu0 0.0
        %2844 = vmatpush1.xpose.msra.mxu0 0.0
        %2845 = vmatprep.subr.mxu0 0.0
        %2846 = vmatpush1.xpose.msra.mxu0 0.0
        %2847 = vmatprep.subr.mxu0 0.0
        %2848 = vmatpush1.xpose.msra.mxu0 0.0
        %2849 = vmatprep.subr.mxu0 0.0
        %2850 = vmatpush1.xpose.msra.mxu0 0.0
        %2851 = vmatprep.subr.mxu0 0.0
        %2852 = vmatpush1.xpose.msra.mxu0 0.0
        %2853 = vmatprep.subr.mxu0 0.0
        %2854 = vmatpush1.xpose.msra.mxu0 0.0
        %2855 = vmatprep.subr.mxu0 0.0
        %2856 = vmatpush1.xpose.msra.mxu0 0.0
        %2857 = vmatprep.subr.mxu0 0.0
        %2858 = vmatpush1.xpose.msra.mxu0 0.0
        %2859 = vmatprep.subr.mxu0 0.0
        %2860 = vmatpush1.xpose.msra.mxu0 0.0
        %2861 = vmatprep.mubr.f32.mxu0 0.0
        %2862 = vmatmul.mubr.f32.gmra.mrb[0].mxu0 %v2785
        %v2863 = vpop.f32.mrb[0].mxu0
        %v2864 = vadd.f32 0.0, %v2863
        %v2865 = vpop.f32.mrb[0].mxu0
        %2866 = vmatprep.mubr.f32.mxu0 0.0
        %2867 = vmatmul.mubr.f32.gmra.mrb[0].mxu0 %v2787
        %v2868 = vpop.f32.mrb[0].mxu0
        %v2869 = vadd.f32 0.0, %v2868
        %v2870 = vpop.f32.mrb[0].mxu0
        %2871 = vmatprep.mubr.f32.mxu0 0.0
        %2872 = vmatmul.mubr.f32.gmra.mrb[0].mxu0 %v2789
        %v2873 = vpop.f32.mrb[0].mxu0
        %v2874 = vadd.f32 0.0, %v2873
        %v2875 = vpop.f32.mrb[0].mxu0
        %2876 = vdwg.mxu0
        %v2877 = vmul.f32 %v2760, 0.35355338
        %v2878 = vmul.f32 %v2765, 0.35355338
        %v2879 = vmul.f32 %v2770, 0.35355338
        %v2880 = vmul.f32 %v2864, 0.35355338
        %v2881 = vmul.f32 %v2869, 0.35355338
        %v2882 = vmul.f32 %v2874, 0.35355338
        %v2883 = vsel %vm1435, %v2877, -1e+30
        %v2884 = vsel %vm1435, %v2878, -1e+30
        %v2885 = vsel %vm1435, %v2879, -1e+30
        %v2886 = vsel %vm1435, %v2880, -1e+30
        %v2887 = vsel %vm1435, %v2881, -1e+30
        %v2888 = vsel %vm1435, %v2882, -1e+30
        %v2889 = vsel %vm1442, %v2883, -inf
        %2890 = vmax.xlane.f32.xlu0 %v2889
        %v2891 = vpop.xlane.xlu0 %2890
        %v2892 = vsel %vm1442, %v2884, -inf
        %2893 = vmax.xlane.f32.xlu0 %v2892
        %v2894 = vpop.xlane.xlu0 %2893
        %v2895 = vsel %vm1442, %v2885, -inf
        %2896 = vmax.xlane.f32.xlu0 %v2895
        %v2897 = vpop.xlane.xlu0 %2896
        %v2898 = vsel %vm1442, %v2886, -inf
        %2899 = vmax.xlane.f32.xlu0 %v2898
        %v2900 = vpop.xlane.xlu0 %2899
        %v2901 = vsel %vm1442, %v2887, -inf
        %2902 = vmax.xlane.f32.xlu0 %v2901
        %v2903 = vpop.xlane.xlu0 %2902
        %v2904 = vsel %vm1442, %v2888, -inf
        %2905 = vmax.xlane.f32.xlu0 %v2904
        %v2906 = vpop.xlane.xlu0 %2905
        %v2907 = vsub.f32 %v2883, %v2891
        %v2908 = vsub.f32 %v2884, %v2894
        %v2909 = vsub.f32 %v2885, %v2897
        %v2910 = vsub.f32 %v2886, %v2900
        %v2911 = vsub.f32 %v2887, %v2903
        %v2912 = vsub.f32 %v2888, %v2906
        %v2913 = vmul.f32 %v2907, 1.442695
        %v2914 = vpow.pop %v2913
        %v2915 = vmul.f32 %v2908, 1.442695
        %v2916 = vpow.pop %v2915
        %v2917 = vmul.f32 %v2909, 1.442695
        %v2918 = vpow.pop %v2917
        %v2919 = vmul.f32 %v2910, 1.442695
        %v2920 = vpow.pop %v2919
        %v2921 = vmul.f32 %v2911, 1.442695
        %v2922 = vpow.pop %v2921
        %v2923 = vmul.f32 %v2912, 1.442695
        %v2924 = vpow.pop %v2923
        %v2925 = vsel %vm1442, %v2914, 0.0
        %2926 = vadd.xlane.f32.xlu0 %v2925
        %v2927 = vpop.xlane.xlu0 %2926
        %v2928 = vsel %vm1442, %v2916, 0.0
        %2929 = vadd.xlane.f32.xlu0 %v2928
        %v2930 = vpop.xlane.xlu0 %2929
        %v2931 = vsel %vm1442, %v2918, 0.0
        %2932 = vadd.xlane.f32.xlu0 %v2931
        %v2933 = vpop.xlane.xlu0 %2932
        %v2934 = vsel %vm1442, %v2920, 0.0
        %2935 = vadd.xlane.f32.xlu0 %v2934
        %v2936 = vpop.xlane.xlu0 %2935
        %v2937 = vsel %vm1442, %v2922, 0.0
        %2938 = vadd.xlane.f32.xlu0 %v2937
        %v2939 = vpop.xlane.xlu0 %2938
        %v2940 = vsel %vm1442, %v2924, 0.0
        %2941 = vadd.xlane.f32.xlu0 %v2940
        %v2942 = vpop.xlane.xlu0 %2941
        %v2943 = vrcp.pop %v2927
        %v2944 = vmul.f32 %v2914, %v2943
        %v2945 = vrcp.pop %v2930
        %v2946 = vmul.f32 %v2916, %v2945
        %v2947 = vrcp.pop %v2933
        %v2948 = vmul.f32 %v2918, %v2947
        %v2949 = vrcp.pop %v2936
        %v2950 = vmul.f32 %v2920, %v2949
        %v2951 = vrcp.pop %v2939
        %v2952 = vmul.f32 %v2922, %v2951
        %v2953 = vrcp.pop %v2942
        %v2954 = vmul.f32 %v2924, %v2953
        %2955 = vrot.lane.b32.xlu0 %v1197, 40
        %v2956 = vpop.permute.xlu0 %2955
        %2957 = vrot.lane.b32.xlu0 %v1202, 40
        %v2958 = vpop.permute.xlu0 %2957
        %2959 = vrot.lane.b32.xlu0 %v1207, 40
        %v2960 = vpop.permute.xlu0 %2959
        %v2965 = vsel %vm1442, %v2944, 0
        %v2968 = vsel %vm1442, %v2946, 0
        %v2971 = vsel %vm1442, %v2948, 0
        %2973 = vmatprep.subr.mxu0 0.0
        %2974 = vmatpush1.msra.mxu0 %v2956
        %2975 = vmatprep.subr.mxu0 0.0
        %2976 = vmatpush1.msra.mxu0 %v2958
        %2977 = vmatprep.subr.mxu0 0.0
        %2978 = vmatpush1.msra.mxu0 %v2960
        %2979 = vmatprep.subr.mxu0 0.0
        %2980 = vmatpush1.msra.mxu0 0.0
        %2981 = vmatprep.subr.mxu0 0.0
        %2982 = vmatpush1.msra.mxu0 0.0
        %2983 = vmatprep.subr.mxu0 0.0
        %2984 = vmatpush1.msra.mxu0 0.0
        %2985 = vmatprep.subr.mxu0 0.0
        %2986 = vmatpush1.msra.mxu0 0.0
        %2987 = vmatprep.subr.mxu0 0.0
        %2988 = vmatpush1.msra.mxu0 0.0
        %2989 = vmatprep.subr.mxu0 0.0
        %2990 = vmatpush1.msra.mxu0 0.0
        %2991 = vmatprep.subr.mxu0 0.0
        %2992 = vmatpush1.msra.mxu0 0.0
        %2993 = vmatprep.subr.mxu0 0.0
        %2994 = vmatpush1.msra.mxu0 0.0
        %2995 = vmatprep.subr.mxu0 0.0
        %2996 = vmatpush1.msra.mxu0 0.0
        %2997 = vmatprep.subr.mxu0 0.0
        %2998 = vmatpush1.msra.mxu0 0.0
        %2999 = vmatprep.subr.mxu0 0.0
        %3000 = vmatpush1.msra.mxu0 0.0
        %3001 = vmatprep.subr.mxu0 0.0
        %3002 = vmatpush1.msra.mxu0 0.0
        %3003 = vmatprep.subr.mxu0 0.0
        %3004 = vmatpush1.msra.mxu0 0.0
        %3005 = vmatprep.subr.mxu0 0.0
        %3006 = vmatpush1.msra.mxu0 0.0
        %3007 = vmatprep.subr.mxu0 0.0
        %3008 = vmatpush1.msra.mxu0 0.0
        %3009 = vmatprep.subr.mxu0 0.0
        %3010 = vmatpush1.msra.mxu0 0.0
        %3011 = vmatprep.subr.mxu0 0.0
        %3012 = vmatpush1.msra.mxu0 0.0
        %3013 = vmatprep.subr.mxu0 0.0
        %3014 = vmatpush1.msra.mxu0 0.0
        %3015 = vmatprep.subr.mxu0 0.0
        %3016 = vmatpush1.msra.mxu0 0.0
        %3017 = vmatprep.subr.mxu0 0.0
        %3018 = vmatpush1.msra.mxu0 0.0
        %3019 = vmatprep.subr.mxu0 0.0
        %3020 = vmatpush1.msra.mxu0 0.0
        %3021 = vmatprep.subr.mxu0 0.0
        %3022 = vmatpush1.msra.mxu0 0.0
        %3023 = vmatprep.subr.mxu0 0.0
        %3024 = vmatpush1.msra.mxu0 0.0
        %3025 = vmatprep.subr.mxu0 0.0
        %3026 = vmatpush1.msra.mxu0 0.0
        %3027 = vmatprep.subr.mxu0 0.0
        %3028 = vmatpush1.msra.mxu0 0.0
        %3029 = vmatprep.subr.mxu0 0.0
        %3030 = vmatpush1.msra.mxu0 0.0
        %3031 = vmatprep.subr.mxu0 0.0
        %3032 = vmatpush1.msra.mxu0 0.0
        %3033 = vmatprep.subr.mxu0 0.0
        %3034 = vmatpush1.msra.mxu0 0.0
        %3035 = vmatprep.subr.mxu0 0.0
        %3036 = vmatpush1.msra.mxu0 0.0
        %3037 = vmatprep.mubr.f32.mxu0 0.0
        %3038 = vmatmul.mubr.f32.gmra.mrb[0].mxu0 %v2965
        %v3039 = vpop.f32.mrb[0].mxu0
        %v3040 = vadd.f32 0.0, %v3039
        %v3041 = vpop.f32.mrb[0].mxu0
        %3042 = vmatprep.mubr.f32.mxu0 0.0
        %3043 = vmatmul.mubr.f32.gmra.mrb[0].mxu0 %v2968
        %v3044 = vpop.f32.mrb[0].mxu0
        %v3045 = vadd.f32 0.0, %v3044
        %v3046 = vpop.f32.mrb[0].mxu0
        %3047 = vmatprep.mubr.f32.mxu0 0.0
        %3048 = vmatmul.mubr.f32.gmra.mrb[0].mxu0 %v2971
        %v3049 = vpop.f32.mrb[0].mxu0
        %v3050 = vadd.f32 0.0, %v3049
        %v3051 = vpop.f32.mrb[0].mxu0
        %3052 = vdwg.mxu0
        %3053 = vrot.lane.b32.xlu0 %v1212, 40
        %v3054 = vpop.permute.xlu0 %3053
        %3055 = vrot.lane.b32.xlu0 %v1217, 40
        %v3056 = vpop.permute.xlu0 %3055
        %3057 = vrot.lane.b32.xlu0 %v1222, 40
        %v3058 = vpop.permute.xlu0 %3057
        %v3063 = vsel %vm1442, %v2950, 0
        %v3066 = vsel %vm1442, %v2952, 0
        %v3069 = vsel %vm1442, %v2954, 0
        %3071 = vmatprep.subr.mxu0 0.0
        %3072 = vmatpush1.msra.mxu0 %v3054
        %3073 = vmatprep.subr.mxu0 0.0
        %3074 = vmatpush1.msra.mxu0 %v3056
        %3075 = vmatprep.subr.mxu0 0.0
        %3076 = vmatpush1.msra.mxu0 %v3058
        %3077 = vmatprep.subr.mxu0 0.0
        %3078 = vmatpush1.msra.mxu0 0.0
        %3079 = vmatprep.subr.mxu0 0.0
        %3080 = vmatpush1.msra.mxu0 0.0
        %3081 = vmatprep.subr.mxu0 0.0
        %3082 = vmatpush1.msra.mxu0 0.0
        %3083 = vmatprep.subr.mxu0 0.0
        %3084 = vmatpush1.msra.mxu0 0.0
        %3085 = vmatprep.subr.mxu0 0.0
        %3086 = vmatpush1.msra.mxu0 0.0
        %3087 = vmatprep.subr.mxu0 0.0
        %3088 = vmatpush1.msra.mxu0 0.0
        %3089 = vmatprep.subr.mxu0 0.0
        %3090 = vmatpush1.msra.mxu0 0.0
        %3091 = vmatprep.subr.mxu0 0.0
        %3092 = vmatpush1.msra.mxu0 0.0
        %3093 = vmatprep.subr.mxu0 0.0
        %3094 = vmatpush1.msra.mxu0 0.0
        %3095 = vmatprep.subr.mxu0 0.0
        %3096 = vmatpush1.msra.mxu0 0.0
        %3097 = vmatprep.subr.mxu0 0.0
        %3098 = vmatpush1.msra.mxu0 0.0
        %3099 = vmatprep.subr.mxu0 0.0
        %3100 = vmatpush1.msra.mxu0 0.0
        %3101 = vmatprep.subr.mxu0 0.0
        %3102 = vmatpush1.msra.mxu0 0.0
        %3103 = vmatprep.subr.mxu0 0.0
        %3104 = vmatpush1.msra.mxu0 0.0
        %3105 = vmatprep.subr.mxu0 0.0
        %3106 = vmatpush1.msra.mxu0 0.0
        %3107 = vmatprep.subr.mxu0 0.0
        %3108 = vmatpush1.msra.mxu0 0.0
        %3109 = vmatprep.subr.mxu0 0.0
        %3110 = vmatpush1.msra.mxu0 0.0
        %3111 = vmatprep.subr.mxu0 0.0
        %3112 = vmatpush1.msra.mxu0 0.0
        %3113 = vmatprep.subr.mxu0 0.0
        %3114 = vmatpush1.msra.mxu0 0.0
        %3115 = vmatprep.subr.mxu0 0.0
        %3116 = vmatpush1.msra.mxu0 0.0
        %3117 = vmatprep.subr.mxu0 0.0
        %3118 = vmatpush1.msra.mxu0 0.0
        %3119 = vmatprep.subr.mxu0 0.0
        %3120 = vmatpush1.msra.mxu0 0.0
        %3121 = vmatprep.subr.mxu0 0.0
        %3122 = vmatpush1.msra.mxu0 0.0
        %3123 = vmatprep.subr.mxu0 0.0
        %3124 = vmatpush1.msra.mxu0 0.0
        %3125 = vmatprep.subr.mxu0 0.0
        %3126 = vmatpush1.msra.mxu0 0.0
        %3127 = vmatprep.subr.mxu0 0.0
        %3128 = vmatpush1.msra.mxu0 0.0
        %3129 = vmatprep.subr.mxu0 0.0
        %3130 = vmatpush1.msra.mxu0 0.0
        %3131 = vmatprep.subr.mxu0 0.0
        %3132 = vmatpush1.msra.mxu0 0.0
        %3133 = vmatprep.subr.mxu0 0.0
        %3134 = vmatpush1.msra.mxu0 0.0
        %3135 = vmatprep.mubr.f32.mxu0 0.0
        %3136 = vmatmul.mubr.f32.gmra.mrb[0].mxu0 %v3063
        %v3137 = vpop.f32.mrb[0].mxu0
        %v3138 = vadd.f32 0.0, %v3137
        %v3139 = vpop.f32.mrb[0].mxu0
        %3140 = vmatprep.mubr.f32.mxu0 0.0
        %3141 = vmatmul.mubr.f32.gmra.mrb[0].mxu0 %v3066
        %v3142 = vpop.f32.mrb[0].mxu0
        %v3143 = vadd.f32 0.0, %v3142
        %v3144 = vpop.f32.mrb[0].mxu0
        %3145 = vmatprep.mubr.f32.mxu0 0.0
        %3146 = vmatmul.mubr.f32.gmra.mrb[0].mxu0 %v3069
        %v3147 = vpop.f32.mrb[0].mxu0
        %v3148 = vadd.f32 0.0, %v3147
        %v3149 = vpop.f32.mrb[0].mxu0
        %3150 = vdwg.mxu0
        %3157 = vrot.lane.b32.xlu0 %v2076, 8
        %v3158 = vpop.permute.xlu0 %3157
        %3159 = vrot.lane.b32.xlu0 %v2081, 8
        %v3160 = vpop.permute.xlu0 %3159
        %3161 = vrot.lane.b32.xlu0 %v2086, 8
        %v3162 = vpop.permute.xlu0 %3161
        %3163 = vrot.lane.b32.xlu0 %v2174, 8
        %v3164 = vpop.permute.xlu0 %3163
        %3165 = vrot.lane.b32.xlu0 %v2179, 8
        %v3166 = vpop.permute.xlu0 %3165
        %3167 = vrot.lane.b32.xlu0 %v2184, 8
        %v3168 = vpop.permute.xlu0 %3167
        %3181 = vrot.lane.b32.xlu0 %v2558, 16
        %v3182 = vpop.permute.xlu0 %3181
        %3183 = vrot.lane.b32.xlu0 %v2563, 16
        %v3184 = vpop.permute.xlu0 %3183
        %3185 = vrot.lane.b32.xlu0 %v2568, 16
        %v3186 = vpop.permute.xlu0 %3185
        %3187 = vrot.lane.b32.xlu0 %v2656, 16
        %v3188 = vpop.permute.xlu0 %3187
        %3189 = vrot.lane.b32.xlu0 %v2661, 16
        %v3190 = vpop.permute.xlu0 %3189
        %3191 = vrot.lane.b32.xlu0 %v2666, 16
        %v3192 = vpop.permute.xlu0 %3191
        %3205 = vrot.lane.b32.xlu0 %v3040, 24
        %v3206 = vpop.permute.xlu0 %3205
        %3207 = vrot.lane.b32.xlu0 %v3045, 24
        %v3208 = vpop.permute.xlu0 %3207
        %3209 = vrot.lane.b32.xlu0 %v3050, 24
        %v3210 = vpop.permute.xlu0 %3209
        %3211 = vrot.lane.b32.xlu0 %v3138, 24
        %v3212 = vpop.permute.xlu0 %3211
        %3213 = vrot.lane.b32.xlu0 %v3143, 24
        %v3214 = vpop.permute.xlu0 %3213
        %3215 = vrot.lane.b32.xlu0 %v3148, 24
        %v3216 = vpop.permute.xlu0 %3215
        %v3223 = vsel %vm1234, %v1594, %v3158
        %v3224 = vsel %vm1234, %v1599, %v3160
        %v3225 = vsel %vm1234, %v1604, %v3162
        %v3226 = vsel %vm1234, %v1692, %v3164
        %v3227 = vsel %vm1234, %v1697, %v3166
        %v3228 = vsel %vm1234, %v1702, %v3168
        %vm3229 = vcmask 130048
        %v3230 = vsel %vm3229, %v3223, %v3182
        %v3231 = vsel %vm3229, %v3224, %v3184
        %v3232 = vsel %vm3229, %v3225, %v3186
        %v3233 = vsel %vm3229, %v3226, %v3188
        %v3234 = vsel %vm3229, %v3227, %v3190
        %v3235 = vsel %vm3229, %v3228, %v3192
        %v3236 = vsel %vm1442, %v3230, %v3206
        %v3237 = vsel %vm1442, %v3231, %v3208
        %v3238 = vsel %vm1442, %v3232, %v3210
        %v3239 = vsel %vm1442, %v3233, %v3212
        %v3240 = vsel %vm1442, %v3234, %v3214
        %v3241 = vsel %vm1442, %v3235, %v3216
        %v3242 = vld [vmem:[%s811] sm:$0xff]
        %v3243 = vld [vmem:[%s811 + $0x8] sm:$0xff]
        %v3244 = vld [vmem:[%s811 + $0x10] sm:$0xff]
        %v3245 = vld [vmem:[%s811 + $0x18] sm:$0xff]
        %v3246 = vld [vmem:[%s814] sm:$0x1]
        %v3248 = vlaneseq
        %v3249 = vshrl.u32 %v3248, 7
        %v3250 = vsub.s32 0, %v3249
        %v3251 = vrot.slane %v3246, %v3250
        %v3254 = vsel %vm997, %v3236, 0
        %v3257 = vsel %vm997, %v3237, 0
        %v3260 = vsel %vm997, %v3238, 0
        %v3263 = vsel %vm997, %v3239, 0
        %v3266 = vsel %vm997, %v3240, 0
        %v3269 = vsel %vm997, %v3241, 0
        %3271 = vmatprep.subr.mxu0 0.0
        %3272 = vmatpush1.msra.mxu0 %v3242
        %3273 = vmatprep.subr.mxu0 0.0
        %3274 = vmatpush1.msra.mxu0 %v3243
        %3275 = vmatprep.subr.mxu0 0.0
        %3276 = vmatpush1.msra.mxu0 %v3244
        %3277 = vmatprep.subr.mxu0 0.0
        %3278 = vmatpush1.msra.mxu0 %v3245
        %3279 = vmatprep.subr.mxu0 0.0
        %3280 = vmatpush1.msra.mxu0 0.0
        %3281 = vmatprep.subr.mxu0 0.0
        %3282 = vmatpush1.msra.mxu0 0.0
        %3283 = vmatprep.subr.mxu0 0.0
        %3284 = vmatpush1.msra.mxu0 0.0
        %3285 = vmatprep.subr.mxu0 0.0
        %3286 = vmatpush1.msra.mxu0 0.0
        %3287 = vmatprep.subr.mxu0 0.0
        %3288 = vmatpush1.msra.mxu0 0.0
        %3289 = vmatprep.subr.mxu0 0.0
        %3290 = vmatpush1.msra.mxu0 0.0
        %3291 = vmatprep.subr.mxu0 0.0
        %3292 = vmatpush1.msra.mxu0 0.0
        %3293 = vmatprep.subr.mxu0 0.0
        %3294 = vmatpush1.msra.mxu0 0.0
        %3295 = vmatprep.subr.mxu0 0.0
        %3296 = vmatpush1.msra.mxu0 0.0
        %3297 = vmatprep.subr.mxu0 0.0
        %3298 = vmatpush1.msra.mxu0 0.0
        %3299 = vmatprep.subr.mxu0 0.0
        %3300 = vmatpush1.msra.mxu0 0.0
        %3301 = vmatprep.subr.mxu0 0.0
        %3302 = vmatpush1.msra.mxu0 0.0
        %3303 = vmatprep.subr.mxu0 0.0
        %3304 = vmatpush1.msra.mxu0 0.0
        %3305 = vmatprep.subr.mxu0 0.0
        %3306 = vmatpush1.msra.mxu0 0.0
        %3307 = vmatprep.subr.mxu0 0.0
        %3308 = vmatpush1.msra.mxu0 0.0
        %3309 = vmatprep.subr.mxu0 0.0
        %3310 = vmatpush1.msra.mxu0 0.0
        %3311 = vmatprep.subr.mxu0 0.0
        %3312 = vmatpush1.msra.mxu0 0.0
        %3313 = vmatprep.subr.mxu0 0.0
        %3314 = vmatpush1.msra.mxu0 0.0
        %3315 = vmatprep.subr.mxu0 0.0
        %3316 = vmatpush1.msra.mxu0 0.0
        %3317 = vmatprep.subr.mxu0 0.0
        %3318 = vmatpush1.msra.mxu0 0.0
        %3319 = vmatprep.subr.mxu0 0.0
        %3320 = vmatpush1.msra.mxu0 0.0
        %3321 = vmatprep.subr.mxu0 0.0
        %3322 = vmatpush1.msra.mxu0 0.0
        %3323 = vmatprep.subr.mxu0 0.0
        %3324 = vmatpush1.msra.mxu0 0.0
        %3325 = vmatprep.subr.mxu0 0.0
        %3326 = vmatpush1.msra.mxu0 0.0
        %3327 = vmatprep.subr.mxu0 0.0
        %3328 = vmatpush1.msra.mxu0 0.0
        %3329 = vmatprep.subr.mxu0 0.0
        %3330 = vmatpush1.msra.mxu0 0.0
        %3331 = vmatprep.subr.mxu0 0.0
        %3332 = vmatpush1.msra.mxu0 0.0
        %3333 = vmatprep.subr.mxu0 0.0
        %3334 = vmatpush1.msra.mxu0 0.0
        %3335 = vmatprep.mubr.f32.mxu0 0.0
        %3336 = vmatmul.mubr.f32.gmra.mrb[0].mxu0 %v3254
        %v3337 = vpop.f32.mrb[0].mxu0
        %v3338 = vadd.f32 %v3251, %v3337
        %v3339 = vpop.f32.mrb[0].mxu0
        %3340 = vmatprep.mubr.f32.mxu0 0.0
        %3341 = vmatmul.mubr.f32.gmra.mrb[0].mxu0 %v3257
        %v3342 = vpop.f32.mrb[0].mxu0
        %v3343 = vadd.f32 %v3251, %v3342
        %v3344 = vpop.f32.mrb[0].mxu0
        %3345 = vmatprep.mubr.f32.mxu0 0.0
        %3346 = vmatmul.mubr.f32.gmra.mrb[0].mxu0 %v3260
        %v3347 = vpop.f32.mrb[0].mxu0
        %v3348 = vadd.f32 %v3251, %v3347
        %v3349 = vpop.f32.mrb[0].mxu0
        %3350 = vmatprep.mubr.f32.mxu0 0.0
        %3351 = vmatmul.mubr.f32.gmra.mrb[0].mxu0 %v3263
        %v3352 = vpop.f32.mrb[0].mxu0
        %v3353 = vadd.f32 %v3251, %v3352
        %v3354 = vpop.f32.mrb[0].mxu0
        %3355 = vmatprep.mubr.f32.mxu0 0.0
        %3356 = vmatmul.mubr.f32.gmra.mrb[0].mxu0 %v3266
        %v3357 = vpop.f32.mrb[0].mxu0
        %v3358 = vadd.f32 %v3251, %v3357
        %v3359 = vpop.f32.mrb[0].mxu0
        %3360 = vmatprep.mubr.f32.mxu0 0.0
        %3361 = vmatmul.mubr.f32.gmra.mrb[0].mxu0 %v3269
        %v3362 = vpop.f32.mrb[0].mxu0
        %v3363 = vadd.f32 %v3251, %v3362
        %v3364 = vpop.f32.mrb[0].mxu0
        %3365 = vdwg.mxu0
        %v3366 = vld [vmem:[%s817] sm:$0x1]
        %v3368 = vlaneseq
        %v3369 = vshrl.u32 %v3368, 7
        %v3370 = vsub.s32 0, %v3369
        %v3371 = vrot.slane %v3366, %v3370
        %v3373 = vmul.f32 %v3371, %v3338
        %v3374 = vmul.f32 %v3371, %v3343
        %v3375 = vmul.f32 %v3371, %v3348
        %v3376 = vmul.f32 %v3371, %v3353
        %v3377 = vmul.f32 %v3371, %v3358
        %v3378 = vmul.f32 %v3371, %v3363
        %v3379 = vadd.f32 %v986, %v3373
        %v3380 = vadd.f32 %v987, %v3374
        %v3381 = vadd.f32 %v988, %v3375
        %v3382 = vadd.f32 %v989, %v3376
        %v3383 = vadd.f32 %v990, %v3377
        %v3384 = vadd.f32 %v991, %v3378
        %v3385 = vld [vmem:[%s820] sm:$0x1]
        %v3386 = vld [vmem:[%s823] sm:$0x1]
        %v3387 = vsel %vm997, %v3379, 0.0
        %3388 = vadd.xlane.f32.xlu0 %v3387
        %v3389 = vpop.xlane.xlu0 %3388
        %v3390 = vsel %vm997, %v3380, 0.0
        %3391 = vadd.xlane.f32.xlu0 %v3390
        %v3392 = vpop.xlane.xlu0 %3391
        %v3393 = vsel %vm997, %v3381, 0.0
        %3394 = vadd.xlane.f32.xlu0 %v3393
        %v3395 = vpop.xlane.xlu0 %3394
        %v3396 = vsel %vm997, %v3382, 0.0
        %3397 = vadd.xlane.f32.xlu0 %v3396
        %v3398 = vpop.xlane.xlu0 %3397
        %v3399 = vsel %vm997, %v3383, 0.0
        %3400 = vadd.xlane.f32.xlu0 %v3399
        %v3401 = vpop.xlane.xlu0 %3400
        %v3402 = vsel %vm997, %v3384, 0.0
        %3403 = vadd.xlane.f32.xlu0 %v3402
        %v3404 = vpop.xlane.xlu0 %3403
        %v3405 = vmul.f32 %v3389, %v1016
        %v3406 = vmul.f32 %v3392, %v1016
        %v3407 = vmul.f32 %v3395, %v1016
        %v3408 = vmul.f32 %v3398, %v1016
        %v3409 = vmul.f32 %v3401, %v1016
        %v3410 = vmul.f32 %v3404, %v1016
        %v3411 = vsub.f32 %v3379, %v3405
        %v3412 = vsub.f32 %v3380, %v3406
        %v3413 = vsub.f32 %v3381, %v3407
        %v3414 = vsub.f32 %v3382, %v3408
        %v3415 = vsub.f32 %v3383, %v3409
        %v3416 = vsub.f32 %v3384, %v3410
        %v3417 = vmul.f32 %v3411, %v3411
        %v3418 = vmul.f32 %v3412, %v3412
        %v3419 = vmul.f32 %v3413, %v3413
        %v3420 = vmul.f32 %v3414, %v3414
        %v3421 = vmul.f32 %v3415, %v3415
        %v3422 = vmul.f32 %v3416, %v3416
        %v3423 = vsel %vm997, %v3417, 0.0
        %3424 = vadd.xlane.f32.xlu0 %v3423
        %v3425 = vpop.xlane.xlu0 %3424
        %v3426 = vsel %vm997, %v3418, 0.0
        %3427 = vadd.xlane.f32.xlu0 %v3426
        %v3428 = vpop.xlane.xlu0 %3427
        %v3429 = vsel %vm997, %v3419, 0.0
        %3430 = vadd.xlane.f32.xlu0 %v3429
        %v3431 = vpop.xlane.xlu0 %3430
        %v3432 = vsel %vm997, %v3420, 0.0
        %3433 = vadd.xlane.f32.xlu0 %v3432
        %v3434 = vpop.xlane.xlu0 %3433
        %v3435 = vsel %vm997, %v3421, 0.0
        %3436 = vadd.xlane.f32.xlu0 %v3435
        %v3437 = vpop.xlane.xlu0 %3436
        %v3438 = vsel %vm997, %v3422, 0.0
        %3439 = vadd.xlane.f32.xlu0 %v3438
        %v3440 = vpop.xlane.xlu0 %3439
        %v3441 = vmul.f32 %v3425, %v1016
        %v3442 = vmul.f32 %v3428, %v1016
        %v3443 = vmul.f32 %v3431, %v1016
        %v3444 = vmul.f32 %v3434, %v1016
        %v3445 = vmul.f32 %v3437, %v1016
        %v3446 = vmul.f32 %v3440, %v1016
        %v3447 = vadd.f32 %v3441, 1e-06
        %v3448 = vadd.f32 %v3442, 1e-06
        %v3449 = vadd.f32 %v3443, 1e-06
        %v3450 = vadd.f32 %v3444, 1e-06
        %v3451 = vadd.f32 %v3445, 1e-06
        %v3452 = vadd.f32 %v3446, 1e-06
        %v3453 = vrsqrt.pop %v3447
        %v3454 = vrsqrt.pop %v3448
        %v3455 = vrsqrt.pop %v3449
        %v3456 = vrsqrt.pop %v3450
        %v3457 = vrsqrt.pop %v3451
        %v3458 = vrsqrt.pop %v3452
        %v3459 = vmul.f32 %v3411, %v3453
        %v3460 = vmul.f32 %v3412, %v3454
        %v3461 = vmul.f32 %v3413, %v3455
        %v3462 = vmul.f32 %v3414, %v3456
        %v3463 = vmul.f32 %v3415, %v3457
        %v3464 = vmul.f32 %v3416, %v3458
        %v3466 = vlaneseq
        %v3467 = vshrl.u32 %v3466, 7
        %v3468 = vsub.s32 0, %v3467
        %v3469 = vrot.slane %v3385, %v3468
        %v3471 = vmul.f32 %v3459, %v3469
        %v3472 = vmul.f32 %v3460, %v3469
        %v3473 = vmul.f32 %v3461, %v3469
        %v3474 = vmul.f32 %v3462, %v3469
        %v3475 = vmul.f32 %v3463, %v3469
        %v3476 = vmul.f32 %v3464, %v3469
        %v3478 = vlaneseq
        %v3479 = vshrl.u32 %v3478, 7
        %v3480 = vsub.s32 0, %v3479
        %v3481 = vrot.slane %v3386, %v3480
        %v3483 = vadd.f32 %v3471, %v3481
        %v3484 = vadd.f32 %v3472, %v3481
        %v3485 = vadd.f32 %v3473, %v3481
        %v3486 = vadd.f32 %v3474, %v3481
        %v3487 = vadd.f32 %v3475, %v3481
        %v3488 = vadd.f32 %v3476, %v3481
        %v3489 = vld [vmem:[%s828] sm:$0xff]
        %v3490 = vld [vmem:[%s828 + $0x8] sm:$0xff]
        %v3491 = vld [vmem:[%s828 + $0x10] sm:$0xff]
        %v3492 = vld [vmem:[%s828 + $0x18] sm:$0xff]
        %v3493 = vld [vmem:[%s831] sm:$0x1]
        %v3495 = vlaneseq
        %v3496 = vshrl.u32 %v3495, 7
        %v3497 = vsub.s32 0, %v3496
        %v3498 = vrot.slane %v3493, %v3497
        %v3501 = vsel %vm997, %v3483, 0
        %v3504 = vsel %vm997, %v3484, 0
        %v3507 = vsel %vm997, %v3485, 0
        %v3510 = vsel %vm997, %v3486, 0
        %v3513 = vsel %vm997, %v3487, 0
        %v3516 = vsel %vm997, %v3488, 0
        %3518 = vmatprep.subr.mxu0 0.0
        %3519 = vmatpush1.msra.mxu0 %v3489
        %3520 = vmatprep.subr.mxu0 0.0
        %3521 = vmatpush1.msra.mxu0 %v3490
        %3522 = vmatprep.subr.mxu0 0.0
        %3523 = vmatpush1.msra.mxu0 %v3491
        %3524 = vmatprep.subr.mxu0 0.0
        %3525 = vmatpush1.msra.mxu0 %v3492
        %3526 = vmatprep.subr.mxu0 0.0
        %3527 = vmatpush1.msra.mxu0 0.0
        %3528 = vmatprep.subr.mxu0 0.0
        %3529 = vmatpush1.msra.mxu0 0.0
        %3530 = vmatprep.subr.mxu0 0.0
        %3531 = vmatpush1.msra.mxu0 0.0
        %3532 = vmatprep.subr.mxu0 0.0
        %3533 = vmatpush1.msra.mxu0 0.0
        %3534 = vmatprep.subr.mxu0 0.0
        %3535 = vmatpush1.msra.mxu0 0.0
        %3536 = vmatprep.subr.mxu0 0.0
        %3537 = vmatpush1.msra.mxu0 0.0
        %3538 = vmatprep.subr.mxu0 0.0
        %3539 = vmatpush1.msra.mxu0 0.0
        %3540 = vmatprep.subr.mxu0 0.0
        %3541 = vmatpush1.msra.mxu0 0.0
        %3542 = vmatprep.subr.mxu0 0.0
        %3543 = vmatpush1.msra.mxu0 0.0
        %3544 = vmatprep.subr.mxu0 0.0
        %3545 = vmatpush1.msra.mxu0 0.0
        %3546 = vmatprep.subr.mxu0 0.0
        %3547 = vmatpush1.msra.mxu0 0.0
        %3548 = vmatprep.subr.mxu0 0.0
        %3549 = vmatpush1.msra.mxu0 0.0
        %3550 = vmatprep.subr.mxu0 0.0
        %3551 = vmatpush1.msra.mxu0 0.0
        %3552 = vmatprep.subr.mxu0 0.0
        %3553 = vmatpush1.msra.mxu0 0.0
        %3554 = vmatprep.subr.mxu0 0.0
        %3555 = vmatpush1.msra.mxu0 0.0
        %3556 = vmatprep.subr.mxu0 0.0
        %3557 = vmatpush1.msra.mxu0 0.0
        %3558 = vmatprep.subr.mxu0 0.0
        %3559 = vmatpush1.msra.mxu0 0.0
        %3560 = vmatprep.subr.mxu0 0.0
        %3561 = vmatpush1.msra.mxu0 0.0
        %3562 = vmatprep.subr.mxu0 0.0
        %3563 = vmatpush1.msra.mxu0 0.0
        %3564 = vmatprep.subr.mxu0 0.0
        %3565 = vmatpush1.msra.mxu0 0.0
        %3566 = vmatprep.subr.mxu0 0.0
        %3567 = vmatpush1.msra.mxu0 0.0
        %3568 = vmatprep.subr.mxu0 0.0
        %3569 = vmatpush1.msra.mxu0 0.0
        %3570 = vmatprep.subr.mxu0 0.0
        %3571 = vmatpush1.msra.mxu0 0.0
        %3572 = vmatprep.subr.mxu0 0.0
        %3573 = vmatpush1.msra.mxu0 0.0
        %3574 = vmatprep.subr.mxu0 0.0
        %3575 = vmatpush1.msra.mxu0 0.0
        %3576 = vmatprep.subr.mxu0 0.0
        %3577 = vmatpush1.msra.mxu0 0.0
        %3578 = vmatprep.subr.mxu0 0.0
        %3579 = vmatpush1.msra.mxu0 0.0
        %3580 = vmatprep.subr.mxu0 0.0
        %3581 = vmatpush1.msra.mxu0 0.0
        %3582 = vmatprep.mubr.f32.mxu0 0.0
        %3583 = vmatmul.mubr.f32.gmra.mrb[0].mxu0 %v3501
        %v3584 = vpop.f32.mrb[0].mxu0
        %v3585 = vadd.f32 %v3498, %v3584
        %v3586 = vpop.f32.mrb[0].mxu0
        %3587 = vmatprep.mubr.f32.mxu0 0.0
        %3588 = vmatmul.mubr.f32.gmra.mrb[0].mxu0 %v3504
        %v3589 = vpop.f32.mrb[0].mxu0
        %v3590 = vadd.f32 %v3498, %v3589
        %v3591 = vpop.f32.mrb[0].mxu0
        %3592 = vmatprep.mubr.f32.mxu0 0.0
        %3593 = vmatmul.mubr.f32.gmra.mrb[0].mxu0 %v3507
        %v3594 = vpop.f32.mrb[0].mxu0
        %v3595 = vadd.f32 %v3498, %v3594
        %v3596 = vpop.f32.mrb[0].mxu0
        %3597 = vmatprep.mubr.f32.mxu0 0.0
        %3598 = vmatmul.mubr.f32.gmra.mrb[0].mxu0 %v3510
        %v3599 = vpop.f32.mrb[0].mxu0
        %v3600 = vadd.f32 %v3498, %v3599
        %v3601 = vpop.f32.mrb[0].mxu0
        %3602 = vmatprep.mubr.f32.mxu0 0.0
        %3603 = vmatmul.mubr.f32.gmra.mrb[0].mxu0 %v3513
        %v3604 = vpop.f32.mrb[0].mxu0
        %v3605 = vadd.f32 %v3498, %v3604
        %v3606 = vpop.f32.mrb[0].mxu0
        %3607 = vmatprep.mubr.f32.mxu0 0.0
        %3608 = vmatmul.mubr.f32.gmra.mrb[0].mxu0 %v3516
        %v3609 = vpop.f32.mrb[0].mxu0
        %v3610 = vadd.f32 %v3498, %v3609
        %v3611 = vpop.f32.mrb[0].mxu0
        %3612 = vdwg.mxu0
        %v3613 = vmul.f32 %v3585, 0.5
        %v3614 = vmul.f32 %v3590, 0.5
        %v3615 = vmul.f32 %v3595, 0.5
        %v3616 = vmul.f32 %v3600, 0.5
        %v3617 = vmul.f32 %v3605, 0.5
        %v3618 = vmul.f32 %v3610, 0.5
        %v3619 = vmul.f32 %v3585, 0.70710677
        %v3620 = vmul.f32 %v3590, 0.70710677
        %v3621 = vmul.f32 %v3595, 0.70710677
        %v3622 = vmul.f32 %v3600, 0.70710677
        %v3623 = vmul.f32 %v3605, 0.70710677
        %v3624 = vmul.f32 %v3610, 0.70710677
        %v3625 = verf.f32.pop %v3619
        %v3626 = verf.f32.pop %v3620
        %v3627 = verf.f32.pop %v3621
        %v3628 = verf.f32.pop %v3622
        %v3629 = verf.f32.pop %v3623
        %v3630 = verf.f32.pop %v3624
        %v3631 = vadd.f32 %v3625, 1.0
        %v3632 = vadd.f32 %v3626, 1.0
        %v3633 = vadd.f32 %v3627, 1.0
        %v3634 = vadd.f32 %v3628, 1.0
        %v3635 = vadd.f32 %v3629, 1.0
        %v3636 = vadd.f32 %v3630, 1.0
        %v3637 = vmul.f32 %v3613, %v3631
        %v3638 = vmul.f32 %v3614, %v3632
        %v3639 = vmul.f32 %v3615, %v3633
        %v3640 = vmul.f32 %v3616, %v3634
        %v3641 = vmul.f32 %v3617, %v3635
        %v3642 = vmul.f32 %v3618, %v3636
        %v3643 = vld [vmem:[%s836] sm:$0xff]
        %v3644 = vld [vmem:[%s836 + $0x8] sm:$0xff]
        %v3645 = vld [vmem:[%s836 + $0x10] sm:$0xff]
        %v3646 = vld [vmem:[%s836 + $0x18] sm:$0xff]
        %v3647 = vld [vmem:[%s836 + $0x20] sm:$0xff]
        %v3648 = vld [vmem:[%s836 + $0x28] sm:$0xff]
        %v3649 = vld [vmem:[%s836 + $0x30] sm:$0xff]
        %v3650 = vld [vmem:[%s836 + $0x38] sm:$0xff]
        %v3651 = vld [vmem:[%s836 + $0x40] sm:$0xff]
        %v3652 = vld [vmem:[%s836 + $0x48] sm:$0xff]
        %v3653 = vld [vmem:[%s836 + $0x50] sm:$0xff]
        %v3654 = vld [vmem:[%s836 + $0x58] sm:$0xff]
        %v3655 = vld [vmem:[%s836 + $0x60] sm:$0xff]
        %v3656 = vld [vmem:[%s836 + $0x68] sm:$0xff]
        %v3657 = vld [vmem:[%s836 + $0x70] sm:$0xff]
        %v3658 = vld [vmem:[%s836 + $0x78] sm:$0xff]
        %v3659 = vld [vmem:[%s839] sm:$0x1]
        %v3661 = vlaneseq
        %v3662 = vshrl.u32 %v3661, 7
        %v3663 = vsub.s32 0, %v3662
        %v3664 = vrot.slane %v3659, %v3663
        %3666 = vmatprep.subr.mxu0 0.0
        %3667 = vmatpush1.msra.mxu0 %v3643
        %3668 = vmatprep.subr.mxu0 0.0
        %3669 = vmatpush1.msra.mxu0 %v3644
        %3670 = vmatprep.subr.mxu0 0.0
        %3671 = vmatpush1.msra.mxu0 %v3645
        %3672 = vmatprep.subr.mxu0 0.0
        %3673 = vmatpush1.msra.mxu0 %v3646
        %3674 = vmatprep.subr.mxu0 0.0
        %3675 = vmatpush1.msra.mxu0 %v3647
        %3676 = vmatprep.subr.mxu0 0.0
        %3677 = vmatpush1.msra.mxu0 %v3648
        %3678 = vmatprep.subr.mxu0 0.0
        %3679 = vmatpush1.msra.mxu0 %v3649
        %3680 = vmatprep.subr.mxu0 0.0
        %3681 = vmatpush1.msra.mxu0 %v3650
        %3682 = vmatprep.subr.mxu0 0.0
        %3683 = vmatpush1.msra.mxu0 %v3651
        %3684 = vmatprep.subr.mxu0 0.0
        %3685 = vmatpush1.msra.mxu0 %v3652
        %3686 = vmatprep.subr.mxu0 0.0
        %3687 = vmatpush1.msra.mxu0 %v3653
        %3688 = vmatprep.subr.mxu0 0.0
        %3689 = vmatpush1.msra.mxu0 %v3654
        %3690 = vmatprep.subr.mxu0 0.0
        %3691 = vmatpush1.msra.mxu0 %v3655
        %3692 = vmatprep.subr.mxu0 0.0
        %3693 = vmatpush1.msra.mxu0 %v3656
        %3694 = vmatprep.subr.mxu0 0.0
        %3695 = vmatpush1.msra.mxu0 %v3657
        %3696 = vmatprep.subr.mxu0 0.0
        %3697 = vmatpush1.msra.mxu0 %v3658
        %3698 = vmatprep.subr.mxu0 0.0
        %3699 = vmatpush1.msra.mxu0 0.0
        %3700 = vmatprep.subr.mxu0 0.0
        %3701 = vmatpush1.msra.mxu0 0.0
        %3702 = vmatprep.subr.mxu0 0.0
        %3703 = vmatpush1.msra.mxu0 0.0
        %3704 = vmatprep.subr.mxu0 0.0
        %3705 = vmatpush1.msra.mxu0 0.0
        %3706 = vmatprep.subr.mxu0 0.0
        %3707 = vmatpush1.msra.mxu0 0.0
        %3708 = vmatprep.subr.mxu0 0.0
        %3709 = vmatpush1.msra.mxu0 0.0
        %3710 = vmatprep.subr.mxu0 0.0
        %3711 = vmatpush1.msra.mxu0 0.0
        %3712 = vmatprep.subr.mxu0 0.0
        %3713 = vmatpush1.msra.mxu0 0.0
        %3714 = vmatprep.subr.mxu0 0.0
        %3715 = vmatpush1.msra.mxu0 0.0
        %3716 = vmatprep.subr.mxu0 0.0
        %3717 = vmatpush1.msra.mxu0 0.0
        %3718 = vmatprep.subr.mxu0 0.0
        %3719 = vmatpush1.msra.mxu0 0.0
        %3720 = vmatprep.subr.mxu0 0.0
        %3721 = vmatpush1.msra.mxu0 0.0
        %3722 = vmatprep.subr.mxu0 0.0
        %3723 = vmatpush1.msra.mxu0 0.0
        %3724 = vmatprep.subr.mxu0 0.0
        %3725 = vmatpush1.msra.mxu0 0.0
        %3726 = vmatprep.subr.mxu0 0.0
        %3727 = vmatpush1.msra.mxu0 0.0
        %3728 = vmatprep.subr.mxu0 0.0
        %3729 = vmatpush1.msra.mxu0 0.0
        %3730 = vmatprep.mubr.f32.mxu0 0.0
        %3731 = vmatmul.mubr.f32.gmra.mrb[0].mxu0 %v3637
        %v3732 = vpop.f32.mrb[0].mxu0
        %v3733 = vadd.f32 %v3664, %v3732
        %v3734 = vpop.f32.mrb[0].mxu0
        %3735 = vmatprep.mubr.f32.mxu0 0.0
        %3736 = vmatmul.mubr.f32.gmra.mrb[0].mxu0 %v3638
        %v3737 = vpop.f32.mrb[0].mxu0
        %v3738 = vadd.f32 %v3664, %v3737
        %v3739 = vpop.f32.mrb[0].mxu0
        %3740 = vmatprep.mubr.f32.mxu0 0.0
        %3741 = vmatmul.mubr.f32.gmra.mrb[0].mxu0 %v3639
        %v3742 = vpop.f32.mrb[0].mxu0
        %v3743 = vadd.f32 %v3664, %v3742
        %v3744 = vpop.f32.mrb[0].mxu0
        %3745 = vmatprep.mubr.f32.mxu0 0.0
        %3746 = vmatmul.mubr.f32.gmra.mrb[0].mxu0 %v3640
        %v3747 = vpop.f32.mrb[0].mxu0
        %v3748 = vadd.f32 %v3664, %v3747
        %v3749 = vpop.f32.mrb[0].mxu0
        %3750 = vmatprep.mubr.f32.mxu0 0.0
        %3751 = vmatmul.mubr.f32.gmra.mrb[0].mxu0 %v3641
        %v3752 = vpop.f32.mrb[0].mxu0
        %v3753 = vadd.f32 %v3664, %v3752
        %v3754 = vpop.f32.mrb[0].mxu0
        %3755 = vmatprep.mubr.f32.mxu0 0.0
        %3756 = vmatmul.mubr.f32.gmra.mrb[0].mxu0 %v3642
        %v3757 = vpop.f32.mrb[0].mxu0
        %v3758 = vadd.f32 %v3664, %v3757
        %v3759 = vpop.f32.mrb[0].mxu0
        %3760 = vdwg.mxu0
        %v3761 = vld [vmem:[%s842] sm:$0x1]
        %v3763 = vlaneseq
        %v3764 = vshrl.u32 %v3763, 7
        %v3765 = vsub.s32 0, %v3764
        %v3766 = vrot.slane %v3761, %v3765
        %v3768 = vmul.f32 %v3766, %v3733
        %v3769 = vmul.f32 %v3766, %v3738
        %v3770 = vmul.f32 %v3766, %v3743
        %v3771 = vmul.f32 %v3766, %v3748
        %v3772 = vmul.f32 %v3766, %v3753
        %v3773 = vmul.f32 %v3766, %v3758
        %v3774 = vadd.f32 %v3379, %v3768
        %v3775 = vadd.f32 %v3380, %v3769
        %v3776 = vadd.f32 %v3381, %v3770
        %v3777 = vadd.f32 %v3382, %v3771
        %v3778 = vadd.f32 %v3383, %v3772
        %v3779 = vadd.f32 %v3384, %v3773
        %3780 = vst.msk [vmem:[#allocation2] sm:$0xff] %vm997, %v3774
        %3781 = vst.msk [vmem:[#allocation2 + $0x8] sm:$0xff] %vm997, %v3775
        %3782 = vst.msk [vmem:[#allocation2 + $0x10] sm:$0xff] %vm997, %v3776
        %3783 = vst.msk [vmem:[#allocation2 + $0x18] sm:$0xff] %vm997, %v3777
        %3784 = vst.msk [vmem:[#allocation2 + $0x20] sm:$0xff] %vm997, %v3778
        %3785 = vst.msk [vmem:[#allocation2 + $0x28] sm:$0xff] %vm997, %v3779
        %p3786 = scmp.eq.s32.totalorder %s33, 1
        // Predicated region
        $region109: #{vit_forward.1} parent=103 // pred_check
          %p3787 = pneg %p3786
        $region110: #{vit_forward.1} parent=103 // pred_check_branch
          %3789 = sbr.rel (%p3787) target = $region112
        $region111: #{vit_forward.1} parent=103 // pred_region
          %v3791 = vrot.slane %v3777, 7
          %vm3793 = vcmask 1040384
          %v3794 = vsel %vm3793, %v3774, %v3791
          %v3795 = vld [vmem:[%s17] sm:$0x1]
          %v3796 = vld [vmem:[%s18] sm:$0x1]
          %vm3797 = vcmask 254976
          %v3798 = vsel %vm3797, %v3794, 0.0
          %3799 = vadd.xlane.f32.xlu0 %v3798
          %v3800 = vpop.xlane.xlu0 %3799
          %v3801 = vmul.f32 %v3800, %v1016
          %v3802 = vsub.f32 %v3794, %v3801
          %v3803 = vmul.f32 %v3802, %v3802
          %v3804 = vsel %vm3797, %v3803, 0.0
          %3805 = vadd.xlane.f32.xlu0 %v3804
          %v3806 = vpop.xlane.xlu0 %3805
          %v3807 = vmul.f32 %v3806, %v1016
          %v3808 = vadd.f32 %v3807, 1e-06
          %v3809 = vrsqrt.pop %v3808
          %v3810 = vmul.f32 %v3802, %v3809
          %v3812 = vlaneseq
          %v3813 = vshrl.u32 %v3812, 7
          %v3814 = vsub.s32 0, %v3813
          %v3815 = vrot.slane %v3795, %v3814
          %v3817 = vmul.f32 %v3810, %v3815
          %v3819 = vlaneseq
          %v3820 = vshrl.u32 %v3819, 7
          %v3821 = vsub.s32 0, %v3820
          %v3822 = vrot.slane %v3796, %v3821
          %v3824 = vadd.f32 %v3817, %v3822
          %v3825 = vld [vmem:[%s19] sm:$0xff]
          %v3826 = vld [vmem:[%s19 + $0x8] sm:$0xff]
          %v3827 = vld [vmem:[%s19 + $0x10] sm:$0xff]
          %v3828 = vld [vmem:[%s19 + $0x18] sm:$0xff]
          %v3829 = vld [vmem:[%s20] sm:$0x1]
          %v3831 = vlaneseq
          %v3832 = vshrl.u32 %v3831, 7
          %v3833 = vsub.s32 0, %v3832
          %v3834 = vrot.slane %v3829, %v3833
          %v3837 = vsel %vm997, %v3824, 0
          %3839 = vmatprep.subr.mxu0 0.0
          %3840 = vmatpush1.msra.mxu0 %v3825
          %3841 = vmatprep.subr.mxu0 0.0
          %3842 = vmatpush1.msra.mxu0 %v3826
          %3843 = vmatprep.subr.mxu0 0.0
          %3844 = vmatpush1.msra.mxu0 %v3827
          %3845 = vmatprep.subr.mxu0 0.0
          %3846 = vmatpush1.msra.mxu0 %v3828
          %3847 = vmatprep.subr.mxu0 0.0
          %3848 = vmatpush1.msra.mxu0 0.0
          %3849 = vmatprep.subr.mxu0 0.0
          %3850 = vmatpush1.msra.mxu0 0.0
          %3851 = vmatprep.subr.mxu0 0.0
          %3852 = vmatpush1.msra.mxu0 0.0
          %3853 = vmatprep.subr.mxu0 0.0
          %3854 = vmatpush1.msra.mxu0 0.0
          %3855 = vmatprep.subr.mxu0 0.0
          %3856 = vmatpush1.msra.mxu0 0.0
          %3857 = vmatprep.subr.mxu0 0.0
          %3858 = vmatpush1.msra.mxu0 0.0
          %3859 = vmatprep.subr.mxu0 0.0
          %3860 = vmatpush1.msra.mxu0 0.0
          %3861 = vmatprep.subr.mxu0 0.0
          %3862 = vmatpush1.msra.mxu0 0.0
          %3863 = vmatprep.subr.mxu0 0.0
          %3864 = vmatpush1.msra.mxu0 0.0
          %3865 = vmatprep.subr.mxu0 0.0
          %3866 = vmatpush1.msra.mxu0 0.0
          %3867 = vmatprep.subr.mxu0 0.0
          %3868 = vmatpush1.msra.mxu0 0.0
          %3869 = vmatprep.subr.mxu0 0.0
          %3870 = vmatpush1.msra.mxu0 0.0
          %3871 = vmatprep.subr.mxu0 0.0
          %3872 = vmatpush1.msra.mxu0 0.0
          %3873 = vmatprep.subr.mxu0 0.0
          %3874 = vmatpush1.msra.mxu0 0.0
          %3875 = vmatprep.subr.mxu0 0.0
          %3876 = vmatpush1.msra.mxu0 0.0
          %3877 = vmatprep.subr.mxu0 0.0
          %3878 = vmatpush1.msra.mxu0 0.0
          %3879 = vmatprep.subr.mxu0 0.0
          %3880 = vmatpush1.msra.mxu0 0.0
          %3881 = vmatprep.subr.mxu0 0.0
          %3882 = vmatpush1.msra.mxu0 0.0
          %3883 = vmatprep.subr.mxu0 0.0
          %3884 = vmatpush1.msra.mxu0 0.0
          %3885 = vmatprep.subr.mxu0 0.0
          %3886 = vmatpush1.msra.mxu0 0.0
          %3887 = vmatprep.subr.mxu0 0.0
          %3888 = vmatpush1.msra.mxu0 0.0
          %3889 = vmatprep.subr.mxu0 0.0
          %3890 = vmatpush1.msra.mxu0 0.0
          %3891 = vmatprep.subr.mxu0 0.0
          %3892 = vmatpush1.msra.mxu0 0.0
          %3893 = vmatprep.subr.mxu0 0.0
          %3894 = vmatpush1.msra.mxu0 0.0
          %3895 = vmatprep.subr.mxu0 0.0
          %3896 = vmatpush1.msra.mxu0 0.0
          %3897 = vmatprep.subr.mxu0 0.0
          %3898 = vmatpush1.msra.mxu0 0.0
          %3899 = vmatprep.subr.mxu0 0.0
          %3900 = vmatpush1.msra.mxu0 0.0
          %3901 = vmatprep.subr.mxu0 0.0
          %3902 = vmatpush1.msra.mxu0 0.0
          %3903 = vmatprep.mubr.f32.mxu0 0.0
          %3904 = vmatmul.mubr.f32.gmra.mrb[0].mxu0 %v3837
          %v3905 = vpop.f32.mrb[0].mxu0
          %v3906 = vadd.f32 %v3834, %v3905
          %v3907 = vpop.f32.mrb[0].mxu0
          %3908 = vdwg.mxu0
          %vm3909 = vcmask 74752
          %3910 = vst.msk [vmem:[#allocation3] sm:$0x3] %vm3909, %v3906
        $region112: #{vit_forward.1} parent=103 // pred_fallthru
          _
        // Predicated region
        $region113: #{vit_forward.1} parent=103 // pred_check
          %p3911 = pneg %p557
        $region114: #{vit_forward.1} parent=103 // pred_check_branch
          %3913 = sbr.rel (%p3911) target = $region116
        $region115: #{vit_forward.1} parent=103 // pred_region
          %s3915 = ssub.s32 32, 32
          %3916 = vsyncadd [#allocation4], %s3915
          %s3918 = sshll.u32 [#allocation3], 4
          %s3919 = int_to_ptr.vmem [resolvable:$true] %s3918
          %3921 = dma.vmem_to_hbm [thread:$0]  %s3919, 32, %s21, [#allocation4]
        $region116: #{vit_forward.1} parent=103 // pred_fallthru
          _
        // Predicated region
        $region117: #{vit_forward.1} parent=103 // pred_check
          %p3922 = pneg %p557
        $region118: #{vit_forward.1} parent=103 // pred_check_branch
          %3924 = sbr.rel (%p3922) target = $region120
        $region119: #{vit_forward.1} parent=103 // pred_region
          %3925 = dma.done [#allocation4], 32
        $region120: #{vit_forward.1} parent=103 // pred_fallthru
          _
      $region104: #{vit_forward.1} parent=5 // pred_fallthru
        _
      %p3926 = scmp.le.s32.totalorder 2, %s28
      // Predicated region
      $region121: #{vit_forward.1} parent=5 // pred_check
        %p3927 = pneg %p3926
      $region122: #{vit_forward.1} parent=5 // pred_check_branch
        %3929 = sbr.rel (%p3927) target = $region124
      $region123: #{vit_forward.1} parent=5 // pred_region
        %s3930 = ssub.s32 %s28, 2
      $region124: #{vit_forward.1} parent=5 // pred_fallthru
        _
    $region6: #{vit_forward.1} parent=1 // loop_footer
      %s32 = sadd.s32 1, %s28
    $region7: #{vit_forward.1} parent=1 // loop_footer_branch
      %27 = sbr.rel target = $region3
    $region8: #{vit_forward.1} parent=1 // loop_exit
      _
    %3931 = vsyncpa [#allocation4], 1
    %s3932 = scalar_lea.sflag [#allocation4], 1
    %3933 = vsyncpa %s3932, 1

</llo_original>
